<compile_context>
chip_gen: v7x
topology: tpu7x:2x2x1
jax: 0.10.0
libtpu: 0.0.40
codegen_flags: <defaults>
</compile_context>

<pallas_src>
import math
import functools

import jax
import jax.numpy as jnp
from jax.experimental import pallas as pl
from jax.experimental.pallas import tpu as pltpu

_VMEM_LIMIT = 48 * 1024 * 1024  # headroom under v7x's 64 MiB, raises v5e/v6e default


# ------------------------------------------------------------- tiling utils --

def _tile(dim, preferred, granularity):
    """Largest tile <= preferred that divides dim and is a multiple of
    `granularity`; falls back to the full dim (always legal)."""
    if dim <= preferred:
        return dim
    t = preferred
    while t >= granularity:
        if dim % t == 0:
            return t
        t //= 2
    return dim


# ------------------------------------------------------------------ kernels --

def _matmul_kernel(x_ref, w_ref, b_ref, o_ref, acc_ref, *, relu):
    # grid = (Mt, Nt, Kt); K is the accumulation axis.
    @pl.when(pl.program_id(2) == 0)
    def _():
        acc_ref[...] = jnp.zeros_like(acc_ref)

    acc_ref[...] += jnp.dot(x_ref[...], w_ref[...],
                            preferred_element_type=jnp.float32)

    @pl.when(pl.program_id(2) == pl.num_programs(2) - 1)
    def _():
        y = acc_ref[...] + b_ref[...]
        if relu:
            y = jnp.maximum(y, 0.0)
        o_ref[...] = y


def pallas_linear(x2d, w_t, b, relu=False, *, tm=256, tn=512, tk=512):
    """y = x @ w_t + b  (w_t is (in, out)); optional fused ReLU. Tiled + pipelined."""
    M, K = x2d.shape
    N = w_t.shape[1]
    bm = _tile(M, tm, 8)
    bn = _tile(N, tn, 128)
    bk = _tile(K, tk, 128)
    grid = (M // bm, N // bn, K // bk)
    cost = pl.CostEstimate(flops=2 * M * K * N, transcendentals=0,
                           bytes_accessed=4 * (M * K + K * N + M * N + N))
    return pl.pallas_call(
        functools.partial(_matmul_kernel, relu=relu),
        out_shape=jax.ShapeDtypeStruct((M, N), jnp.float32),
        grid=grid,
        in_specs=[
            pl.BlockSpec((bm, bk), lambda i, j, k: (i, k)),
            pl.BlockSpec((bk, bn), lambda i, j, k: (k, j)),
            pl.BlockSpec((1, bn), lambda i, j, k: (0, j)),
        ],
        out_specs=pl.BlockSpec((bm, bn), lambda i, j, k: (i, j)),
        scratch_shapes=[pltpu.VMEM((bm, bn), jnp.float32)],
        compiler_params=pltpu.CompilerParams(
            dimension_semantics=("parallel", "parallel", "arbitrary"),
            vmem_limit_bytes=_VMEM_LIMIT),
        cost_estimate=cost,
    )(x2d, w_t, b.reshape(1, N))


def _linear_res_ln_kernel(x_ref, w_ref, b_ref, r_ref, g_ref, bb_ref,
                          o_ref, acc_ref):
    # grid = (Mt, Kt); output N (=d_model) kept whole so LN can run in-epilogue.
    @pl.when(pl.program_id(1) == 0)
    def _():
        acc_ref[...] = jnp.zeros_like(acc_ref)

    acc_ref[...] += jnp.dot(x_ref[...], w_ref[...],
                            preferred_element_type=jnp.float32)

    @pl.when(pl.program_id(1) == pl.num_programs(1) - 1)
    def _():
        y = acc_ref[...] + b_ref[...] + r_ref[...]
        mean = jnp.mean(y, axis=-1, keepdims=True)
        c = y - mean
        var = jnp.mean(c * c, axis=-1, keepdims=True)
        o_ref[...] = c * jax.lax.rsqrt(var + 1e-5) * g_ref[...] + bb_ref[...]


def pallas_linear_add_ln(x2d, w_t, b, resid2d, gamma, beta, *, tm=256, tk=512):
    """LayerNorm(resid + (x @ w_t + b)) fused into the matmul epilogue."""
    M, K = x2d.shape
    D = w_t.shape[1]
    bm = _tile(M, tm, 8)
    bk = _tile(K, tk, 128)
    grid = (M // bm, K // bk)
    cost = pl.CostEstimate(flops=2 * M * K * D + 8 * M * D,
                           transcendentals=M,
                           bytes_accessed=4 * (M * K + K * D + 2 * M * D + 3 * D))
    return pl.pallas_call(
        _linear_res_ln_kernel,
        out_shape=jax.ShapeDtypeStruct((M, D), jnp.float32),
        grid=grid,
        in_specs=[
            pl.BlockSpec((bm, bk), lambda i, k: (i, k)),
            pl.BlockSpec((bk, D), lambda i, k: (k, 0)),
            pl.BlockSpec((1, D), lambda i, k: (0, 0)),
            pl.BlockSpec((bm, D), lambda i, k: (i, 0)),
            pl.BlockSpec((1, D), lambda i, k: (0, 0)),
            pl.BlockSpec((1, D), lambda i, k: (0, 0)),
        ],
        out_specs=pl.BlockSpec((bm, D), lambda i, k: (i, 0)),
        scratch_shapes=[pltpu.VMEM((bm, D), jnp.float32)],
        compiler_params=pltpu.CompilerParams(
            dimension_semantics=("parallel", "arbitrary"),
            vmem_limit_bytes=_VMEM_LIMIT),
        cost_estimate=cost,
    )(x2d, w_t, b.reshape(1, D), resid2d, gamma.reshape(1, D), beta.reshape(1, D))


def _ffn_ln_kernel(x_ref, w1_ref, b1_ref, w2_ref, b2_ref, g_ref, bb_ref,
                   o_ref, acc_ref):
    # grid = (Mt, Ht); hidden dim is the accumulation axis, `h` stays in VMEM.
    @pl.when(pl.program_id(1) == 0)
    def _():
        acc_ref[...] = jnp.zeros_like(acc_ref)

    h = jnp.maximum(
        jnp.dot(x_ref[...], w1_ref[...], preferred_element_type=jnp.float32)
        + b1_ref[...], 0.0)
    acc_ref[...] += jnp.dot(h, w2_ref[...], preferred_element_type=jnp.float32)

    @pl.when(pl.program_id(1) == pl.num_programs(1) - 1)
    def _():
        y = acc_ref[...] + b2_ref[...] + x_ref[...]          # residual = x
        mean = jnp.mean(y, axis=-1, keepdims=True)
        c = y - mean
        var = jnp.mean(c * c, axis=-1, keepdims=True)
        o_ref[...] = c * jax.lax.rsqrt(var + 1e-5) * g_ref[...] + bb_ref[...]


def pallas_ffn_ln(x2d, w1_t, b1, w2_t, b2, gamma, beta, *, tm=256, th=512):
    """LayerNorm(x + linear2(relu(linear1(x)))) in one fused kernel."""
    M, D = x2d.shape
    H = w1_t.shape[1]
    bm = _tile(M, tm, 8)
    bh = _tile(H, th, 128)
    grid = (M // bm, H // bh)
    cost = pl.CostEstimate(flops=4 * M * D * H + 8 * M * D,
                           transcendentals=M,
                           bytes_accessed=4 * (2 * M * D + 2 * D * H + H + 3 * D))
    return pl.pallas_call(
        _ffn_ln_kernel,
        out_shape=jax.ShapeDtypeStruct((M, D), jnp.float32),
        grid=grid,
        in_specs=[
            pl.BlockSpec((bm, D), lambda i, h: (i, 0)),
            pl.BlockSpec((D, bh), lambda i, h: (0, h)),
            pl.BlockSpec((1, bh), lambda i, h: (0, h)),
            pl.BlockSpec((bh, D), lambda i, h: (h, 0)),
            pl.BlockSpec((1, D), lambda i, h: (0, 0)),
            pl.BlockSpec((1, D), lambda i, h: (0, 0)),
            pl.BlockSpec((1, D), lambda i, h: (0, 0)),
        ],
        out_specs=pl.BlockSpec((bm, D), lambda i, h: (i, 0)),
        scratch_shapes=[pltpu.VMEM((bm, D), jnp.float32)],
        compiler_params=pltpu.CompilerParams(
            dimension_semantics=("parallel", "arbitrary"),
            vmem_limit_bytes=_VMEM_LIMIT),
        cost_estimate=cost,
    )(x2d, w1_t, b1.reshape(1, H), w2_t, b2.reshape(1, D),
      gamma.reshape(1, D), beta.reshape(1, D))


def _attn_heads(q, k, v, nhead, dh, scale):
    """All-heads attention on 2D (L, E) / (Lk, E) VMEM values. Head split/merge
    happens here (in VMEM), never in HBM."""
    outs = []
    for h in range(nhead):
        qh = q[:, h * dh:(h + 1) * dh] * scale          # fold 1/sqrt(dh) into q
        kh = k[:, h * dh:(h + 1) * dh]
        vh = v[:, h * dh:(h + 1) * dh]
        s = jax.lax.dot_general(qh, kh, (((1,), (1,)), ((), ())),
                                preferred_element_type=jnp.float32)
        m = jnp.max(s, axis=-1, keepdims=True)
        p = jnp.exp(s - m)
        p = p * pl.reciprocal(jnp.sum(p, axis=-1, keepdims=True), approx=True)
        outs.append(jnp.dot(p, vh, preferred_element_type=jnp.float32))
    return jnp.concatenate(outs, axis=-1)


def _self_attn_kernel(qkv_ref, o_ref, *, nhead, dh, scale, E):
    qkv = qkv_ref[0]                                    # (L, 3E)
    o_ref[0] = _attn_heads(qkv[:, :E], qkv[:, E:2 * E], qkv[:, 2 * E:],
                           nhead, dh, scale)


def _cross_attn_kernel(q_ref, kv_ref, o_ref, *, nhead, dh, scale, E):
    kv = kv_ref[0]                                      # (Lk, 2E)
    o_ref[0] = _attn_heads(q_ref[0], kv[:, :E], kv[:, E:], nhead, dh, scale)


def pallas_mha_self(qkv, nhead):
    """qkv: (N, L, 3E) -> (N, L, E); grid over the batch axis N."""
    N, L, E3 = qkv.shape
    E = E3 // 3
    dh = E // nhead
    return pl.pallas_call(
        functools.partial(_self_attn_kernel, nhead=nhead, dh=dh,
                          scale=1.0 / math.sqrt(dh), E=E),
        out_shape=jax.ShapeDtypeStruct((N, L, E), jnp.float32),
        grid=(N,),
        in_specs=[pl.BlockSpec((1, L, E3), lambda n: (n, 0, 0))],
        out_specs=pl.BlockSpec((1, L, E), lambda n: (n, 0, 0)),
        compiler_params=pltpu.CompilerParams(
            dimension_semantics=("parallel",), vmem_limit_bytes=_VMEM_LIMIT),
    )(qkv)


def pallas_mha_cross(q, kv, nhead):
    """q: (N, L, E), kv: (N, Lk, 2E) -> (N, L, E)."""
    N, L, E = q.shape
    Lk = kv.shape[1]
    dh = E // nhead
    return pl.pallas_call(
        functools.partial(_cross_attn_kernel, nhead=nhead, dh=dh,
                          scale=1.0 / math.sqrt(dh), E=E),
        out_shape=jax.ShapeDtypeStruct((N, L, E), jnp.float32),
        grid=(N,),
        in_specs=[
            pl.BlockSpec((1, L, E), lambda n: (n, 0, 0)),
            pl.BlockSpec((1, Lk, 2 * E), lambda n: (n, 0, 0)),
        ],
        out_specs=pl.BlockSpec((1, L, E), lambda n: (n, 0, 0)),
        compiler_params=pltpu.CompilerParams(
            dimension_semantics=("parallel",), vmem_limit_bytes=_VMEM_LIMIT),
    )(q, kv)


def _scale_pe_kernel(e_ref, pe_ref, o_ref, *, scale):
    o_ref[...] = e_ref[...] * scale + pe_ref[...]


def pallas_scale_add_pe(emb, pe_slice, scale):
    """emb * sqrt(d_model) + pe; emb is (S, B, D), pe_slice is (S, 1, D)."""
    S, B, D = emb.shape
    return pl.pallas_call(
        functools.partial(_scale_pe_kernel, scale=scale),
        out_shape=jax.ShapeDtypeStruct((S, B, D), jnp.float32),
        grid=(S,),
        in_specs=[
            pl.BlockSpec((1, B, D), lambda s: (s, 0, 0)),
            pl.BlockSpec((1, 1, D), lambda s: (s, 0, 0)),
        ],
        out_specs=pl.BlockSpec((1, B, D), lambda s: (s, 0, 0)),
        compiler_params=pltpu.CompilerParams(dimension_semantics=("parallel",)),
    )(emb, pe_slice)


# ----------------------------------------------------------------- modules --

def decoder_layer(x, mem_flat, p, nhead):
    """nn.TransformerDecoderLayer (post-norm, ReLU FFN, dropout disabled).

    x: (N, L, E) where attention mixes along L; mem_flat: (N*Lk, E)."""
    N, L, E = x.shape
    Lk = L
    xf = x.reshape(N * L, E)

    # --- self-attention (fused QKV projection, fused out-proj + add + LN) ---
    qkv = pallas_linear(xf, p["sa_wqkv_t"], p["sa_bqkv"]).reshape(N, L, 3 * E)
    sa = pallas_mha_self(qkv, nhead).reshape(N * L, E)
    xf = pallas_linear_add_ln(sa, p["sa_wo_t"], p["sa_bo"], xf,
                              p["ln1_g"], p["ln1_b"])

    # --- cross-attention (fused KV projection of memory) ---
    q = pallas_linear(xf, p["ca_wq_t"], p["ca_bq"]).reshape(N, L, E)
    kv = pallas_linear(mem_flat, p["ca_wkv_t"], p["ca_bkv"]).reshape(N, Lk, 2 * E)
    ca = pallas_mha_cross(q, kv, nhead).reshape(N * L, E)
    xf = pallas_linear_add_ln(ca, p["ca_wo_t"], p["ca_bo"], xf,
                              p["ln2_g"], p["ln2_b"])

    # --- fused FFN + residual + LN ---
    xf = pallas_ffn_ln(xf, p["w1_t"], p["b1"], p["w2_t"], p["b2"],
                       p["ln3_g"], p["ln3_b"])
    return xf.reshape(N, L, E)


def gpt_forward(params, src, *, d_model, nhead):
    """GPTModel.forward(src, src_mask=None)."""
    # TODO(synk): src_mask / tgt_mask path not implemented; forward() uses the
    # default src_mask=None, which is what we reproduce here.
    B, S = src.shape
    # Gather directly into (S, B, D) layout (S = batch axis of the non
    # batch_first transformer, B = attention/sequence axis).
    emb = jnp.take(params["embedding"], src.T, axis=0)            # glue gather
    pe_slice = params["pe"][:S].reshape(S, 1, d_model)
    x = pallas_scale_add_pe(emb, pe_slice, math.sqrt(d_model))    # (S, B, D)

    mem_flat = x.reshape(S * B, d_model)
    tgt = x
    for layer in params["layers"]:
        tgt = decoder_layer(tgt, mem_flat, layer, nhead)

    logits = pallas_linear(tgt.reshape(S * B, d_model),
                           params["fc_out_w_t"], params["fc_out_b"])
    return logits.reshape(S, B, -1).transpose(1, 0, 2)            # (B, S, V)


# ------------------------------------------------------------- param setup --

def _make_pe(max_len, d_model):
    pos = jnp.arange(max_len, dtype=jnp.float32)[:, None]
    div = jnp.exp(
        jnp.arange(0, d_model, 2, dtype=jnp.float32) * (-math.log(10000.0) / d_model)
    )
    pe = jnp.zeros((max_len, d_model), jnp.float32)
    pe = pe.at[:, 0::2].set(jnp.sin(pos * div))
    pe = pe.at[:, 1::2].set(jnp.cos(pos * div))
    return pe                                                     # (max_len, D)


def init_params(key, *, vocab_size, d_model, nhead, d_hid, nlayers, max_len=64):
    def unif(k, shape, lim):
        return jax.random.uniform(k, shape, jnp.float32, -lim, lim)

    keys = jax.random.split(key, 2 + nlayers)
    params = {
        "embedding": unif(keys[0], (vocab_size, d_model), 0.1),
        "fc_out_w_t": unif(keys[1], (d_model, vocab_size), 0.1),
        "fc_out_b": jnp.zeros((vocab_size,), jnp.float32),
        "pe": _make_pe(max_len, d_model),
        "layers": [],
    }

    lim = 1.0 / math.sqrt(d_model)
    for li in range(nlayers):
        ks = jax.random.split(keys[2 + li], 6)
        layer = {
            # self-attention: fused QKV + out-proj
            "sa_wqkv_t": unif(ks[0], (d_model, 3 * d_model), lim),
            "sa_bqkv": jnp.zeros((3 * d_model,), jnp.float32),
            "sa_wo_t": unif(ks[1], (d_model, d_model), lim),
            "sa_bo": jnp.zeros((d_model,), jnp.float32),
            # cross-attention: Q on tgt, fused KV on memory, out-proj
            "ca_wq_t": unif(ks[2], (d_model, d_model), lim),
            "ca_bq": jnp.zeros((d_model,), jnp.float32),
            "ca_wkv_t": unif(ks[3], (d_model, 2 * d_model), lim),
            "ca_bkv": jnp.zeros((2 * d_model,), jnp.float32),
            "ca_wo_t": unif(ks[4], (d_model, d_model), lim),
            "ca_bo": jnp.zeros((d_model,), jnp.float32),
            # FFN
            "w1_t": unif(ks[5], (d_model, d_hid), lim),
            "b1": jnp.zeros((d_hid,), jnp.float32),
            "w2_t": unif(jax.random.fold_in(ks[5], 1), (d_hid, d_model),
                         1.0 / math.sqrt(d_hid)),
            "b2": jnp.zeros((d_model,), jnp.float32),
            # LayerNorms
            "ln1_g": jnp.ones((d_model,), jnp.float32),
            "ln1_b": jnp.zeros((d_model,), jnp.float32),
            "ln2_g": jnp.ones((d_model,), jnp.float32),
            "ln2_b": jnp.zeros((d_model,), jnp.float32),
            "ln3_g": jnp.ones((d_model,), jnp.float32),
            "ln3_b": jnp.zeros((d_model,), jnp.float32),
        }
        params["layers"].append(layer)
    return params


# ------------------------------------------------------------------- main ---

if __name__ == "__main__":
    vocab_size, d_model, nhead, d_hid, nlayers = 128, 32, 4, 64, 2
    B, S = 2, 8

    key = jax.random.PRNGKey(0)
    k_params, k_tok = jax.random.split(key)
    params = init_params(
        k_params,
        vocab_size=vocab_size,
        d_model=d_model,
        nhead=nhead,
        d_hid=d_hid,
        nlayers=nlayers,
    )
    src = jax.random.randint(k_tok, (B, S), 0, vocab_size, dtype=jnp.int32)

    fwd = jax.jit(functools.partial(gpt_forward, d_model=d_model, nhead=nhead))
    logits = fwd(params, src)
    jax.block_until_ready(logits)

    assert logits.shape == (B, S, vocab_size), logits.shape
    assert logits.dtype == jnp.float32
    assert bool(jnp.all(jnp.isfinite(logits)))
    print("KERNEL_OK")
</pallas_src>

<mosaic_0001>
module attributes {stable_mosaic.version = 11 : i64} {
  func.func @_scale_pe_kernel(%arg0: i32, %arg1: memref<1x2x32xf32, #tpu.memory_space<vmem>>, %arg2: memref<1x1x32xf32, #tpu.memory_space<vmem>>, %arg3: memref<1x2x32xf32, #tpu.memory_space<vmem>>) attributes {dimension_semantics = [#tpu.dimension_semantics<parallel>], iteration_bounds = array<i64: 8>, scalar_prefetch = 0 : i64, scratch_operands = 0 : i64, tpu.core_type = #tpu.core_type<tc>, window_params = [{transform_indices = @transform_0, window_bounds = array<i64: 1, 2, 32>}, {transform_indices = @transform_1, window_bounds = array<i64: 1, 1, 32>}, {transform_indices = @transform_2, window_bounds = array<i64: 1, 2, 32>}]} {
    %c0 = arith.constant 0 : index
    %c0_0 = arith.constant 0 : index
    %c0_1 = arith.constant 0 : index
    %0 = vector.load %arg1[%c0, %c0_0, %c0_1] : memref<1x2x32xf32, #tpu.memory_space<vmem>>, vector<1x2x32xf32>
    %cst = arith.constant 5.65685415 : f32
    %1 = vector.broadcast %cst : f32 to vector<1x2x32xf32>
    %2 = arith.mulf %0, %1 : vector<1x2x32xf32>
    %c0_2 = arith.constant 0 : index
    %c0_3 = arith.constant 0 : index
    %c0_4 = arith.constant 0 : index
    %3 = vector.load %arg2[%c0_2, %c0_3, %c0_4] : memref<1x1x32xf32, #tpu.memory_space<vmem>>, vector<1x1x32xf32>
    %4 = vector.broadcast %3 : vector<1x1x32xf32> to vector<1x2x32xf32>
    %5 = arith.addf %2, %4 : vector<1x2x32xf32>
    %c0_5 = arith.constant 0 : index
    %c0_6 = arith.constant 0 : index
    %c0_7 = arith.constant 0 : index
    %6 = vector.load %arg3[%c0_5, %c0_6, %c0_7] : memref<1x2x32xf32, #tpu.memory_space<vmem>>, vector<1x2x32xf32>
    tpu.vector_store %arg3[%c0_5, %c0_6, %c0_7], %5 {strides = array<i32>} : memref<1x2x32xf32, #tpu.memory_space<vmem>>, vector<1x2x32xf32>,
    return
  }
  func.func @transform_0(%arg0: i32) -> (i32, i32, i32) {
    %c0_i32 = arith.constant 0 : i32
    %c0_i32_0 = arith.constant 0 : i32
    %c0_i32_1 = arith.constant 0 : i32
    return %arg0, %c0_i32, %c0_i32_0 : i32, i32, i32
  }
  func.func @transform_1(%arg0: i32) -> (i32, i32, i32) {
    %c0_i32 = arith.constant 0 : i32
    %c0_i32_0 = arith.constant 0 : i32
    %c0_i32_1 = arith.constant 0 : i32
    return %arg0, %c0_i32, %c0_i32_0 : i32, i32, i32
  }
  func.func @transform_2(%arg0: i32) -> (i32, i32, i32) {
    %c0_i32 = arith.constant 0 : i32
    %c0_i32_0 = arith.constant 0 : i32
    %c0_i32_1 = arith.constant 0 : i32
    return %arg0, %c0_i32, %c0_i32_0 : i32, i32, i32
  }
}

module attributes {stable_mosaic.version = 11 : i64} {
  func.func @_matmul_kernel(%arg0: i32, %arg1: i32, %arg2: i32, %arg3: memref<16x32xf32, #tpu.memory_space<vmem>>, %arg4: memref<32x96xf32, #tpu.memory_space<vmem>>, %arg5: memref<1x96xf32, #tpu.memory_space<vmem>>, %arg6: memref<16x96xf32, #tpu.memory_space<vmem>>, %arg7: memref<16x96xf32, #tpu.memory_space<vmem>>) attributes {dimension_semantics = [#tpu.dimension_semantics<parallel>, #tpu.dimension_semantics<parallel>, #tpu.dimension_semantics<arbitrary>], iteration_bounds = array<i64: 1, 1, 1>, scalar_prefetch = 0 : i64, scratch_operands = 1 : i64, tpu.core_type = #tpu.core_type<tc>, window_params = [{transform_indices = @transform_0, window_bounds = array<i64: 16, 32>}, {transform_indices = @transform_1, window_bounds = array<i64: 32, 96>}, {transform_indices = @transform_2, window_bounds = array<i64: 1, 96>}, {transform_indices = @transform_3, window_bounds = array<i64: 16, 96>}]} {
    %c0_i32 = arith.constant 0 : i32
    %0 = arith.cmpi eq, %arg2, %c0_i32 : i32
    %1 = arith.extui %0 : i1 to i32
    %c0_i32_0 = arith.constant 0 : i32
    %2 = arith.cmpi ne, %1, %c0_i32_0 : i32
    scf.if %2 {
      %cst_10 = arith.constant 0.000000e+00 : f32
      %12 = vector.broadcast %cst_10 : f32 to vector<16x96xf32>
      %c0_11 = arith.constant 0 : index
      %c0_12 = arith.constant 0 : index
      %13 = vector.load %arg7[%c0_11, %c0_12] : memref<16x96xf32, #tpu.memory_space<vmem>>, vector<16x96xf32>
      tpu.vector_store %arg7[%c0_11, %c0_12], %12 {strides = array<i32>} : memref<16x96xf32, #tpu.memory_space<vmem>>, vector<16x96xf32>,
    } else {
    }
    %c0 = arith.constant 0 : index
    %c0_1 = arith.constant 0 : index
    %3 = vector.load %arg7[%c0, %c0_1] : memref<16x96xf32, #tpu.memory_space<vmem>>, vector<16x96xf32>
    %c0_2 = arith.constant 0 : index
    %c0_3 = arith.constant 0 : index
    %4 = vector.load %arg3[%c0_2, %c0_3] : memref<16x32xf32, #tpu.memory_space<vmem>>, vector<16x32xf32>
    %c0_4 = arith.constant 0 : index
    %c0_5 = arith.constant 0 : index
    %5 = vector.load %arg4[%c0_4, %c0_5] : memref<32x96xf32, #tpu.memory_space<vmem>>, vector<32x96xf32>
    %cst = arith.constant dense<0.000000e+00> : vector<16x96xf32>
    %6 = tpu.matmul %4, %5, %cst {dimension_numbers = #tpu.dot_dimension_numbers<[1], [0], [0], [1], [0, 0, 1, 1], [], []>} : vector<16x32xf32>, vector<32x96xf32>, vector<16x96xf32> -> vector<16x96xf32>
    %7 = arith.addf %3, %6 : vector<16x96xf32>
    %c0_6 = arith.constant 0 : index
    %c0_7 = arith.constant 0 : index
    %8 = vector.load %arg7[%c0_6, %c0_7] : memref<16x96xf32, #tpu.memory_space<vmem>>, vector<16x96xf32>
    tpu.vector_store %arg7[%c0_6, %c0_7], %7 {strides = array<i32>} : memref<16x96xf32, #tpu.memory_space<vmem>>, vector<16x96xf32>,
    %c0_i32_8 = arith.constant 0 : i32
    %9 = arith.cmpi eq, %arg2, %c0_i32_8 : i32
    %10 = arith.extui %9 : i1 to i32
    %c0_i32_9 = arith.constant 0 : i32
    %11 = arith.cmpi ne, %10, %c0_i32_9 : i32
    scf.if %11 {
      %c0_10 = arith.constant 0 : index
      %c0_11 = arith.constant 0 : index
      %12 = vector.load %arg7[%c0_10, %c0_11] : memref<16x96xf32, #tpu.memory_space<vmem>>, vector<16x96xf32>
      %c0_12 = arith.constant 0 : index
      %c0_13 = arith.constant 0 : index
      %13 = vector.load %arg5[%c0_12, %c0_13] : memref<1x96xf32, #tpu.memory_space<vmem>>, vector<1x96xf32>
      %14 = vector.broadcast %13 : vector<1x96xf32> to vector<16x96xf32>
      %15 = arith.addf %12, %14 : vector<16x96xf32>
      %c0_14 = arith.constant 0 : index
      %c0_15 = arith.constant 0 : index
      %16 = vector.load %arg6[%c0_14, %c0_15] : memref<16x96xf32, #tpu.memory_space<vmem>>, vector<16x96xf32>
      tpu.vector_store %arg6[%c0_14, %c0_15], %15 {strides = array<i32>} : memref<16x96xf32, #tpu.memory_space<vmem>>, vector<16x96xf32>,
    } else {
    }
    return
  }
  func.func @transform_0(%arg0: i32, %arg1: i32, %arg2: i32) -> (i32, i32) {
    %c0_i32 = arith.constant 0 : i32
    return %arg0, %arg2 : i32, i32
  }
  func.func @transform_1(%arg0: i32, %arg1: i32, %arg2: i32) -> (i32, i32) {
    %c0_i32 = arith.constant 0 : i32
    return %arg2, %arg1 : i32, i32
  }
  func.func @transform_2(%arg0: i32, %arg1: i32, %arg2: i32) -> (i32, i32) {
    %c0_i32 = arith.constant 0 : i32
    %c0_i32_0 = arith.constant 0 : i32
    return %c0_i32, %arg1 : i32, i32
  }
  func.func @transform_3(%arg0: i32, %arg1: i32, %arg2: i32) -> (i32, i32) {
    %c0_i32 = arith.constant 0 : i32
    return %arg0, %arg1 : i32, i32
  }
}

module attributes {stable_mosaic.version = 11 : i64} {
  func.func @_self_attn_kernel(%arg0: i32, %arg1: memref<1x2x96xf32, #tpu.memory_space<vmem>>, %arg2: memref<1x2x32xf32, #tpu.memory_space<vmem>>) attributes {dimension_semantics = [#tpu.dimension_semantics<parallel>], iteration_bounds = array<i64: 8>, scalar_prefetch = 0 : i64, scratch_operands = 0 : i64, tpu.core_type = #tpu.core_type<tc>, window_params = [{transform_indices = @transform_0, window_bounds = array<i64: 1, 2, 96>}, {transform_indices = @transform_1, window_bounds = array<i64: 1, 2, 32>}]} {
    %c0 = arith.constant 0 : index
    %c0_0 = arith.constant 0 : index
    %c0_1 = arith.constant 0 : index
    %0 = vector.load %arg1[%c0, %c0_0, %c0_1] : memref<1x2x96xf32, #tpu.memory_space<vmem>>, vector<1x2x96xf32>
    %1 = vector.shape_cast %0 : vector<1x2x96xf32> to vector<2x96xf32>
    %2 = vector.extract_strided_slice %1 {offsets = [0, 0], sizes = [2, 32], strides = [1, 1]} : vector<2x96xf32> to vector<2x32xf32>
    %3 = vector.extract_strided_slice %1 {offsets = [0, 32], sizes = [2, 32], strides = [1, 1]} : vector<2x96xf32> to vector<2x32xf32>
    %4 = vector.extract_strided_slice %1 {offsets = [0, 64], sizes = [2, 32], strides = [1, 1]} : vector<2x96xf32> to vector<2x32xf32>
    %5 = vector.extract_strided_slice %2 {offsets = [0, 0], sizes = [2, 8], strides = [1, 1]} : vector<2x32xf32> to vector<2x8xf32>
    %cst = arith.constant 0.353553385 : f32
    %6 = vector.broadcast %cst : f32 to vector<2x8xf32>
    %7 = arith.mulf %5, %6 : vector<2x8xf32>
    %8 = vector.extract_strided_slice %3 {offsets = [0, 0], sizes = [2, 8], strides = [1, 1]} : vector<2x32xf32> to vector<2x8xf32>
    %9 = vector.extract_strided_slice %4 {offsets = [0, 0], sizes = [2, 8], strides = [1, 1]} : vector<2x32xf32> to vector<2x8xf32>
    %cst_2 = arith.constant dense<0.000000e+00> : vector<2x2xf32>
    %10 = tpu.matmul %7, %8, %cst_2 {dimension_numbers = #tpu.dot_dimension_numbers<[1], [1], [0], [0], [0, 0, 1, 0], [], []>} : vector<2x8xf32>, vector<2x8xf32>, vector<2x2xf32> -> vector<2x2xf32>
    %cst_3 = arith.constant dense<0xFF800000> : vector<2xf32>
    %11 = vector.multi_reduction <maximumf>, %10, %cst_3 [1] : vector<2x2xf32> to vector<2xf32>
    %12 = vector.shape_cast %11 : vector<2xf32> to vector<2x1xf32>
    %13 = vector.broadcast %12 : vector<2x1xf32> to vector<2x2xf32>
    %14 = arith.subf %10, %13 : vector<2x2xf32>
    %15 = math.exp %14 : vector<2x2xf32>
    %cst_4 = arith.constant dense<0.000000e+00> : vector<2xf32>
    %16 = vector.multi_reduction <add>, %15, %cst_4 [1] : vector<2x2xf32> to vector<2xf32>
    %17 = vector.shape_cast %16 : vector<2xf32> to vector<2x1xf32>
    %18 = tpu.reciprocal %17 {approx = true} : vector<2x1xf32> -> vector<2x1xf32>
    %19 = vector.broadcast %18 : vector<2x1xf32> to vector<2x2xf32>
    %20 = arith.mulf %15, %19 : vector<2x2xf32>
    %cst_5 = arith.constant dense<0.000000e+00> : vector<2x8xf32>
    %21 = tpu.matmul %20, %9, %cst_5 {dimension_numbers = #tpu.dot_dimension_numbers<[1], [0], [0], [1], [0, 0, 1, 1], [], []>} : vector<2x2xf32>, vector<2x8xf32>, vector<2x8xf32> -> vector<2x8xf32>
    %22 = vector.extract_strided_slice %2 {offsets = [0, 8], sizes = [2, 8], strides = [1, 1]} : vector<2x32xf32> to vector<2x8xf32>
    %cst_6 = arith.constant 0.353553385 : f32
    %23 = vector.broadcast %cst_6 : f32 to vector<2x8xf32>
    %24 = arith.mulf %22, %23 : vector<2x8xf32>
    %25 = vector.extract_strided_slice %3 {offsets = [0, 8], sizes = [2, 8], strides = [1, 1]} : vector<2x32xf32> to vector<2x8xf32>
    %26 = vector.extract_strided_slice %4 {offsets = [0, 8], sizes = [2, 8], strides = [1, 1]} : vector<2x32xf32> to vector<2x8xf32>
    %cst_7 = arith.constant dense<0.000000e+00> : vector<2x2xf32>
    %27 = tpu.matmul %24, %25, %cst_7 {dimension_numbers = #tpu.dot_dimension_numbers<[1], [1], [0], [0], [0, 0, 1, 0], [], []>} : vector<2x8xf32>, vector<2x8xf32>, vector<2x2xf32> -> vector<2x2xf32>
    %cst_8 = arith.constant dense<0xFF800000> : vector<2xf32>
    %28 = vector.multi_reduction <maximumf>, %27, %cst_8 [1] : vector<2x2xf32> to vector<2xf32>
    %29 = vector.shape_cast %28 : vector<2xf32> to vector<2x1xf32>
    %30 = vector.broadcast %29 : vector<2x1xf32> to vector<2x2xf32>
    %31 = arith.subf %27, %30 : vector<2x2xf32>
    %32 = math.exp %31 : vector<2x2xf32>
    %cst_9 = arith.constant dense<0.000000e+00> : vector<2xf32>
    %33 = vector.multi_reduction <add>, %32, %cst_9 [1] : vector<2x2xf32> to vector<2xf32>
    %34 = vector.shape_cast %33 : vector<2xf32> to vector<2x1xf32>
    %35 = tpu.reciprocal %34 {approx = true} : vector<2x1xf32> -> vector<2x1xf32>
    %36 = vector.broadcast %35 : vector<2x1xf32> to vector<2x2xf32>
    %37 = arith.mulf %32, %36 : vector<2x2xf32>
    %cst_10 = arith.constant dense<0.000000e+00> : vector<2x8xf32>
    %38 = tpu.matmul %37, %26, %cst_10 {dimension_numbers = #tpu.dot_dimension_numbers<[1], [0], [0], [1], [0, 0, 1, 1], [], []>} : vector<2x2xf32>, vector<2x8xf32>, vector<2x8xf32> -> vector<2x8xf32>
    %39 = vector.extract_strided_slice %2 {offsets = [0, 16], sizes = [2, 8], strides = [1, 1]} : vector<2x32xf32> to vector<2x8xf32>
    %cst_11 = arith.constant 0.353553385 : f32
    %40 = vector.broadcast %cst_11 : f32 to vector<2x8xf32>
    %41 = arith.mulf %39, %40 : vector<2x8xf32>
    %42 = vector.extract_strided_slice %3 {offsets = [0, 16], sizes = [2, 8], strides = [1, 1]} : vector<2x32xf32> to vector<2x8xf32>
    %43 = vector.extract_strided_slice %4 {offsets = [0, 16], sizes = [2, 8], strides = [1, 1]} : vector<2x32xf32> to vector<2x8xf32>
    %cst_12 = arith.constant dense<0.000000e+00> : vector<2x2xf32>
    %44 = tpu.matmul %41, %42, %cst_12 {dimension_numbers = #tpu.dot_dimension_numbers<[1], [1], [0], [0], [0, 0, 1, 0], [], []>} : vector<2x8xf32>, vector<2x8xf32>, vector<2x2xf32> -> vector<2x2xf32>
    %cst_13 = arith.constant dense<0xFF800000> : vector<2xf32>
    %45 = vector.multi_reduction <maximumf>, %44, %cst_13 [1] : vector<2x2xf32> to vector<2xf32>
    %46 = vector.shape_cast %45 : vector<2xf32> to vector<2x1xf32>
    %47 = vector.broadcast %46 : vector<2x1xf32> to vector<2x2xf32>
    %48 = arith.subf %44, %47 : vector<2x2xf32>
    %49 = math.exp %48 : vector<2x2xf32>
    %cst_14 = arith.constant dense<0.000000e+00> : vector<2xf32>
    %50 = vector.multi_reduction <add>, %49, %cst_14 [1] : vector<2x2xf32> to vector<2xf32>
    %51 = vector.shape_cast %50 : vector<2xf32> to vector<2x1xf32>
    %52 = tpu.reciprocal %51 {approx = true} : vector<2x1xf32> -> vector<2x1xf32>
    %53 = vector.broadcast %52 : vector<2x1xf32> to vector<2x2xf32>
    %54 = arith.mulf %49, %53 : vector<2x2xf32>
    %cst_15 = arith.constant dense<0.000000e+00> : vector<2x8xf32>
    %55 = tpu.matmul %54, %43, %cst_15 {dimension_numbers = #tpu.dot_dimension_numbers<[1], [0], [0], [1], [0, 0, 1, 1], [], []>} : vector<2x2xf32>, vector<2x8xf32>, vector<2x8xf32> -> vector<2x8xf32>
    %56 = vector.extract_strided_slice %2 {offsets = [0, 24], sizes = [2, 8], strides = [1, 1]} : vector<2x32xf32> to vector<2x8xf32>
    %cst_16 = arith.constant 0.353553385 : f32
    %57 = vector.broadcast %cst_16 : f32 to vector<2x8xf32>
    %58 = arith.mulf %56, %57 : vector<2x8xf32>
    %59 = vector.extract_strided_slice %3 {offsets = [0, 24], sizes = [2, 8], strides = [1, 1]} : vector<2x32xf32> to vector<2x8xf32>
    %60 = vector.extract_strided_slice %4 {offsets = [0, 24], sizes = [2, 8], strides = [1, 1]} : vector<2x32xf32> to vector<2x8xf32>
    %cst_17 = arith.constant dense<0.000000e+00> : vector<2x2xf32>
    %61 = tpu.matmul %58, %59, %cst_17 {dimension_numbers = #tpu.dot_dimension_numbers<[1], [1], [0], [0], [0, 0, 1, 0], [], []>} : vector<2x8xf32>, vector<2x8xf32>, vector<2x2xf32> -> vector<2x2xf32>
    %cst_18 = arith.constant dense<0xFF800000> : vector<2xf32>
    %62 = vector.multi_reduction <maximumf>, %61, %cst_18 [1] : vector<2x2xf32> to vector<2xf32>
    %63 = vector.shape_cast %62 : vector<2xf32> to vector<2x1xf32>
    %64 = vector.broadcast %63 : vector<2x1xf32> to vector<2x2xf32>
    %65 = arith.subf %61, %64 : vector<2x2xf32>
    %66 = math.exp %65 : vector<2x2xf32>
    %cst_19 = arith.constant dense<0.000000e+00> : vector<2xf32>
    %67 = vector.multi_reduction <add>, %66, %cst_19 [1] : vector<2x2xf32> to vector<2xf32>
    %68 = vector.shape_cast %67 : vector<2xf32> to vector<2x1xf32>
    %69 = tpu.reciprocal %68 {approx = true} : vector<2x1xf32> -> vector<2x1xf32>
    %70 = vector.broadcast %69 : vector<2x1xf32> to vector<2x2xf32>
    %71 = arith.mulf %66, %70 : vector<2x2xf32>
    %cst_20 = arith.constant dense<0.000000e+00> : vector<2x8xf32>
    %72 = tpu.matmul %71, %60, %cst_20 {dimension_numbers = #tpu.dot_dimension_numbers<[1], [0], [0], [1], [0, 0, 1, 1], [], []>} : vector<2x2xf32>, vector<2x8xf32>, vector<2x8xf32> -> vector<2x8xf32>
    %73 = tpu.concatenate %21, %38, %55, %72 in 1 : vector<2x8xf32>, vector<2x8xf32>, vector<2x8xf32>, vector<2x8xf32> -> vector<2x32xf32>
    %c0_21 = arith.constant 0 : index
    %c0_22 = arith.constant 0 : index
    %c0_23 = arith.constant 0 : index
    %74 = vector.load %arg2[%c0_21, %c0_22, %c0_23] : memref<1x2x32xf32, #tpu.memory_space<vmem>>, vector<1x2x32xf32>
    %75 = vector.shape_cast %74 : vector<1x2x32xf32> to vector<2x32xf32>
    %76 = vector.shape_cast %73 : vector<2x32xf32> to vector<1x2x32xf32>
    tpu.vector_store %arg2[%c0_21, %c0_22, %c0_23], %76 {strides = array<i32>} : memref<1x2x32xf32, #tpu.memory_space<vmem>>, vector<1x2x32xf32>,
    return
  }
  func.func @transform_0(%arg0: i32) -> (i32, i32, i32) {
    %c0_i32 = arith.constant 0 : i32
    %c0_i32_0 = arith.constant 0 : i32
    %c0_i32_1 = arith.constant 0 : i32
    return %arg0, %c0_i32, %c0_i32_0 : i32, i32, i32
  }
  func.func @transform_1(%arg0: i32) -> (i32, i32, i32) {
    %c0_i32 = arith.constant 0 : i32
    %c0_i32_0 = arith.constant 0 : i32
    %c0_i32_1 = arith.constant 0 : i32
    return %arg0, %c0_i32, %c0_i32_0 : i32, i32, i32
  }
}

module attributes {stable_mosaic.version = 11 : i64} {
  func.func @_linear_res_ln_kernel(%arg0: i32, %arg1: i32, %arg2: memref<16x32xf32, #tpu.memory_space<vmem>>, %arg3: memref<32x32xf32, #tpu.memory_space<vmem>>, %arg4: memref<1x32xf32, #tpu.memory_space<vmem>>, %arg5: memref<16x32xf32, #tpu.memory_space<vmem>>, %arg6: memref<1x32xf32, #tpu.memory_space<vmem>>, %arg7: memref<1x32xf32, #tpu.memory_space<vmem>>, %arg8: memref<16x32xf32, #tpu.memory_space<vmem>>, %arg9: memref<16x32xf32, #tpu.memory_space<vmem>>) attributes {dimension_semantics = [#tpu.dimension_semantics<parallel>, #tpu.dimension_semantics<arbitrary>], iteration_bounds = array<i64: 1, 1>, scalar_prefetch = 0 : i64, scratch_operands = 1 : i64, tpu.core_type = #tpu.core_type<tc>, window_params = [{transform_indices = @transform_0, window_bounds = array<i64: 16, 32>}, {transform_indices = @transform_1, window_bounds = array<i64: 32, 32>}, {pipeline_mode = #tpu.pipeline_mode<synchronous>, transform_indices = @transform_2, window_bounds = array<i64: 1, 32>}, {transform_indices = @transform_3, window_bounds = array<i64: 16, 32>}, {pipeline_mode = #tpu.pipeline_mode<synchronous>, transform_indices = @transform_4, window_bounds = array<i64: 1, 32>}, {pipeline_mode = #tpu.pipeline_mode<synchronous>, transform_indices = @transform_5, window_bounds = array<i64: 1, 32>}, {transform_indices = @transform_6, window_bounds = array<i64: 16, 32>}]} {
    %c0_i32 = arith.constant 0 : i32
    %0 = arith.cmpi eq, %arg1, %c0_i32 : i32
    %1 = arith.extui %0 : i1 to i32
    %c0_i32_0 = arith.constant 0 : i32
    %2 = arith.cmpi ne, %1, %c0_i32_0 : i32
    scf.if %2 {
      %cst_10 = arith.constant 0.000000e+00 : f32
      %12 = vector.broadcast %cst_10 : f32 to vector<16x32xf32>
      %c0_11 = arith.constant 0 : index
      %c0_12 = arith.constant 0 : index
      %13 = vector.load %arg9[%c0_11, %c0_12] : memref<16x32xf32, #tpu.memory_space<vmem>>, vector<16x32xf32>
      tpu.vector_store %arg9[%c0_11, %c0_12], %12 {strides = array<i32>} : memref<16x32xf32, #tpu.memory_space<vmem>>, vector<16x32xf32>,
    } else {
    }
    %c0 = arith.constant 0 : index
    %c0_1 = arith.constant 0 : index
    %3 = vector.load %arg9[%c0, %c0_1] : memref<16x32xf32, #tpu.memory_space<vmem>>, vector<16x32xf32>
    %c0_2 = arith.constant 0 : index
    %c0_3 = arith.constant 0 : index
    %4 = vector.load %arg2[%c0_2, %c0_3] : memref<16x32xf32, #tpu.memory_space<vmem>>, vector<16x32xf32>
    %c0_4 = arith.constant 0 : index
    %c0_5 = arith.constant 0 : index
    %5 = vector.load %arg3[%c0_4, %c0_5] : memref<32x32xf32, #tpu.memory_space<vmem>>, vector<32x32xf32>
    %cst = arith.constant dense<0.000000e+00> : vector<16x32xf32>
    %6 = tpu.matmul %4, %5, %cst {dimension_numbers = #tpu.dot_dimension_numbers<[1], [0], [0], [1], [0, 0, 1, 1], [], []>} : vector<16x32xf32>, vector<32x32xf32>, vector<16x32xf32> -> vector<16x32xf32>
    %7 = arith.addf %3, %6 : vector<16x32xf32>
    %c0_6 = arith.constant 0 : index
    %c0_7 = arith.constant 0 : index
    %8 = vector.load %arg9[%c0_6, %c0_7] : memref<16x32xf32, #tpu.memory_space<vmem>>, vector<16x32xf32>
    tpu.vector_store %arg9[%c0_6, %c0_7], %7 {strides = array<i32>} : memref<16x32xf32, #tpu.memory_space<vmem>>, vector<16x32xf32>,
    %c0_i32_8 = arith.constant 0 : i32
    %9 = arith.cmpi eq, %arg1, %c0_i32_8 : i32
    %10 = arith.extui %9 : i1 to i32
    %c0_i32_9 = arith.constant 0 : i32
    %11 = arith.cmpi ne, %10, %c0_i32_9 : i32
    scf.if %11 {
      %c0_10 = arith.constant 0 : index
      %c0_11 = arith.constant 0 : index
      %12 = vector.load %arg9[%c0_10, %c0_11] : memref<16x32xf32, #tpu.memory_space<vmem>>, vector<16x32xf32>
      %c0_12 = arith.constant 0 : index
      %c0_13 = arith.constant 0 : index
      %13 = vector.load %arg4[%c0_12, %c0_13] : memref<1x32xf32, #tpu.memory_space<vmem>>, vector<1x32xf32>
      %14 = vector.broadcast %13 : vector<1x32xf32> to vector<16x32xf32>
      %15 = arith.addf %12, %14 : vector<16x32xf32>
      %c0_14 = arith.constant 0 : index
      %c0_15 = arith.constant 0 : index
      %16 = vector.load %arg5[%c0_14, %c0_15] : memref<16x32xf32, #tpu.memory_space<vmem>>, vector<16x32xf32>
      %17 = arith.addf %15, %16 : vector<16x32xf32>
      %cst_16 = arith.constant dense<0.000000e+00> : vector<16xf32>
      %18 = vector.multi_reduction <add>, %17, %cst_16 [1] : vector<16x32xf32> to vector<16xf32>
      %19 = vector.shape_cast %18 : vector<16xf32> to vector<16x1xf32>
      %cst_17 = arith.constant 3.200000e+01 : f32
      %20 = vector.broadcast %cst_17 : f32 to vector<16x1xf32>
      %21 = arith.divf %19, %20 : vector<16x1xf32>
      %22 = vector.broadcast %21 : vector<16x1xf32> to vector<16x32xf32>
      %23 = arith.subf %17, %22 : vector<16x32xf32>
      %24 = arith.mulf %23, %23 : vector<16x32xf32>
      %cst_18 = arith.constant dense<0.000000e+00> : vector<16xf32>
      %25 = vector.multi_reduction <add>, %24, %cst_18 [1] : vector<16x32xf32> to vector<16xf32>
      %26 = vector.shape_cast %25 : vector<16xf32> to vector<16x1xf32>
      %cst_19 = arith.constant 3.200000e+01 : f32
      %27 = vector.broadcast %cst_19 : f32 to vector<16x1xf32>
      %28 = arith.divf %26, %27 : vector<16x1xf32>
      %cst_20 = arith.constant 9.99999974E-6 : f32
      %29 = vector.broadcast %cst_20 : f32 to vector<16x1xf32>
      %30 = arith.addf %28, %29 : vector<16x1xf32>
      %31 = math.rsqrt %30 : vector<16x1xf32>
      %32 = vector.broadcast %31 : vector<16x1xf32> to vector<16x32xf32>
      %33 = arith.mulf %23, %32 : vector<16x32xf32>
      %c0_21 = arith.constant 0 : index
      %c0_22 = arith.constant 0 : index
      %34 = vector.load %arg6[%c0_21, %c0_22] : memref<1x32xf32, #tpu.memory_space<vmem>>, vector<1x32xf32>
      %35 = vector.broadcast %34 : vector<1x32xf32> to vector<16x32xf32>
      %36 = arith.mulf %33, %35 : vector<16x32xf32>
      %c0_23 = arith.constant 0 : index
      %c0_24 = arith.constant 0 : index
      %37 = vector.load %arg7[%c0_23, %c0_24] : memref<1x32xf32, #tpu.memory_space<vmem>>, vector<1x32xf32>
      %38 = vector.broadcast %37 : vector<1x32xf32> to vector<16x32xf32>
      %39 = arith.addf %36, %38 : vector<16x32xf32>
      %c0_25 = arith.constant 0 : index
      %c0_26 = arith.constant 0 : index
      %40 = vector.load %arg8[%c0_25, %c0_26] : memref<16x32xf32, #tpu.memory_space<vmem>>, vector<16x32xf32>
      tpu.vector_store %arg8[%c0_25, %c0_26], %39 {strides = array<i32>} : memref<16x32xf32, #tpu.memory_space<vmem>>, vector<16x32xf32>,
    } else {
    }
    return
  }
  func.func @transform_0(%arg0: i32, %arg1: i32) -> (i32, i32) {
    %c0_i32 = arith.constant 0 : i32
    return %arg0, %arg1 : i32, i32
  }
  func.func @transform_1(%arg0: i32, %arg1: i32) -> (i32, i32) {
    %c0_i32 = arith.constant 0 : i32
    %c0_i32_0 = arith.constant 0 : i32
    return %arg1, %c0_i32 : i32, i32
  }
  func.func @transform_2(%arg0: i32, %arg1: i32) -> (i32, i32) {
    %c0_i32 = arith.constant 0 : i32
    %c0_i32_0 = arith.constant 0 : i32
    %c0_i32_1 = arith.constant 0 : i32
    return %c0_i32, %c0_i32_0 : i32, i32
  }
  func.func @transform_3(%arg0: i32, %arg1: i32) -> (i32, i32) {
    %c0_i32 = arith.constant 0 : i32
    %c0_i32_0 = arith.constant 0 : i32
    return %arg0, %c0_i32 : i32, i32
  }
  func.func @transform_4(%arg0: i32, %arg1: i32) -> (i32, i32) {
    %c0_i32 = arith.constant 0 : i32
    %c0_i32_0 = arith.constant 0 : i32
    %c0_i32_1 = arith.constant 0 : i32
    return %c0_i32, %c0_i32_0 : i32, i32
  }
  func.func @transform_5(%arg0: i32, %arg1: i32) -> (i32, i32) {
    %c0_i32 = arith.constant 0 : i32
    %c0_i32_0 = arith.constant 0 : i32
    %c0_i32_1 = arith.constant 0 : i32
    return %c0_i32, %c0_i32_0 : i32, i32
  }
  func.func @transform_6(%arg0: i32, %arg1: i32) -> (i32, i32) {
    %c0_i32 = arith.constant 0 : i32
    %c0_i32_0 = arith.constant 0 : i32
    return %arg0, %c0_i32 : i32, i32
  }
}

module attributes {stable_mosaic.version = 11 : i64} {
  func.func @_matmul_kernel(%arg0: i32, %arg1: i32, %arg2: i32, %arg3: memref<16x32xf32, #tpu.memory_space<vmem>>, %arg4: memref<32x32xf32, #tpu.memory_space<vmem>>, %arg5: memref<1x32xf32, #tpu.memory_space<vmem>>, %arg6: memref<16x32xf32, #tpu.memory_space<vmem>>, %arg7: memref<16x32xf32, #tpu.memory_space<vmem>>) attributes {dimension_semantics = [#tpu.dimension_semantics<parallel>, #tpu.dimension_semantics<parallel>, #tpu.dimension_semantics<arbitrary>], iteration_bounds = array<i64: 1, 1, 1>, scalar_prefetch = 0 : i64, scratch_operands = 1 : i64, tpu.core_type = #tpu.core_type<tc>, window_params = [{transform_indices = @transform_0, window_bounds = array<i64: 16, 32>}, {transform_indices = @transform_1, window_bounds = array<i64: 32, 32>}, {transform_indices = @transform_2, window_bounds = array<i64: 1, 32>}, {transform_indices = @transform_3, window_bounds = array<i64: 16, 32>}]} {
    %c0_i32 = arith.constant 0 : i32
    %0 = arith.cmpi eq, %arg2, %c0_i32 : i32
    %1 = arith.extui %0 : i1 to i32
    %c0_i32_0 = arith.constant 0 : i32
    %2 = arith.cmpi ne, %1, %c0_i32_0 : i32
    scf.if %2 {
      %cst_10 = arith.constant 0.000000e+00 : f32
      %12 = vector.broadcast %cst_10 : f32 to vector<16x32xf32>
      %c0_11 = arith.constant 0 : index
      %c0_12 = arith.constant 0 : index
      %13 = vector.load %arg7[%c0_11, %c0_12] : memref<16x32xf32, #tpu.memory_space<vmem>>, vector<16x32xf32>
      tpu.vector_store %arg7[%c0_11, %c0_12], %12 {strides = array<i32>} : memref<16x32xf32, #tpu.memory_space<vmem>>, vector<16x32xf32>,
    } else {
    }
    %c0 = arith.constant 0 : index
    %c0_1 = arith.constant 0 : index
    %3 = vector.load %arg7[%c0, %c0_1] : memref<16x32xf32, #tpu.memory_space<vmem>>, vector<16x32xf32>
    %c0_2 = arith.constant 0 : index
    %c0_3 = arith.constant 0 : index
    %4 = vector.load %arg3[%c0_2, %c0_3] : memref<16x32xf32, #tpu.memory_space<vmem>>, vector<16x32xf32>
    %c0_4 = arith.constant 0 : index
    %c0_5 = arith.constant 0 : index
    %5 = vector.load %arg4[%c0_4, %c0_5] : memref<32x32xf32, #tpu.memory_space<vmem>>, vector<32x32xf32>
    %cst = arith.constant dense<0.000000e+00> : vector<16x32xf32>
    %6 = tpu.matmul %4, %5, %cst {dimension_numbers = #tpu.dot_dimension_numbers<[1], [0], [0], [1], [0, 0, 1, 1], [], []>} : vector<16x32xf32>, vector<32x32xf32>, vector<16x32xf32> -> vector<16x32xf32>
    %7 = arith.addf %3, %6 : vector<16x32xf32>
    %c0_6 = arith.constant 0 : index
    %c0_7 = arith.constant 0 : index
    %8 = vector.load %arg7[%c0_6, %c0_7] : memref<16x32xf32, #tpu.memory_space<vmem>>, vector<16x32xf32>
    tpu.vector_store %arg7[%c0_6, %c0_7], %7 {strides = array<i32>} : memref<16x32xf32, #tpu.memory_space<vmem>>, vector<16x32xf32>,
    %c0_i32_8 = arith.constant 0 : i32
    %9 = arith.cmpi eq, %arg2, %c0_i32_8 : i32
    %10 = arith.extui %9 : i1 to i32
    %c0_i32_9 = arith.constant 0 : i32
    %11 = arith.cmpi ne, %10, %c0_i32_9 : i32
    scf.if %11 {
      %c0_10 = arith.constant 0 : index
      %c0_11 = arith.constant 0 : index
      %12 = vector.load %arg7[%c0_10, %c0_11] : memref<16x32xf32, #tpu.memory_space<vmem>>, vector<16x32xf32>
      %c0_12 = arith.constant 0 : index
      %c0_13 = arith.constant 0 : index
      %13 = vector.load %arg5[%c0_12, %c0_13] : memref<1x32xf32, #tpu.memory_space<vmem>>, vector<1x32xf32>
      %14 = vector.broadcast %13 : vector<1x32xf32> to vector<16x32xf32>
      %15 = arith.addf %12, %14 : vector<16x32xf32>
      %c0_14 = arith.constant 0 : index
      %c0_15 = arith.constant 0 : index
      %16 = vector.load %arg6[%c0_14, %c0_15] : memref<16x32xf32, #tpu.memory_space<vmem>>, vector<16x32xf32>
      tpu.vector_store %arg6[%c0_14, %c0_15], %15 {strides = array<i32>} : memref<16x32xf32, #tpu.memory_space<vmem>>, vector<16x32xf32>,
    } else {
    }
    return
  }
  func.func @transform_0(%arg0: i32, %arg1: i32, %arg2: i32) -> (i32, i32) {
    %c0_i32 = arith.constant 0 : i32
    return %arg0, %arg2 : i32, i32
  }
  func.func @transform_1(%arg0: i32, %arg1: i32, %arg2: i32) -> (i32, i32) {
    %c0_i32 = arith.constant 0 : i32
    return %arg2, %arg1 : i32, i32
  }
  func.func @transform_2(%arg0: i32, %arg1: i32, %arg2: i32) -> (i32, i32) {
    %c0_i32 = arith.constant 0 : i32
    %c0_i32_0 = arith.constant 0 : i32
    return %c0_i32, %arg1 : i32, i32
  }
  func.func @transform_3(%arg0: i32, %arg1: i32, %arg2: i32) -> (i32, i32) {
    %c0_i32 = arith.constant 0 : i32
    return %arg0, %arg1 : i32, i32
  }
}

module attributes {stable_mosaic.version = 11 : i64} {
  func.func @_matmul_kernel(%arg0: i32, %arg1: i32, %arg2: i32, %arg3: memref<16x32xf32, #tpu.memory_space<vmem>>, %arg4: memref<32x64xf32, #tpu.memory_space<vmem>>, %arg5: memref<1x64xf32, #tpu.memory_space<vmem>>, %arg6: memref<16x64xf32, #tpu.memory_space<vmem>>, %arg7: memref<16x64xf32, #tpu.memory_space<vmem>>) attributes {dimension_semantics = [#tpu.dimension_semantics<parallel>, #tpu.dimension_semantics<parallel>, #tpu.dimension_semantics<arbitrary>], iteration_bounds = array<i64: 1, 1, 1>, scalar_prefetch = 0 : i64, scratch_operands = 1 : i64, tpu.core_type = #tpu.core_type<tc>, window_params = [{transform_indices = @transform_0, window_bounds = array<i64: 16, 32>}, {transform_indices = @transform_1, window_bounds = array<i64: 32, 64>}, {transform_indices = @transform_2, window_bounds = array<i64: 1, 64>}, {transform_indices = @transform_3, window_bounds = array<i64: 16, 64>}]} {
    %c0_i32 = arith.constant 0 : i32
    %0 = arith.cmpi eq, %arg2, %c0_i32 : i32
    %1 = arith.extui %0 : i1 to i32
    %c0_i32_0 = arith.constant 0 : i32
    %2 = arith.cmpi ne, %1, %c0_i32_0 : i32
    scf.if %2 {
      %cst_10 = arith.constant 0.000000e+00 : f32
      %12 = vector.broadcast %cst_10 : f32 to vector<16x64xf32>
      %c0_11 = arith.constant 0 : index
      %c0_12 = arith.constant 0 : index
      %13 = vector.load %arg7[%c0_11, %c0_12] : memref<16x64xf32, #tpu.memory_space<vmem>>, vector<16x64xf32>
      tpu.vector_store %arg7[%c0_11, %c0_12], %12 {strides = array<i32>} : memref<16x64xf32, #tpu.memory_space<vmem>>, vector<16x64xf32>,
    } else {
    }
    %c0 = arith.constant 0 : index
    %c0_1 = arith.constant 0 : index
    %3 = vector.load %arg7[%c0, %c0_1] : memref<16x64xf32, #tpu.memory_space<vmem>>, vector<16x64xf32>
    %c0_2 = arith.constant 0 : index
    %c0_3 = arith.constant 0 : index
    %4 = vector.load %arg3[%c0_2, %c0_3] : memref<16x32xf32, #tpu.memory_space<vmem>>, vector<16x32xf32>
    %c0_4 = arith.constant 0 : index
    %c0_5 = arith.constant 0 : index
    %5 = vector.load %arg4[%c0_4, %c0_5] : memref<32x64xf32, #tpu.memory_space<vmem>>, vector<32x64xf32>
    %cst = arith.constant dense<0.000000e+00> : vector<16x64xf32>
    %6 = tpu.matmul %4, %5, %cst {dimension_numbers = #tpu.dot_dimension_numbers<[1], [0], [0], [1], [0, 0, 1, 1], [], []>} : vector<16x32xf32>, vector<32x64xf32>, vector<16x64xf32> -> vector<16x64xf32>
    %7 = arith.addf %3, %6 : vector<16x64xf32>
    %c0_6 = arith.constant 0 : index
    %c0_7 = arith.constant 0 : index
    %8 = vector.load %arg7[%c0_6, %c0_7] : memref<16x64xf32, #tpu.memory_space<vmem>>, vector<16x64xf32>
    tpu.vector_store %arg7[%c0_6, %c0_7], %7 {strides = array<i32>} : memref<16x64xf32, #tpu.memory_space<vmem>>, vector<16x64xf32>,
    %c0_i32_8 = arith.constant 0 : i32
    %9 = arith.cmpi eq, %arg2, %c0_i32_8 : i32
    %10 = arith.extui %9 : i1 to i32
    %c0_i32_9 = arith.constant 0 : i32
    %11 = arith.cmpi ne, %10, %c0_i32_9 : i32
    scf.if %11 {
      %c0_10 = arith.constant 0 : index
      %c0_11 = arith.constant 0 : index
      %12 = vector.load %arg7[%c0_10, %c0_11] : memref<16x64xf32, #tpu.memory_space<vmem>>, vector<16x64xf32>
      %c0_12 = arith.constant 0 : index
      %c0_13 = arith.constant 0 : index
      %13 = vector.load %arg5[%c0_12, %c0_13] : memref<1x64xf32, #tpu.memory_space<vmem>>, vector<1x64xf32>
      %14 = vector.broadcast %13 : vector<1x64xf32> to vector<16x64xf32>
      %15 = arith.addf %12, %14 : vector<16x64xf32>
      %c0_14 = arith.constant 0 : index
      %c0_15 = arith.constant 0 : index
      %16 = vector.load %arg6[%c0_14, %c0_15] : memref<16x64xf32, #tpu.memory_space<vmem>>, vector<16x64xf32>
      tpu.vector_store %arg6[%c0_14, %c0_15], %15 {strides = array<i32>} : memref<16x64xf32, #tpu.memory_space<vmem>>, vector<16x64xf32>,
    } else {
    }
    return
  }
  func.func @transform_0(%arg0: i32, %arg1: i32, %arg2: i32) -> (i32, i32) {
    %c0_i32 = arith.constant 0 : i32
    return %arg0, %arg2 : i32, i32
  }
  func.func @transform_1(%arg0: i32, %arg1: i32, %arg2: i32) -> (i32, i32) {
    %c0_i32 = arith.constant 0 : i32
    return %arg2, %arg1 : i32, i32
  }
  func.func @transform_2(%arg0: i32, %arg1: i32, %arg2: i32) -> (i32, i32) {
    %c0_i32 = arith.constant 0 : i32
    %c0_i32_0 = arith.constant 0 : i32
    return %c0_i32, %arg1 : i32, i32
  }
  func.func @transform_3(%arg0: i32, %arg1: i32, %arg2: i32) -> (i32, i32) {
    %c0_i32 = arith.constant 0 : i32
    return %arg0, %arg1 : i32, i32
  }
}

module attributes {stable_mosaic.version = 11 : i64} {
  func.func @_cross_attn_kernel(%arg0: i32, %arg1: memref<1x2x32xf32, #tpu.memory_space<vmem>>, %arg2: memref<1x2x64xf32, #tpu.memory_space<vmem>>, %arg3: memref<1x2x32xf32, #tpu.memory_space<vmem>>) attributes {dimension_semantics = [#tpu.dimension_semantics<parallel>], iteration_bounds = array<i64: 8>, scalar_prefetch = 0 : i64, scratch_operands = 0 : i64, tpu.core_type = #tpu.core_type<tc>, window_params = [{transform_indices = @transform_0, window_bounds = array<i64: 1, 2, 32>}, {transform_indices = @transform_1, window_bounds = array<i64: 1, 2, 64>}, {transform_indices = @transform_2, window_bounds = array<i64: 1, 2, 32>}]} {
    %c0 = arith.constant 0 : index
    %c0_0 = arith.constant 0 : index
    %c0_1 = arith.constant 0 : index
    %0 = vector.load %arg2[%c0, %c0_0, %c0_1] : memref<1x2x64xf32, #tpu.memory_space<vmem>>, vector<1x2x64xf32>
    %1 = vector.shape_cast %0 : vector<1x2x64xf32> to vector<2x64xf32>
    %c0_2 = arith.constant 0 : index
    %c0_3 = arith.constant 0 : index
    %c0_4 = arith.constant 0 : index
    %2 = vector.load %arg1[%c0_2, %c0_3, %c0_4] : memref<1x2x32xf32, #tpu.memory_space<vmem>>, vector<1x2x32xf32>
    %3 = vector.shape_cast %2 : vector<1x2x32xf32> to vector<2x32xf32>
    %4 = vector.extract_strided_slice %1 {offsets = [0, 0], sizes = [2, 32], strides = [1, 1]} : vector<2x64xf32> to vector<2x32xf32>
    %5 = vector.extract_strided_slice %1 {offsets = [0, 32], sizes = [2, 32], strides = [1, 1]} : vector<2x64xf32> to vector<2x32xf32>
    %6 = vector.extract_strided_slice %3 {offsets = [0, 0], sizes = [2, 8], strides = [1, 1]} : vector<2x32xf32> to vector<2x8xf32>
    %cst = arith.constant 0.353553385 : f32
    %7 = vector.broadcast %cst : f32 to vector<2x8xf32>
    %8 = arith.mulf %6, %7 : vector<2x8xf32>
    %9 = vector.extract_strided_slice %4 {offsets = [0, 0], sizes = [2, 8], strides = [1, 1]} : vector<2x32xf32> to vector<2x8xf32>
    %10 = vector.extract_strided_slice %5 {offsets = [0, 0], sizes = [2, 8], strides = [1, 1]} : vector<2x32xf32> to vector<2x8xf32>
    %cst_5 = arith.constant dense<0.000000e+00> : vector<2x2xf32>
    %11 = tpu.matmul %8, %9, %cst_5 {dimension_numbers = #tpu.dot_dimension_numbers<[1], [1], [0], [0], [0, 0, 1, 0], [], []>} : vector<2x8xf32>, vector<2x8xf32>, vector<2x2xf32> -> vector<2x2xf32>
    %cst_6 = arith.constant dense<0xFF800000> : vector<2xf32>
    %12 = vector.multi_reduction <maximumf>, %11, %cst_6 [1] : vector<2x2xf32> to vector<2xf32>
    %13 = vector.shape_cast %12 : vector<2xf32> to vector<2x1xf32>
    %14 = vector.broadcast %13 : vector<2x1xf32> to vector<2x2xf32>
    %15 = arith.subf %11, %14 : vector<2x2xf32>
    %16 = math.exp %15 : vector<2x2xf32>
    %cst_7 = arith.constant dense<0.000000e+00> : vector<2xf32>
    %17 = vector.multi_reduction <add>, %16, %cst_7 [1] : vector<2x2xf32> to vector<2xf32>
    %18 = vector.shape_cast %17 : vector<2xf32> to vector<2x1xf32>
    %19 = tpu.reciprocal %18 {approx = true} : vector<2x1xf32> -> vector<2x1xf32>
    %20 = vector.broadcast %19 : vector<2x1xf32> to vector<2x2xf32>
    %21 = arith.mulf %16, %20 : vector<2x2xf32>
    %cst_8 = arith.constant dense<0.000000e+00> : vector<2x8xf32>
    %22 = tpu.matmul %21, %10, %cst_8 {dimension_numbers = #tpu.dot_dimension_numbers<[1], [0], [0], [1], [0, 0, 1, 1], [], []>} : vector<2x2xf32>, vector<2x8xf32>, vector<2x8xf32> -> vector<2x8xf32>
    %23 = vector.extract_strided_slice %3 {offsets = [0, 8], sizes = [2, 8], strides = [1, 1]} : vector<2x32xf32> to vector<2x8xf32>
    %cst_9 = arith.constant 0.353553385 : f32
    %24 = vector.broadcast %cst_9 : f32 to vector<2x8xf32>
    %25 = arith.mulf %23, %24 : vector<2x8xf32>
    %26 = vector.extract_strided_slice %4 {offsets = [0, 8], sizes = [2, 8], strides = [1, 1]} : vector<2x32xf32> to vector<2x8xf32>
    %27 = vector.extract_strided_slice %5 {offsets = [0, 8], sizes = [2, 8], strides = [1, 1]} : vector<2x32xf32> to vector<2x8xf32>
    %cst_10 = arith.constant dense<0.000000e+00> : vector<2x2xf32>
    %28 = tpu.matmul %25, %26, %cst_10 {dimension_numbers = #tpu.dot_dimension_numbers<[1], [1], [0], [0], [0, 0, 1, 0], [], []>} : vector<2x8xf32>, vector<2x8xf32>, vector<2x2xf32> -> vector<2x2xf32>
    %cst_11 = arith.constant dense<0xFF800000> : vector<2xf32>
    %29 = vector.multi_reduction <maximumf>, %28, %cst_11 [1] : vector<2x2xf32> to vector<2xf32>
    %30 = vector.shape_cast %29 : vector<2xf32> to vector<2x1xf32>
    %31 = vector.broadcast %30 : vector<2x1xf32> to vector<2x2xf32>
    %32 = arith.subf %28, %31 : vector<2x2xf32>
    %33 = math.exp %32 : vector<2x2xf32>
    %cst_12 = arith.constant dense<0.000000e+00> : vector<2xf32>
    %34 = vector.multi_reduction <add>, %33, %cst_12 [1] : vector<2x2xf32> to vector<2xf32>
    %35 = vector.shape_cast %34 : vector<2xf32> to vector<2x1xf32>
    %36 = tpu.reciprocal %35 {approx = true} : vector<2x1xf32> -> vector<2x1xf32>
    %37 = vector.broadcast %36 : vector<2x1xf32> to vector<2x2xf32>
    %38 = arith.mulf %33, %37 : vector<2x2xf32>
    %cst_13 = arith.constant dense<0.000000e+00> : vector<2x8xf32>
    %39 = tpu.matmul %38, %27, %cst_13 {dimension_numbers = #tpu.dot_dimension_numbers<[1], [0], [0], [1], [0, 0, 1, 1], [], []>} : vector<2x2xf32>, vector<2x8xf32>, vector<2x8xf32> -> vector<2x8xf32>
    %40 = vector.extract_strided_slice %3 {offsets = [0, 16], sizes = [2, 8], strides = [1, 1]} : vector<2x32xf32> to vector<2x8xf32>
    %cst_14 = arith.constant 0.353553385 : f32
    %41 = vector.broadcast %cst_14 : f32 to vector<2x8xf32>
    %42 = arith.mulf %40, %41 : vector<2x8xf32>
    %43 = vector.extract_strided_slice %4 {offsets = [0, 16], sizes = [2, 8], strides = [1, 1]} : vector<2x32xf32> to vector<2x8xf32>
    %44 = vector.extract_strided_slice %5 {offsets = [0, 16], sizes = [2, 8], strides = [1, 1]} : vector<2x32xf32> to vector<2x8xf32>
    %cst_15 = arith.constant dense<0.000000e+00> : vector<2x2xf32>
    %45 = tpu.matmul %42, %43, %cst_15 {dimension_numbers = #tpu.dot_dimension_numbers<[1], [1], [0], [0], [0, 0, 1, 0], [], []>} : vector<2x8xf32>, vector<2x8xf32>, vector<2x2xf32> -> vector<2x2xf32>
    %cst_16 = arith.constant dense<0xFF800000> : vector<2xf32>
    %46 = vector.multi_reduction <maximumf>, %45, %cst_16 [1] : vector<2x2xf32> to vector<2xf32>
    %47 = vector.shape_cast %46 : vector<2xf32> to vector<2x1xf32>
    %48 = vector.broadcast %47 : vector<2x1xf32> to vector<2x2xf32>
    %49 = arith.subf %45, %48 : vector<2x2xf32>
    %50 = math.exp %49 : vector<2x2xf32>
    %cst_17 = arith.constant dense<0.000000e+00> : vector<2xf32>
    %51 = vector.multi_reduction <add>, %50, %cst_17 [1] : vector<2x2xf32> to vector<2xf32>
    %52 = vector.shape_cast %51 : vector<2xf32> to vector<2x1xf32>
    %53 = tpu.reciprocal %52 {approx = true} : vector<2x1xf32> -> vector<2x1xf32>
    %54 = vector.broadcast %53 : vector<2x1xf32> to vector<2x2xf32>
    %55 = arith.mulf %50, %54 : vector<2x2xf32>
    %cst_18 = arith.constant dense<0.000000e+00> : vector<2x8xf32>
    %56 = tpu.matmul %55, %44, %cst_18 {dimension_numbers = #tpu.dot_dimension_numbers<[1], [0], [0], [1], [0, 0, 1, 1], [], []>} : vector<2x2xf32>, vector<2x8xf32>, vector<2x8xf32> -> vector<2x8xf32>
    %57 = vector.extract_strided_slice %3 {offsets = [0, 24], sizes = [2, 8], strides = [1, 1]} : vector<2x32xf32> to vector<2x8xf32>
    %cst_19 = arith.constant 0.353553385 : f32
    %58 = vector.broadcast %cst_19 : f32 to vector<2x8xf32>
    %59 = arith.mulf %57, %58 : vector<2x8xf32>
    %60 = vector.extract_strided_slice %4 {offsets = [0, 24], sizes = [2, 8], strides = [1, 1]} : vector<2x32xf32> to vector<2x8xf32>
    %61 = vector.extract_strided_slice %5 {offsets = [0, 24], sizes = [2, 8], strides = [1, 1]} : vector<2x32xf32> to vector<2x8xf32>
    %cst_20 = arith.constant dense<0.000000e+00> : vector<2x2xf32>
    %62 = tpu.matmul %59, %60, %cst_20 {dimension_numbers = #tpu.dot_dimension_numbers<[1], [1], [0], [0], [0, 0, 1, 0], [], []>} : vector<2x8xf32>, vector<2x8xf32>, vector<2x2xf32> -> vector<2x2xf32>
    %cst_21 = arith.constant dense<0xFF800000> : vector<2xf32>
    %63 = vector.multi_reduction <maximumf>, %62, %cst_21 [1] : vector<2x2xf32> to vector<2xf32>
    %64 = vector.shape_cast %63 : vector<2xf32> to vector<2x1xf32>
    %65 = vector.broadcast %64 : vector<2x1xf32> to vector<2x2xf32>
    %66 = arith.subf %62, %65 : vector<2x2xf32>
    %67 = math.exp %66 : vector<2x2xf32>
    %cst_22 = arith.constant dense<0.000000e+00> : vector<2xf32>
    %68 = vector.multi_reduction <add>, %67, %cst_22 [1] : vector<2x2xf32> to vector<2xf32>
    %69 = vector.shape_cast %68 : vector<2xf32> to vector<2x1xf32>
    %70 = tpu.reciprocal %69 {approx = true} : vector<2x1xf32> -> vector<2x1xf32>
    %71 = vector.broadcast %70 : vector<2x1xf32> to vector<2x2xf32>
    %72 = arith.mulf %67, %71 : vector<2x2xf32>
    %cst_23 = arith.constant dense<0.000000e+00> : vector<2x8xf32>
    %73 = tpu.matmul %72, %61, %cst_23 {dimension_numbers = #tpu.dot_dimension_numbers<[1], [0], [0], [1], [0, 0, 1, 1], [], []>} : vector<2x2xf32>, vector<2x8xf32>, vector<2x8xf32> -> vector<2x8xf32>
    %74 = tpu.concatenate %22, %39, %56, %73 in 1 : vector<2x8xf32>, vector<2x8xf32>, vector<2x8xf32>, vector<2x8xf32> -> vector<2x32xf32>
    %c0_24 = arith.constant 0 : index
    %c0_25 = arith.constant 0 : index
    %c0_26 = arith.constant 0 : index
    %75 = vector.load %arg3[%c0_24, %c0_25, %c0_26] : memref<1x2x32xf32, #tpu.memory_space<vmem>>, vector<1x2x32xf32>
    %76 = vector.shape_cast %75 : vector<1x2x32xf32> to vector<2x32xf32>
    %77 = vector.shape_cast %74 : vector<2x32xf32> to vector<1x2x32xf32>
    tpu.vector_store %arg3[%c0_24, %c0_25, %c0_26], %77 {strides = array<i32>} : memref<1x2x32xf32, #tpu.memory_space<vmem>>, vector<1x2x32xf32>,
    return
  }
  func.func @transform_0(%arg0: i32) -> (i32, i32, i32) {
    %c0_i32 = arith.constant 0 : i32
    %c0_i32_0 = arith.constant 0 : i32
    %c0_i32_1 = arith.constant 0 : i32
    return %arg0, %c0_i32, %c0_i32_0 : i32, i32, i32
  }
  func.func @transform_1(%arg0: i32) -> (i32, i32, i32) {
    %c0_i32 = arith.constant 0 : i32
    %c0_i32_0 = arith.constant 0 : i32
    %c0_i32_1 = arith.constant 0 : i32
    return %arg0, %c0_i32, %c0_i32_0 : i32, i32, i32
  }
  func.func @transform_2(%arg0: i32) -> (i32, i32, i32) {
    %c0_i32 = arith.constant 0 : i32
    %c0_i32_0 = arith.constant 0 : i32
    %c0_i32_1 = arith.constant 0 : i32
    return %arg0, %c0_i32, %c0_i32_0 : i32, i32, i32
  }
}

module attributes {stable_mosaic.version = 11 : i64} {
  func.func @_matmul_kernel(%arg0: i32, %arg1: i32, %arg2: i32, %arg3: memref<16x32xf32, #tpu.memory_space<vmem>>, %arg4: memref<32x128xf32, #tpu.memory_space<vmem>>, %arg5: memref<1x128xf32, #tpu.memory_space<vmem>>, %arg6: memref<16x128xf32, #tpu.memory_space<vmem>>, %arg7: memref<16x128xf32, #tpu.memory_space<vmem>>) attributes {dimension_semantics = [#tpu.dimension_semantics<parallel>, #tpu.dimension_semantics<parallel>, #tpu.dimension_semantics<arbitrary>], iteration_bounds = array<i64: 1, 1, 1>, scalar_prefetch = 0 : i64, scratch_operands = 1 : i64, tpu.core_type = #tpu.core_type<tc>, window_params = [{transform_indices = @transform_0, window_bounds = array<i64: 16, 32>}, {transform_indices = @transform_1, window_bounds = array<i64: 32, 128>}, {transform_indices = @transform_2, window_bounds = array<i64: 1, 128>}, {transform_indices = @transform_3, window_bounds = array<i64: 16, 128>}]} {
    %c0_i32 = arith.constant 0 : i32
    %0 = arith.cmpi eq, %arg2, %c0_i32 : i32
    %1 = arith.extui %0 : i1 to i32
    %c0_i32_0 = arith.constant 0 : i32
    %2 = arith.cmpi ne, %1, %c0_i32_0 : i32
    scf.if %2 {
      %cst_10 = arith.constant 0.000000e+00 : f32
      %12 = vector.broadcast %cst_10 : f32 to vector<16x128xf32>
      %c0_11 = arith.constant 0 : index
      %c0_12 = arith.constant 0 : index
      %13 = vector.load %arg7[%c0_11, %c0_12] : memref<16x128xf32, #tpu.memory_space<vmem>>, vector<16x128xf32>
      tpu.vector_store %arg7[%c0_11, %c0_12], %12 {strides = array<i32>} : memref<16x128xf32, #tpu.memory_space<vmem>>, vector<16x128xf32>,
    } else {
    }
    %c0 = arith.constant 0 : index
    %c0_1 = arith.constant 0 : index
    %3 = vector.load %arg7[%c0, %c0_1] : memref<16x128xf32, #tpu.memory_space<vmem>>, vector<16x128xf32>
    %c0_2 = arith.constant 0 : index
    %c0_3 = arith.constant 0 : index
    %4 = vector.load %arg3[%c0_2, %c0_3] : memref<16x32xf32, #tpu.memory_space<vmem>>, vector<16x32xf32>
    %c0_4 = arith.constant 0 : index
    %c0_5 = arith.constant 0 : index
    %5 = vector.load %arg4[%c0_4, %c0_5] : memref<32x128xf32, #tpu.memory_space<vmem>>, vector<32x128xf32>
    %cst = arith.constant dense<0.000000e+00> : vector<16x128xf32>
    %6 = tpu.matmul %4, %5, %cst {dimension_numbers = #tpu.dot_dimension_numbers<[1], [0], [0], [1], [0, 0, 1, 1], [], []>} : vector<16x32xf32>, vector<32x128xf32>, vector<16x128xf32> -> vector<16x128xf32>
    %7 = arith.addf %3, %6 : vector<16x128xf32>
    %c0_6 = arith.constant 0 : index
    %c0_7 = arith.constant 0 : index
    %8 = vector.load %arg7[%c0_6, %c0_7] : memref<16x128xf32, #tpu.memory_space<vmem>>, vector<16x128xf32>
    tpu.vector_store %arg7[%c0_6, %c0_7], %7 {strides = array<i32>} : memref<16x128xf32, #tpu.memory_space<vmem>>, vector<16x128xf32>,
    %c0_i32_8 = arith.constant 0 : i32
    %9 = arith.cmpi eq, %arg2, %c0_i32_8 : i32
    %10 = arith.extui %9 : i1 to i32
    %c0_i32_9 = arith.constant 0 : i32
    %11 = arith.cmpi ne, %10, %c0_i32_9 : i32
    scf.if %11 {
      %c0_10 = arith.constant 0 : index
      %c0_11 = arith.constant 0 : index
      %12 = vector.load %arg7[%c0_10, %c0_11] : memref<16x128xf32, #tpu.memory_space<vmem>>, vector<16x128xf32>
      %c0_12 = arith.constant 0 : index
      %c0_13 = arith.constant 0 : index
      %13 = vector.load %arg5[%c0_12, %c0_13] : memref<1x128xf32, #tpu.memory_space<vmem>>, vector<1x128xf32>
      %14 = vector.broadcast %13 : vector<1x128xf32> to vector<16x128xf32>
      %15 = arith.addf %12, %14 : vector<16x128xf32>
      %c0_14 = arith.constant 0 : index
      %c0_15 = arith.constant 0 : index
      %16 = vector.load %arg6[%c0_14, %c0_15] : memref<16x128xf32, #tpu.memory_space<vmem>>, vector<16x128xf32>
      tpu.vector_store %arg6[%c0_14, %c0_15], %15 {strides = array<i32>} : memref<16x128xf32, #tpu.memory_space<vmem>>, vector<16x128xf32>,
    } else {
    }
    return
  }
  func.func @transform_0(%arg0: i32, %arg1: i32, %arg2: i32) -> (i32, i32) {
    %c0_i32 = arith.constant 0 : i32
    return %arg0, %arg2 : i32, i32
  }
  func.func @transform_1(%arg0: i32, %arg1: i32, %arg2: i32) -> (i32, i32) {
    %c0_i32 = arith.constant 0 : i32
    return %arg2, %arg1 : i32, i32
  }
  func.func @transform_2(%arg0: i32, %arg1: i32, %arg2: i32) -> (i32, i32) {
    %c0_i32 = arith.constant 0 : i32
    %c0_i32_0 = arith.constant 0 : i32
    return %c0_i32, %arg1 : i32, i32
  }
  func.func @transform_3(%arg0: i32, %arg1: i32, %arg2: i32) -> (i32, i32) {
    %c0_i32 = arith.constant 0 : i32
    return %arg0, %arg1 : i32, i32
  }
}

module attributes {stable_mosaic.version = 11 : i64} {
  func.func @_ffn_ln_kernel(%arg0: i32, %arg1: i32, %arg2: memref<16x32xf32, #tpu.memory_space<vmem>>, %arg3: memref<32x64xf32, #tpu.memory_space<vmem>>, %arg4: memref<1x64xf32, #tpu.memory_space<vmem>>, %arg5: memref<64x32xf32, #tpu.memory_space<vmem>>, %arg6: memref<1x32xf32, #tpu.memory_space<vmem>>, %arg7: memref<1x32xf32, #tpu.memory_space<vmem>>, %arg8: memref<1x32xf32, #tpu.memory_space<vmem>>, %arg9: memref<16x32xf32, #tpu.memory_space<vmem>>, %arg10: memref<16x32xf32, #tpu.memory_space<vmem>>) attributes {dimension_semantics = [#tpu.dimension_semantics<parallel>, #tpu.dimension_semantics<arbitrary>], iteration_bounds = array<i64: 1, 1>, scalar_prefetch = 0 : i64, scratch_operands = 1 : i64, tpu.core_type = #tpu.core_type<tc>, window_params = [{transform_indices = @transform_0, window_bounds = array<i64: 16, 32>}, {transform_indices = @transform_1, window_bounds = array<i64: 32, 64>}, {transform_indices = @transform_2, window_bounds = array<i64: 1, 64>}, {transform_indices = @transform_3, window_bounds = array<i64: 64, 32>}, {pipeline_mode = #tpu.pipeline_mode<synchronous>, transform_indices = @transform_4, window_bounds = array<i64: 1, 32>}, {pipeline_mode = #tpu.pipeline_mode<synchronous>, transform_indices = @transform_5, window_bounds = array<i64: 1, 32>}, {pipeline_mode = #tpu.pipeline_mode<synchronous>, transform_indices = @transform_6, window_bounds = array<i64: 1, 32>}, {transform_indices = @transform_7, window_bounds = array<i64: 16, 32>}]} {
    %c0_i32 = arith.constant 0 : i32
    %0 = arith.cmpi eq, %arg1, %c0_i32 : i32
    %1 = arith.extui %0 : i1 to i32
    %c0_i32_0 = arith.constant 0 : i32
    %2 = arith.cmpi ne, %1, %c0_i32_0 : i32
    scf.if %2 {
      %cst_16 = arith.constant 0.000000e+00 : f32
      %19 = vector.broadcast %cst_16 : f32 to vector<16x32xf32>
      %c0_17 = arith.constant 0 : index
      %c0_18 = arith.constant 0 : index
      %20 = vector.load %arg10[%c0_17, %c0_18] : memref<16x32xf32, #tpu.memory_space<vmem>>, vector<16x32xf32>
      tpu.vector_store %arg10[%c0_17, %c0_18], %19 {strides = array<i32>} : memref<16x32xf32, #tpu.memory_space<vmem>>, vector<16x32xf32>,
    } else {
    }
    %c0 = arith.constant 0 : index
    %c0_1 = arith.constant 0 : index
    %3 = vector.load %arg2[%c0, %c0_1] : memref<16x32xf32, #tpu.memory_space<vmem>>, vector<16x32xf32>
    %c0_2 = arith.constant 0 : index
    %c0_3 = arith.constant 0 : index
    %4 = vector.load %arg3[%c0_2, %c0_3] : memref<32x64xf32, #tpu.memory_space<vmem>>, vector<32x64xf32>
    %cst = arith.constant dense<0.000000e+00> : vector<16x64xf32>
    %5 = tpu.matmul %3, %4, %cst {dimension_numbers = #tpu.dot_dimension_numbers<[1], [0], [0], [1], [0, 0, 1, 1], [], []>} : vector<16x32xf32>, vector<32x64xf32>, vector<16x64xf32> -> vector<16x64xf32>
    %c0_4 = arith.constant 0 : index
    %c0_5 = arith.constant 0 : index
    %6 = vector.load %arg4[%c0_4, %c0_5] : memref<1x64xf32, #tpu.memory_space<vmem>>, vector<1x64xf32>
    %7 = vector.broadcast %6 : vector<1x64xf32> to vector<16x64xf32>
    %8 = arith.addf %5, %7 : vector<16x64xf32>
    %cst_6 = arith.constant 0.000000e+00 : f32
    %9 = vector.broadcast %cst_6 : f32 to vector<16x64xf32>
    %10 = arith.maximumf %8, %9 : vector<16x64xf32>
    %c0_7 = arith.constant 0 : index
    %c0_8 = arith.constant 0 : index
    %11 = vector.load %arg10[%c0_7, %c0_8] : memref<16x32xf32, #tpu.memory_space<vmem>>, vector<16x32xf32>
    %c0_9 = arith.constant 0 : index
    %c0_10 = arith.constant 0 : index
    %12 = vector.load %arg5[%c0_9, %c0_10] : memref<64x32xf32, #tpu.memory_space<vmem>>, vector<64x32xf32>
    %cst_11 = arith.constant dense<0.000000e+00> : vector<16x32xf32>
    %13 = tpu.matmul %10, %12, %cst_11 {dimension_numbers = #tpu.dot_dimension_numbers<[1], [0], [0], [1], [0, 0, 1, 1], [], []>} : vector<16x64xf32>, vector<64x32xf32>, vector<16x32xf32> -> vector<16x32xf32>
    %14 = arith.addf %11, %13 : vector<16x32xf32>
    %c0_12 = arith.constant 0 : index
    %c0_13 = arith.constant 0 : index
    %15 = vector.load %arg10[%c0_12, %c0_13] : memref<16x32xf32, #tpu.memory_space<vmem>>, vector<16x32xf32>
    tpu.vector_store %arg10[%c0_12, %c0_13], %14 {strides = array<i32>} : memref<16x32xf32, #tpu.memory_space<vmem>>, vector<16x32xf32>,
    %c0_i32_14 = arith.constant 0 : i32
    %16 = arith.cmpi eq, %arg1, %c0_i32_14 : i32
    %17 = arith.extui %16 : i1 to i32
    %c0_i32_15 = arith.constant 0 : i32
    %18 = arith.cmpi ne, %17, %c0_i32_15 : i32
    scf.if %18 {
      %c0_16 = arith.constant 0 : index
      %c0_17 = arith.constant 0 : index
      %19 = vector.load %arg10[%c0_16, %c0_17] : memref<16x32xf32, #tpu.memory_space<vmem>>, vector<16x32xf32>
      %c0_18 = arith.constant 0 : index
      %c0_19 = arith.constant 0 : index
      %20 = vector.load %arg6[%c0_18, %c0_19] : memref<1x32xf32, #tpu.memory_space<vmem>>, vector<1x32xf32>
      %21 = vector.broadcast %20 : vector<1x32xf32> to vector<16x32xf32>
      %22 = arith.addf %19, %21 : vector<16x32xf32>
      %c0_20 = arith.constant 0 : index
      %c0_21 = arith.constant 0 : index
      %23 = vector.load %arg2[%c0_20, %c0_21] : memref<16x32xf32, #tpu.memory_space<vmem>>, vector<16x32xf32>
      %24 = arith.addf %22, %23 : vector<16x32xf32>
      %cst_22 = arith.constant dense<0.000000e+00> : vector<16xf32>
      %25 = vector.multi_reduction <add>, %24, %cst_22 [1] : vector<16x32xf32> to vector<16xf32>
      %26 = vector.shape_cast %25 : vector<16xf32> to vector<16x1xf32>
      %cst_23 = arith.constant 3.200000e+01 : f32
      %27 = vector.broadcast %cst_23 : f32 to vector<16x1xf32>
      %28 = arith.divf %26, %27 : vector<16x1xf32>
      %29 = vector.broadcast %28 : vector<16x1xf32> to vector<16x32xf32>
      %30 = arith.subf %24, %29 : vector<16x32xf32>
      %31 = arith.mulf %30, %30 : vector<16x32xf32>
      %cst_24 = arith.constant dense<0.000000e+00> : vector<16xf32>
      %32 = vector.multi_reduction <add>, %31, %cst_24 [1] : vector<16x32xf32> to vector<16xf32>
      %33 = vector.shape_cast %32 : vector<16xf32> to vector<16x1xf32>
      %cst_25 = arith.constant 3.200000e+01 : f32
      %34 = vector.broadcast %cst_25 : f32 to vector<16x1xf32>
      %35 = arith.divf %33, %34 : vector<16x1xf32>
      %cst_26 = arith.constant 9.99999974E-6 : f32
      %36 = vector.broadcast %cst_26 : f32 to vector<16x1xf32>
      %37 = arith.addf %35, %36 : vector<16x1xf32>
      %38 = math.rsqrt %37 : vector<16x1xf32>
      %39 = vector.broadcast %38 : vector<16x1xf32> to vector<16x32xf32>
      %40 = arith.mulf %30, %39 : vector<16x32xf32>
      %c0_27 = arith.constant 0 : index
      %c0_28 = arith.constant 0 : index
      %41 = vector.load %arg7[%c0_27, %c0_28] : memref<1x32xf32, #tpu.memory_space<vmem>>, vector<1x32xf32>
      %42 = vector.broadcast %41 : vector<1x32xf32> to vector<16x32xf32>
      %43 = arith.mulf %40, %42 : vector<16x32xf32>
      %c0_29 = arith.constant 0 : index
      %c0_30 = arith.constant 0 : index
      %44 = vector.load %arg8[%c0_29, %c0_30] : memref<1x32xf32, #tpu.memory_space<vmem>>, vector<1x32xf32>
      %45 = vector.broadcast %44 : vector<1x32xf32> to vector<16x32xf32>
      %46 = arith.addf %43, %45 : vector<16x32xf32>
      %c0_31 = arith.constant 0 : index
      %c0_32 = arith.constant 0 : index
      %47 = vector.load %arg9[%c0_31, %c0_32] : memref<16x32xf32, #tpu.memory_space<vmem>>, vector<16x32xf32>
      tpu.vector_store %arg9[%c0_31, %c0_32], %46 {strides = array<i32>} : memref<16x32xf32, #tpu.memory_space<vmem>>, vector<16x32xf32>,
    } else {
    }
    return
  }
  func.func @transform_0(%arg0: i32, %arg1: i32) -> (i32, i32) {
    %c0_i32 = arith.constant 0 : i32
    %c0_i32_0 = arith.constant 0 : i32
    return %arg0, %c0_i32 : i32, i32
  }
  func.func @transform_1(%arg0: i32, %arg1: i32) -> (i32, i32) {
    %c0_i32 = arith.constant 0 : i32
    %c0_i32_0 = arith.constant 0 : i32
    return %c0_i32, %arg1 : i32, i32
  }
  func.func @transform_2(%arg0: i32, %arg1: i32) -> (i32, i32) {
    %c0_i32 = arith.constant 0 : i32
    %c0_i32_0 = arith.constant 0 : i32
    return %c0_i32, %arg1 : i32, i32
  }
  func.func @transform_3(%arg0: i32, %arg1: i32) -> (i32, i32) {
    %c0_i32 = arith.constant 0 : i32
    %c0_i32_0 = arith.constant 0 : i32
    return %arg1, %c0_i32 : i32, i32
  }
  func.func @transform_4(%arg0: i32, %arg1: i32) -> (i32, i32) {
    %c0_i32 = arith.constant 0 : i32
    %c0_i32_0 = arith.constant 0 : i32
    %c0_i32_1 = arith.constant 0 : i32
    return %c0_i32, %c0_i32_0 : i32, i32
  }
  func.func @transform_5(%arg0: i32, %arg1: i32) -> (i32, i32) {
    %c0_i32 = arith.constant 0 : i32
    %c0_i32_0 = arith.constant 0 : i32
    %c0_i32_1 = arith.constant 0 : i32
    return %c0_i32, %c0_i32_0 : i32, i32
  }
  func.func @transform_6(%arg0: i32, %arg1: i32) -> (i32, i32) {
    %c0_i32 = arith.constant 0 : i32
    %c0_i32_0 = arith.constant 0 : i32
    %c0_i32_1 = arith.constant 0 : i32
    return %c0_i32, %c0_i32_0 : i32, i32
  }
  func.func @transform_7(%arg0: i32, %arg1: i32) -> (i32, i32) {
    %c0_i32 = arith.constant 0 : i32
    %c0_i32_0 = arith.constant 0 : i32
    return %arg0, %c0_i32 : i32, i32
  }
}

</mosaic_0001>

<llo_original>
// kernel: gpt_forward.18
$region0: #{gpt_forward.18}
  #allocation0 [shape = 'u32[]', space=smem, size = 0x4, offset = 0x4, fixed_abs, tag = 'smem constant byte address 0x4 - core index']
  #allocation1 [shape = 'u32[144,128]{1,0:T(1,128)}', space=vmem, size = 0x12000, scoped, tag = 'internal scratch']
  %s0 = inlined_call_operand.vmem [shape: f32[8,2,32], index: 0, kind: input, shape index: {}]
  %s1 = inlined_call_operand.vmem [shape: f32[8,1,32], index: 1, kind: input, shape index: {}]
  %s2 = inlined_call_operand.vmem [shape: f32[8,2,32], index: 2, kind: output, shape index: {}]
  %s3 = sld [smem:[#allocation0]]
  $region41: #{gpt_forward.18} parent=0
    _
  %s5 = ssub.s32 1, %s3
  %s6 = scalar_select 0, %s5, %s3
  loop: start=0, step=1, limit=10
  $region2: #{gpt_forward.18} parent=0 // loop_pre_header
    _
  $region3: #{gpt_forward.18} parent=0 // loop_header
    %s8 = sphi 0, %s12
    %p9 = scmp.ge.s32.totalorder %s8, 10
    %s18 = sphi 0, %s20
    %s21 = sphi 0, %s18
    %s22 = sphi 0, %s21
    %s38 = sphi 0, %s22
    %s44 = sphi 0, %s46
    %s47 = sphi 0, %s44
    %s48 = sphi 0, %s47
    %s64 = sphi 0, %s48
    %s70 = sphi 0, %s72
    %s73 = sphi 0, %s70
    %s74 = sphi 0, %s73
    %s90 = sphi 0, %s74
  $region4: #{gpt_forward.18} parent=0 // loop_header_branch
    %11 = sbr.rel (%p9) target = $region8
  $region5: #{gpt_forward.18} parent=0 // loop_body
    %s13 = ssub.s32 %s8, 1
    %s14 = ssub.s32 %s8, 2
    %s15 = sadd.s32 %s8, 1
    %s16 = ssub.s32 %s8, %s15
    %p17 = scmp.eq.s32.totalorder %s16, 0
    %s19 = sadd.s32 %s18, 1
    %s20 = scalar_select %p17, %s18, %s19
    %p23 = pneg %p17
    %p24 = scmp.eq.s32.totalorder %s8, 7
    %p25 = por %p23, %p24
    %p26 = scmp.ne.s32.totalorder %s18, %s21
    %p27 = scmp.eq.s32.totalorder %s8, 0
    %p28 = por %p26, %p27
    %p29 = scmp.ne.s32.totalorder %s18, %s21
    %p30 = scmp.eq.s32.totalorder %s13, 7
    %p31 = por %p29, %p30
    %p32 = scmp.ne.s32.totalorder %s21, %s22
    %p33 = scmp.eq.s32.totalorder %s13, 0
    %p34 = por %p32, %p33
    %p35 = scmp.ne.s32.totalorder %s21, %s22
    %p36 = scmp.eq.s32.totalorder %s14, 7
    %p37 = por %p35, %p36
    %p39 = scmp.ne.s32.totalorder %s22, %s38
    %p40 = scmp.eq.s32.totalorder %s14, 0
    %p41 = por %p39, %p40
    %s42 = ssub.s32 %s8, %s15
    %p43 = scmp.eq.s32.totalorder %s42, 0
    %s45 = sadd.s32 %s44, 1
    %s46 = scalar_select %p43, %s44, %s45
    %p49 = pneg %p43
    %p50 = scmp.eq.s32.totalorder %s8, 7
    %p51 = por %p49, %p50
    %p52 = scmp.ne.s32.totalorder %s44, %s47
    %p53 = scmp.eq.s32.totalorder %s8, 0
    %p54 = por %p52, %p53
    %p55 = scmp.ne.s32.totalorder %s44, %s47
    %p56 = scmp.eq.s32.totalorder %s13, 7
    %p57 = por %p55, %p56
    %p58 = scmp.ne.s32.totalorder %s47, %s48
    %p59 = scmp.eq.s32.totalorder %s13, 0
    %p60 = por %p58, %p59
    %p61 = scmp.ne.s32.totalorder %s47, %s48
    %p62 = scmp.eq.s32.totalorder %s14, 7
    %p63 = por %p61, %p62
    %p65 = scmp.ne.s32.totalorder %s48, %s64
    %p66 = scmp.eq.s32.totalorder %s14, 0
    %p67 = por %p65, %p66
    %s68 = ssub.s32 %s8, %s15
    %p69 = scmp.eq.s32.totalorder %s68, 0
    %s71 = sadd.s32 %s70, 1
    %s72 = scalar_select %p69, %s70, %s71
    %p75 = pneg %p69
    %p76 = scmp.eq.s32.totalorder %s8, 7
    %p77 = por %p75, %p76
    %p78 = scmp.ne.s32.totalorder %s70, %s73
    %p79 = scmp.eq.s32.totalorder %s8, 0
    %p80 = por %p78, %p79
    %p81 = scmp.ne.s32.totalorder %s70, %s73
    %p82 = scmp.eq.s32.totalorder %s13, 7
    %p83 = por %p81, %p82
    %p84 = scmp.ne.s32.totalorder %s73, %s74
    %p85 = scmp.eq.s32.totalorder %s13, 0
    %p86 = por %p84, %p85
    %p87 = scmp.ne.s32.totalorder %s73, %s74
    %p88 = scmp.eq.s32.totalorder %s14, 7
    %p89 = por %p87, %p88
    %p91 = scmp.ne.s32.totalorder %s74, %s90
    %p92 = scmp.eq.s32.totalorder %s14, 0
    %p93 = por %p91, %p92
    %p94 = scmp.le.s32.totalorder 1, %s8
    %p95 = scmp.lt.s32.totalorder %s8, 9
    %p96 = pnand %p94, %p95
    %p97 = pneg %p96
    // Predicated region
    $region9: #{gpt_forward.18} parent=5 // pred_check
      _
    $region10: #{gpt_forward.18} parent=5 // pred_check_branch
      %99 = sbr.rel (%p96) target = $region12
    $region11: #{gpt_forward.18} parent=5 // pred_region
      %s100 = ssub.s32 %s8, 1
    $region12: #{gpt_forward.18} parent=5 // pred_fallthru
      _
    %p101 = scmp.lt.s32.totalorder %s8, 8
    // Predicated region
    $region13: #{gpt_forward.18} parent=5 // pred_check
      %p102 = pneg %p101
    $region14: #{gpt_forward.18} parent=5 // pred_check_branch
      %104 = sbr.rel (%p102) target = $region16
    $region15: #{gpt_forward.18} parent=5 // pred_region
      // Predicated region
      $region17: #{gpt_forward.18} parent=15 // pred_check
        %p105 = pneg %p28
      $region18: #{gpt_forward.18} parent=15 // pred_check_branch
        %107 = sbr.rel (%p105) target = $region20
      $region19: #{gpt_forward.18} parent=15 // pred_region
        %p108 = scmp.lt.s32.totalorder %s8, 7
        %s109 = scalar_select %p108, %s8, 7
        %s110 = smul.addr %s109, 2
        %s111 = scalar_lea.vmem %s0, %s110
      $region20: #{gpt_forward.18} parent=15 // pred_fallthru
        _
      // Predicated region
      $region21: #{gpt_forward.18} parent=15 // pred_check
        %p112 = pneg %p54
      $region22: #{gpt_forward.18} parent=15 // pred_check_branch
        %114 = sbr.rel (%p112) target = $region24
      $region23: #{gpt_forward.18} parent=15 // pred_region
        %p115 = scmp.lt.s32.totalorder %s8, 7
        %s116 = scalar_select %p115, %s8, 7
        %s117 = scalar_lea.vmem %s1, %s116
      $region24: #{gpt_forward.18} parent=15 // pred_fallthru
        _
    $region16: #{gpt_forward.18} parent=5 // pred_fallthru
      _
    %p118 = scmp.le.s32.totalorder 1, %s8
    %p119 = scmp.lt.s32.totalorder %s8, 9
    %p120 = pnand %p118, %p119
    %p121 = pneg %p120
    // Predicated region
    $region25: #{gpt_forward.18} parent=5 // pred_check
      _
    $region26: #{gpt_forward.18} parent=5 // pred_check_branch
      %123 = sbr.rel (%p120) target = $region28
    $region27: #{gpt_forward.18} parent=5 // pred_region
      %s124 = ssub.s32 %s8, 1
      %p125 = scmp.lt.s32.totalorder %s13, 7
      %s126 = scalar_select %p125, %s13, 7
      %s127 = smul.addr %s126, 2
      %s128 = scalar_lea.vmem %s0, %s127
      %p129 = pneg %p34
      %p130 = pneg %p31
      %p131 = scmp.lt.s32.totalorder %s13, 7
      %s132 = scalar_select %p131, %s13, 7
      %s133 = scalar_lea.vmem %s1, %s132
      %p134 = pneg %p60
      %p135 = pneg %p57
      %p136 = pneg %p86
      %p137 = pneg %p83
      %p138 = scmp.lt.s32.totalorder %s13, 7
      %s139 = scalar_select %p138, %s13, 7
      %s140 = smul.addr %s139, 2
      %s141 = scalar_lea.vmem %s2, %s140
      %p142 = scmp.lt.s32.totalorder %s13, 7
      %s143 = scalar_select %p142, %s13, 7
      %s144 = smul.addr %s143, 2
      %s145 = scalar_lea.vmem %s0, %s144
      %p146 = scmp.lt.s32.totalorder %s13, 7
      %s147 = scalar_select %p146, %s13, 7
      %s148 = scalar_lea.vmem %s1, %s147
      %p149 = scmp.lt.s32.totalorder %s13, 7
      %s150 = scalar_select %p149, %s13, 7
      %s151 = smul.addr %s150, 2
      %s152 = scalar_lea.vmem %s2, %s151
      %v153 = vld [vmem:[%s145] sm:$0x3]
      %v154 = vmul.f32 %v153, 5.656854
      %v155 = vld [vmem:[%s148] sm:$0x1]
      %v157 = vlaneseq
      %v158 = vshrl.u32 %v157, 7
      %v159 = vsub.s32 0, %v158
      %v160 = vrot.slane %v155, %v159
      %v162 = vadd.f32 %v154, %v160
      %vm163 = vcmask 254976
      %164 = vst.msk [vmem:[%s152] sm:$0x3] %vm163, %v162
      %p165 = scmp.lt.s32.totalorder %s13, 7
      %s166 = scalar_select %p165, %s13, 7
      %s167 = smul.addr %s166, 2
      %s168 = scalar_lea.vmem %s2, %s167
      // Predicated region
      $region29: #{gpt_forward.18} parent=27 // pred_check
        %p169 = pneg %p83
      $region30: #{gpt_forward.18} parent=27 // pred_check_branch
        %171 = sbr.rel (%p169) target = $region32
      $region31: #{gpt_forward.18} parent=27 // pred_region
        _
      $region32: #{gpt_forward.18} parent=27 // pred_fallthru
        _
    $region28: #{gpt_forward.18} parent=5 // pred_fallthru
      _
    %p172 = scmp.le.s32.totalorder 2, %s8
    // Predicated region
    $region33: #{gpt_forward.18} parent=5 // pred_check
      %p173 = pneg %p172
    $region34: #{gpt_forward.18} parent=5 // pred_check_branch
      %175 = sbr.rel (%p173) target = $region36
    $region35: #{gpt_forward.18} parent=5 // pred_region
      %s176 = ssub.s32 %s8, 2
      // Predicated region
      $region37: #{gpt_forward.18} parent=35 // pred_check
        %p177 = pneg %p89
      $region38: #{gpt_forward.18} parent=35 // pred_check_branch
        %179 = sbr.rel (%p177) target = $region40
      $region39: #{gpt_forward.18} parent=35 // pred_region
        %p180 = scmp.lt.s32.totalorder %s14, 7
        %s181 = scalar_select %p180, %s14, 7
        %s182 = smul.addr %s181, 2
        %s183 = scalar_lea.vmem %s2, %s182
      $region40: #{gpt_forward.18} parent=35 // pred_fallthru
        _
    $region36: #{gpt_forward.18} parent=5 // pred_fallthru
      _
  $region6: #{gpt_forward.18} parent=0 // loop_footer
    %s12 = sadd.s32 1, %s8
  $region7: #{gpt_forward.18} parent=0 // loop_footer_branch
    %7 = sbr.rel target = $region3
  $region8: #{gpt_forward.18} parent=0 // loop_exit
    _

// kernel: gpt_forward.19
$region0: #{gpt_forward.19}
  #allocation0 [shape = 'u32[]', space=smem, size = 0x4, offset = 0x4, fixed_abs, tag = 'smem constant byte address 0x4 - core index']
  #allocation1 [shape = 'u32[144,128]{1,0:T(1,128)}', space=vmem, size = 0x12000, scoped, tag = 'internal scratch']
  #allocation2 [shape = 'f32[16,96]{1,0:T(8,128)}', space=vmem, size = 0x2000, scoped, tag = 'scratch operand']
  %s0 = inlined_call_operand.vmem [shape: f32[16,32], index: 0, kind: input, shape index: {}]
  %s1 = inlined_call_operand.vmem [shape: f32[32,96], index: 1, kind: input, shape index: {}]
  %s2 = inlined_call_operand.vmem [shape: f32[1,96], index: 2, kind: input, shape index: {}]
  %s3 = inlined_call_operand.vmem [shape: f32[16,96], index: 3, kind: output, shape index: {}]
  %s4 = sld [smem:[#allocation0]]
  $region30: #{gpt_forward.19} parent=0
    _
  %s6 = ssub.s32 1, %s4
  %s7 = scalar_select 0, %s6, %s4
  // Predicated region
  $region2: #{gpt_forward.19} parent=0 // pred_check
    _
  $region3: #{gpt_forward.19} parent=0 // pred_check_branch
    %9 = sbr.rel (0) target = $region5
  $region4: #{gpt_forward.19} parent=0 // pred_region
    _
  $region5: #{gpt_forward.19} parent=0 // pred_fallthru
    _
  // Predicated region
  $region6: #{gpt_forward.19} parent=0 // pred_check
    _
  $region7: #{gpt_forward.19} parent=0 // pred_check_branch
    %11 = sbr.rel (0) target = $region9
  $region8: #{gpt_forward.19} parent=0 // pred_region
    _
  $region9: #{gpt_forward.19} parent=0 // pred_fallthru
    _
  // Predicated region
  $region10: #{gpt_forward.19} parent=0 // pred_check
    _
  $region11: #{gpt_forward.19} parent=0 // pred_check_branch
    %13 = sbr.rel (0) target = $region13
  $region12: #{gpt_forward.19} parent=0 // pred_region
    _
  $region13: #{gpt_forward.19} parent=0 // pred_fallthru
    _
  %p14 = scmp.eq.s32.totalorder 0, 0
  // Predicated region
  $region14: #{gpt_forward.19} parent=0 // pred_check
    %p15 = pneg %p14
  $region15: #{gpt_forward.19} parent=0 // pred_check_branch
    %17 = sbr.rel (%p15) target = $region17
  $region16: #{gpt_forward.19} parent=0 // pred_region
    %vm18 = vcmask 785408
    %19 = vst.msk [vmem:[#allocation2] sm:$0xff] %vm18, 0.0
    %20 = vst.msk [vmem:[#allocation2 + $0x8] sm:$0xff] %vm18, 0.0
  $region17: #{gpt_forward.19} parent=0 // pred_fallthru
    _
  %v21 = vld [vmem:[#allocation2] sm:$0xff]
  %v22 = vld [vmem:[#allocation2 + $0x8] sm:$0xff]
  %v23 = vld [vmem:[%s0] sm:$0xff]
  %v24 = vld [vmem:[%s0 + $0x8] sm:$0xff]
  %v25 = vld [vmem:[%s1] sm:$0xff]
  %v26 = vld [vmem:[%s1 + $0x8] sm:$0xff]
  %v27 = vld [vmem:[%s1 + $0x10] sm:$0xff]
  %v28 = vld [vmem:[%s1 + $0x18] sm:$0xff]
  %vm29 = vcmask 261120
  %v31 = vsel %vm29, %v23, 0
  %v34 = vsel %vm29, %v24, 0
  %36 = vmatprep.subr.mxu0 0.0
  %37 = vmatpush1.msra.mxu0 %v25
  %38 = vmatprep.subr.mxu0 0.0
  %39 = vmatpush1.msra.mxu0 %v26
  %40 = vmatprep.subr.mxu0 0.0
  %41 = vmatpush1.msra.mxu0 %v27
  %42 = vmatprep.subr.mxu0 0.0
  %43 = vmatpush1.msra.mxu0 %v28
  %44 = vmatprep.subr.mxu0 0.0
  %45 = vmatpush1.msra.mxu0 0.0
  %46 = vmatprep.subr.mxu0 0.0
  %47 = vmatpush1.msra.mxu0 0.0
  %48 = vmatprep.subr.mxu0 0.0
  %49 = vmatpush1.msra.mxu0 0.0
  %50 = vmatprep.subr.mxu0 0.0
  %51 = vmatpush1.msra.mxu0 0.0
  %52 = vmatprep.subr.mxu0 0.0
  %53 = vmatpush1.msra.mxu0 0.0
  %54 = vmatprep.subr.mxu0 0.0
  %55 = vmatpush1.msra.mxu0 0.0
  %56 = vmatprep.subr.mxu0 0.0
  %57 = vmatpush1.msra.mxu0 0.0
  %58 = vmatprep.subr.mxu0 0.0
  %59 = vmatpush1.msra.mxu0 0.0
  %60 = vmatprep.subr.mxu0 0.0
  %61 = vmatpush1.msra.mxu0 0.0
  %62 = vmatprep.subr.mxu0 0.0
  %63 = vmatpush1.msra.mxu0 0.0
  %64 = vmatprep.subr.mxu0 0.0
  %65 = vmatpush1.msra.mxu0 0.0
  %66 = vmatprep.subr.mxu0 0.0
  %67 = vmatpush1.msra.mxu0 0.0
  %68 = vmatprep.subr.mxu0 0.0
  %69 = vmatpush1.msra.mxu0 0.0
  %70 = vmatprep.subr.mxu0 0.0
  %71 = vmatpush1.msra.mxu0 0.0
  %72 = vmatprep.subr.mxu0 0.0
  %73 = vmatpush1.msra.mxu0 0.0
  %74 = vmatprep.subr.mxu0 0.0
  %75 = vmatpush1.msra.mxu0 0.0
  %76 = vmatprep.subr.mxu0 0.0
  %77 = vmatpush1.msra.mxu0 0.0
  %78 = vmatprep.subr.mxu0 0.0
  %79 = vmatpush1.msra.mxu0 0.0
  %80 = vmatprep.subr.mxu0 0.0
  %81 = vmatpush1.msra.mxu0 0.0
  %82 = vmatprep.subr.mxu0 0.0
  %83 = vmatpush1.msra.mxu0 0.0
  %84 = vmatprep.subr.mxu0 0.0
  %85 = vmatpush1.msra.mxu0 0.0
  %86 = vmatprep.subr.mxu0 0.0
  %87 = vmatpush1.msra.mxu0 0.0
  %88 = vmatprep.subr.mxu0 0.0
  %89 = vmatpush1.msra.mxu0 0.0
  %90 = vmatprep.subr.mxu0 0.0
  %91 = vmatpush1.msra.mxu0 0.0
  %92 = vmatprep.subr.mxu0 0.0
  %93 = vmatpush1.msra.mxu0 0.0
  %94 = vmatprep.subr.mxu0 0.0
  %95 = vmatpush1.msra.mxu0 0.0
  %96 = vmatprep.subr.mxu0 0.0
  %97 = vmatpush1.msra.mxu0 0.0
  %98 = vmatprep.subr.mxu0 0.0
  %99 = vmatpush1.msra.mxu0 0.0
  %100 = vmatprep.mubr.f32.mxu0 0.0
  %101 = vmatmul.mubr.f32.gmra.mrb[0].mxu0 %v31
  %v102 = vpop.f32.mrb[0].mxu0
  %v103 = vadd.f32 0.0, %v102
  %v104 = vpop.f32.mrb[0].mxu0
  %105 = vmatprep.mubr.f32.mxu0 0.0
  %106 = vmatmul.mubr.f32.gmra.mrb[0].mxu0 %v34
  %v107 = vpop.f32.mrb[0].mxu0
  %v108 = vadd.f32 0.0, %v107
  %v109 = vpop.f32.mrb[0].mxu0
  %110 = vdwg.mxu0
  %v111 = vadd.f32 %v21, %v103
  %v112 = vadd.f32 %v22, %v108
  %vm113 = vcmask 785408
  %114 = vst.msk [vmem:[#allocation2] sm:$0xff] %vm113, %v111
  %115 = vst.msk [vmem:[#allocation2 + $0x8] sm:$0xff] %vm113, %v112
  // Predicated region
  $region18: #{gpt_forward.19} parent=0 // pred_check
    %p116 = pneg %p14
  $region19: #{gpt_forward.19} parent=0 // pred_check_branch
    %118 = sbr.rel (%p116) target = $region21
  $region20: #{gpt_forward.19} parent=0 // pred_region
    %v119 = vld [vmem:[#allocation2] sm:$0xff]
    %v120 = vld [vmem:[#allocation2 + $0x8] sm:$0xff]
    %v121 = vld [vmem:[%s2] sm:$0x1]
    %v123 = vlaneseq
    %v124 = vshrl.u32 %v123, 7
    %v125 = vsub.s32 0, %v124
    %v126 = vrot.slane %v121, %v125
    %v128 = vadd.f32 %v119, %v126
    %v129 = vadd.f32 %v120, %v126
    %130 = vst.msk [vmem:[%s3] sm:$0xff] %vm113, %v128
    %131 = vst.msk [vmem:[%s3 + $0x8] sm:$0xff] %vm113, %v129
  $region21: #{gpt_forward.19} parent=0 // pred_fallthru
    _
  // Predicated region
  $region22: #{gpt_forward.19} parent=0 // pred_check
    _
  $region23: #{gpt_forward.19} parent=0 // pred_check_branch
    %133 = sbr.rel (0) target = $region25
  $region24: #{gpt_forward.19} parent=0 // pred_region
    _
  $region25: #{gpt_forward.19} parent=0 // pred_fallthru
    _
  // Predicated region
  $region26: #{gpt_forward.19} parent=0 // pred_check
    _
  $region27: #{gpt_forward.19} parent=0 // pred_check_branch
    %135 = sbr.rel (0) target = $region29
  $region28: #{gpt_forward.19} parent=0 // pred_region
    _
  $region29: #{gpt_forward.19} parent=0 // pred_fallthru
    _

// kernel: gpt_forward.21
$region0: #{gpt_forward.21}
  #allocation0 [shape = 'u32[]', space=smem, size = 0x4, offset = 0x4, fixed_abs, tag = 'smem constant byte address 0x4 - core index']
  #allocation1 [shape = 'u32[144,128]{1,0:T(1,128)}', space=vmem, size = 0x12000, scoped, tag = 'internal scratch']
  #allocation2 [shape = 'f32[16,32]{1,0:T(8,128)}', space=vmem, size = 0x2000, scoped, tag = 'scratch operand']
  %s0 = inlined_call_operand.vmem [shape: f32[16,32], index: 0, kind: input, shape index: {}]
  %s1 = inlined_call_operand.vmem [shape: f32[32,32], index: 1, kind: input, shape index: {}]
  %s2 = inlined_call_operand.vmem [shape: f32[1,32], index: 2, kind: input, shape index: {}]
  %s3 = inlined_call_operand.vmem [shape: f32[16,32], index: 3, kind: input, shape index: {}]
  %s4 = inlined_call_operand.vmem [shape: f32[1,32], index: 4, kind: input, shape index: {}]
  %s5 = inlined_call_operand.vmem [shape: f32[1,32], index: 5, kind: input, shape index: {}]
  %s6 = inlined_call_operand.vmem [shape: f32[16,32], index: 6, kind: output, shape index: {}]
  %s7 = sld [smem:[#allocation0]]
  $region42: #{gpt_forward.21} parent=0
    _
  %s9 = ssub.s32 1, %s7
  %s10 = scalar_select 0, %s9, %s7
  // Predicated region
  $region2: #{gpt_forward.21} parent=0 // pred_check
    _
  $region3: #{gpt_forward.21} parent=0 // pred_check_branch
    %12 = sbr.rel (0) target = $region5
  $region4: #{gpt_forward.21} parent=0 // pred_region
    _
  $region5: #{gpt_forward.21} parent=0 // pred_fallthru
    _
  // Predicated region
  $region6: #{gpt_forward.21} parent=0 // pred_check
    _
  $region7: #{gpt_forward.21} parent=0 // pred_check_branch
    %14 = sbr.rel (0) target = $region9
  $region8: #{gpt_forward.21} parent=0 // pred_region
    _
  $region9: #{gpt_forward.21} parent=0 // pred_fallthru
    _
  // Predicated region
  $region10: #{gpt_forward.21} parent=0 // pred_check
    _
  $region11: #{gpt_forward.21} parent=0 // pred_check_branch
    %16 = sbr.rel (0) target = $region13
  $region12: #{gpt_forward.21} parent=0 // pred_region
    _
  $region13: #{gpt_forward.21} parent=0 // pred_fallthru
    _
  // Predicated region
  $region14: #{gpt_forward.21} parent=0 // pred_check
    _
  $region15: #{gpt_forward.21} parent=0 // pred_check_branch
    %18 = sbr.rel (0) target = $region17
  $region16: #{gpt_forward.21} parent=0 // pred_region
    _
  $region17: #{gpt_forward.21} parent=0 // pred_fallthru
    _
  // Predicated region
  $region18: #{gpt_forward.21} parent=0 // pred_check
    _
  $region19: #{gpt_forward.21} parent=0 // pred_check_branch
    %20 = sbr.rel (0) target = $region21
  $region20: #{gpt_forward.21} parent=0 // pred_region
    _
  $region21: #{gpt_forward.21} parent=0 // pred_fallthru
    _
  // Predicated region
  $region22: #{gpt_forward.21} parent=0 // pred_check
    _
  $region23: #{gpt_forward.21} parent=0 // pred_check_branch
    %22 = sbr.rel (0) target = $region25
  $region24: #{gpt_forward.21} parent=0 // pred_region
    _
  $region25: #{gpt_forward.21} parent=0 // pred_fallthru
    _
  %p23 = scmp.eq.s32.totalorder 0, 0
  // Predicated region
  $region26: #{gpt_forward.21} parent=0 // pred_check
    %p24 = pneg %p23
  $region27: #{gpt_forward.21} parent=0 // pred_check_branch
    %26 = sbr.rel (%p24) target = $region29
  $region28: #{gpt_forward.21} parent=0 // pred_region
    %vm27 = vcmask 261120
    %28 = vst.msk [vmem:[#allocation2] sm:$0xff] %vm27, 0.0
    %29 = vst.msk [vmem:[#allocation2 + $0x8] sm:$0xff] %vm27, 0.0
  $region29: #{gpt_forward.21} parent=0 // pred_fallthru
    _
  %v30 = vld [vmem:[#allocation2] sm:$0xff]
  %v31 = vld [vmem:[#allocation2 + $0x8] sm:$0xff]
  %v32 = vld [vmem:[%s0] sm:$0xff]
  %v33 = vld [vmem:[%s0 + $0x8] sm:$0xff]
  %v34 = vld [vmem:[%s1] sm:$0xff]
  %v35 = vld [vmem:[%s1 + $0x8] sm:$0xff]
  %v36 = vld [vmem:[%s1 + $0x10] sm:$0xff]
  %v37 = vld [vmem:[%s1 + $0x18] sm:$0xff]
  %vm38 = vcmask 261120
  %v40 = vsel %vm38, %v32, 0
  %v43 = vsel %vm38, %v33, 0
  %45 = vmatprep.subr.mxu0 0.0
  %46 = vmatpush1.msra.mxu0 %v34
  %47 = vmatprep.subr.mxu0 0.0
  %48 = vmatpush1.msra.mxu0 %v35
  %49 = vmatprep.subr.mxu0 0.0
  %50 = vmatpush1.msra.mxu0 %v36
  %51 = vmatprep.subr.mxu0 0.0
  %52 = vmatpush1.msra.mxu0 %v37
  %53 = vmatprep.subr.mxu0 0.0
  %54 = vmatpush1.msra.mxu0 0.0
  %55 = vmatprep.subr.mxu0 0.0
  %56 = vmatpush1.msra.mxu0 0.0
  %57 = vmatprep.subr.mxu0 0.0
  %58 = vmatpush1.msra.mxu0 0.0
  %59 = vmatprep.subr.mxu0 0.0
  %60 = vmatpush1.msra.mxu0 0.0
  %61 = vmatprep.subr.mxu0 0.0
  %62 = vmatpush1.msra.mxu0 0.0
  %63 = vmatprep.subr.mxu0 0.0
  %64 = vmatpush1.msra.mxu0 0.0
  %65 = vmatprep.subr.mxu0 0.0
  %66 = vmatpush1.msra.mxu0 0.0
  %67 = vmatprep.subr.mxu0 0.0
  %68 = vmatpush1.msra.mxu0 0.0
  %69 = vmatprep.subr.mxu0 0.0
  %70 = vmatpush1.msra.mxu0 0.0
  %71 = vmatprep.subr.mxu0 0.0
  %72 = vmatpush1.msra.mxu0 0.0
  %73 = vmatprep.subr.mxu0 0.0
  %74 = vmatpush1.msra.mxu0 0.0
  %75 = vmatprep.subr.mxu0 0.0
  %76 = vmatpush1.msra.mxu0 0.0
  %77 = vmatprep.subr.mxu0 0.0
  %78 = vmatpush1.msra.mxu0 0.0
  %79 = vmatprep.subr.mxu0 0.0
  %80 = vmatpush1.msra.mxu0 0.0
  %81 = vmatprep.subr.mxu0 0.0
  %82 = vmatpush1.msra.mxu0 0.0
  %83 = vmatprep.subr.mxu0 0.0
  %84 = vmatpush1.msra.mxu0 0.0
  %85 = vmatprep.subr.mxu0 0.0
  %86 = vmatpush1.msra.mxu0 0.0
  %87 = vmatprep.subr.mxu0 0.0
  %88 = vmatpush1.msra.mxu0 0.0
  %89 = vmatprep.subr.mxu0 0.0
  %90 = vmatpush1.msra.mxu0 0.0
  %91 = vmatprep.subr.mxu0 0.0
  %92 = vmatpush1.msra.mxu0 0.0
  %93 = vmatprep.subr.mxu0 0.0
  %94 = vmatpush1.msra.mxu0 0.0
  %95 = vmatprep.subr.mxu0 0.0
  %96 = vmatpush1.msra.mxu0 0.0
  %97 = vmatprep.subr.mxu0 0.0
  %98 = vmatpush1.msra.mxu0 0.0
  %99 = vmatprep.subr.mxu0 0.0
  %100 = vmatpush1.msra.mxu0 0.0
  %101 = vmatprep.subr.mxu0 0.0
  %102 = vmatpush1.msra.mxu0 0.0
  %103 = vmatprep.subr.mxu0 0.0
  %104 = vmatpush1.msra.mxu0 0.0
  %105 = vmatprep.subr.mxu0 0.0
  %106 = vmatpush1.msra.mxu0 0.0
  %107 = vmatprep.subr.mxu0 0.0
  %108 = vmatpush1.msra.mxu0 0.0
  %109 = vmatprep.mubr.f32.mxu0 0.0
  %110 = vmatmul.mubr.f32.gmra.mrb[0].mxu0 %v40
  %v111 = vpop.f32.mrb[0].mxu0
  %v112 = vadd.f32 0.0, %v111
  %v113 = vpop.f32.mrb[0].mxu0
  %114 = vmatprep.mubr.f32.mxu0 0.0
  %115 = vmatmul.mubr.f32.gmra.mrb[0].mxu0 %v43
  %v116 = vpop.f32.mrb[0].mxu0
  %v117 = vadd.f32 0.0, %v116
  %v118 = vpop.f32.mrb[0].mxu0
  %119 = vdwg.mxu0
  %v120 = vadd.f32 %v30, %v112
  %v121 = vadd.f32 %v31, %v117
  %122 = vst.msk [vmem:[#allocation2] sm:$0xff] %vm38, %v120
  %123 = vst.msk [vmem:[#allocation2 + $0x8] sm:$0xff] %vm38, %v121
  // Predicated region
  $region30: #{gpt_forward.21} parent=0 // pred_check
    %p124 = pneg %p23
  $region31: #{gpt_forward.21} parent=0 // pred_check_branch
    %126 = sbr.rel (%p124) target = $region33
  $region32: #{gpt_forward.21} parent=0 // pred_region
    %v127 = vld [vmem:[#allocation2] sm:$0xff]
    %v128 = vld [vmem:[#allocation2 + $0x8] sm:$0xff]
    %v129 = vld [vmem:[%s2] sm:$0x1]
    %v131 = vlaneseq
    %v132 = vshrl.u32 %v131, 7
    %v133 = vsub.s32 0, %v132
    %v134 = vrot.slane %v129, %v133
    %v136 = vadd.f32 %v127, %v134
    %v137 = vadd.f32 %v128, %v134
    %v138 = vld [vmem:[%s3] sm:$0xff]
    %v139 = vld [vmem:[%s3 + $0x8] sm:$0xff]
    %v140 = vadd.f32 %v136, %v138
    %v141 = vadd.f32 %v137, %v139
    %v142 = vsel %vm38, %v140, 0.0
    %143 = vadd.xlane.f32.xlu0 %v142
    %v144 = vpop.xlane.xlu0 %143
    %v145 = vsel %vm38, %v141, 0.0
    %146 = vadd.xlane.f32.xlu0 %v145
    %v147 = vpop.xlane.xlu0 %146
    %v148 = vrcp.pop 32.0
    %v149 = vmul.f32 %v144, %v148
    %v150 = vmul.f32 %v147, %v148
    %v151 = vsub.f32 %v140, %v149
    %v152 = vsub.f32 %v141, %v150
    %v153 = vmul.f32 %v151, %v151
    %v154 = vmul.f32 %v152, %v152
    %v155 = vsel %vm38, %v153, 0.0
    %156 = vadd.xlane.f32.xlu0 %v155
    %v157 = vpop.xlane.xlu0 %156
    %v158 = vsel %vm38, %v154, 0.0
    %159 = vadd.xlane.f32.xlu0 %v158
    %v160 = vpop.xlane.xlu0 %159
    %v161 = vmul.f32 %v157, %v148
    %v162 = vmul.f32 %v160, %v148
    %v163 = vadd.f32 %v161, 1e-05
    %v164 = vadd.f32 %v162, 1e-05
    %v165 = vrsqrt.pop %v163
    %v166 = vrsqrt.pop %v164
    %v167 = vmul.f32 %v151, %v165
    %v168 = vmul.f32 %v152, %v166
    %v169 = vld [vmem:[%s4] sm:$0x1]
    %v171 = vlaneseq
    %v172 = vshrl.u32 %v171, 7
    %v173 = vsub.s32 0, %v172
    %v174 = vrot.slane %v169, %v173
    %v176 = vmul.f32 %v167, %v174
    %v177 = vmul.f32 %v168, %v174
    %v178 = vld [vmem:[%s5] sm:$0x1]
    %v180 = vlaneseq
    %v181 = vshrl.u32 %v180, 7
    %v182 = vsub.s32 0, %v181
    %v183 = vrot.slane %v178, %v182
    %v185 = vadd.f32 %v176, %v183
    %v186 = vadd.f32 %v177, %v183
    %187 = vst.msk [vmem:[%s6] sm:$0xff] %vm38, %v185
    %188 = vst.msk [vmem:[%s6 + $0x8] sm:$0xff] %vm38, %v186
  $region33: #{gpt_forward.21} parent=0 // pred_fallthru
    _
  // Predicated region
  $region34: #{gpt_forward.21} parent=0 // pred_check
    _
  $region35: #{gpt_forward.21} parent=0 // pred_check_branch
    %190 = sbr.rel (0) target = $region37
  $region36: #{gpt_forward.21} parent=0 // pred_region
    _
  $region37: #{gpt_forward.21} parent=0 // pred_fallthru
    _
  // Predicated region
  $region38: #{gpt_forward.21} parent=0 // pred_check
    _
  $region39: #{gpt_forward.21} parent=0 // pred_check_branch
    %192 = sbr.rel (0) target = $region41
  $region40: #{gpt_forward.21} parent=0 // pred_region
    _
  $region41: #{gpt_forward.21} parent=0 // pred_fallthru
    _

// kernel: gpt_forward.20
$region0: #{gpt_forward.20}
  #allocation0 [shape = 'u32[]', space=smem, size = 0x4, offset = 0x4, fixed_abs, tag = 'smem constant byte address 0x4 - core index']
  #allocation1 [shape = 'u32[144,128]{1,0:T(1,128)}', space=vmem, size = 0x12000, scoped, tag = 'internal scratch']
  %s0 = inlined_call_operand.vmem [shape: f32[8,2,96], index: 0, kind: input, shape index: {}]
  %s1 = inlined_call_operand.vmem [shape: f32[8,2,32], index: 1, kind: output, shape index: {}]
  %s2 = sld [smem:[#allocation0]]
  $region37: #{gpt_forward.20} parent=0
    _
  %s4 = ssub.s32 1, %s2
  %s5 = scalar_select 0, %s4, %s2
  loop: start=0, step=1, limit=10
  $region2: #{gpt_forward.20} parent=0 // loop_pre_header
    _
  $region3: #{gpt_forward.20} parent=0 // loop_header
    %s7 = sphi 0, %s11
    %p8 = scmp.ge.s32.totalorder %s7, 10
    %s17 = sphi 0, %s19
    %s20 = sphi 0, %s17
    %s21 = sphi 0, %s20
    %s37 = sphi 0, %s21
    %s43 = sphi 0, %s45
    %s46 = sphi 0, %s43
    %s47 = sphi 0, %s46
    %s63 = sphi 0, %s47
  $region4: #{gpt_forward.20} parent=0 // loop_header_branch
    %10 = sbr.rel (%p8) target = $region8
  $region5: #{gpt_forward.20} parent=0 // loop_body
    %s12 = ssub.s32 %s7, 1
    %s13 = ssub.s32 %s7, 2
    %s14 = sadd.s32 %s7, 1
    %s15 = ssub.s32 %s7, %s14
    %p16 = scmp.eq.s32.totalorder %s15, 0
    %s18 = sadd.s32 %s17, 1
    %s19 = scalar_select %p16, %s17, %s18
    %p22 = pneg %p16
    %p23 = scmp.eq.s32.totalorder %s7, 7
    %p24 = por %p22, %p23
    %p25 = scmp.ne.s32.totalorder %s17, %s20
    %p26 = scmp.eq.s32.totalorder %s7, 0
    %p27 = por %p25, %p26
    %p28 = scmp.ne.s32.totalorder %s17, %s20
    %p29 = scmp.eq.s32.totalorder %s12, 7
    %p30 = por %p28, %p29
    %p31 = scmp.ne.s32.totalorder %s20, %s21
    %p32 = scmp.eq.s32.totalorder %s12, 0
    %p33 = por %p31, %p32
    %p34 = scmp.ne.s32.totalorder %s20, %s21
    %p35 = scmp.eq.s32.totalorder %s13, 7
    %p36 = por %p34, %p35
    %p38 = scmp.ne.s32.totalorder %s21, %s37
    %p39 = scmp.eq.s32.totalorder %s13, 0
    %p40 = por %p38, %p39
    %s41 = ssub.s32 %s7, %s14
    %p42 = scmp.eq.s32.totalorder %s41, 0
    %s44 = sadd.s32 %s43, 1
    %s45 = scalar_select %p42, %s43, %s44
    %p48 = pneg %p42
    %p49 = scmp.eq.s32.totalorder %s7, 7
    %p50 = por %p48, %p49
    %p51 = scmp.ne.s32.totalorder %s43, %s46
    %p52 = scmp.eq.s32.totalorder %s7, 0
    %p53 = por %p51, %p52
    %p54 = scmp.ne.s32.totalorder %s43, %s46
    %p55 = scmp.eq.s32.totalorder %s12, 7
    %p56 = por %p54, %p55
    %p57 = scmp.ne.s32.totalorder %s46, %s47
    %p58 = scmp.eq.s32.totalorder %s12, 0
    %p59 = por %p57, %p58
    %p60 = scmp.ne.s32.totalorder %s46, %s47
    %p61 = scmp.eq.s32.totalorder %s13, 7
    %p62 = por %p60, %p61
    %p64 = scmp.ne.s32.totalorder %s47, %s63
    %p65 = scmp.eq.s32.totalorder %s13, 0
    %p66 = por %p64, %p65
    %p67 = scmp.le.s32.totalorder 1, %s7
    %p68 = scmp.lt.s32.totalorder %s7, 9
    %p69 = pnand %p67, %p68
    %p70 = pneg %p69
    // Predicated region
    $region9: #{gpt_forward.20} parent=5 // pred_check
      _
    $region10: #{gpt_forward.20} parent=5 // pred_check_branch
      %72 = sbr.rel (%p69) target = $region12
    $region11: #{gpt_forward.20} parent=5 // pred_region
      %s73 = ssub.s32 %s7, 1
    $region12: #{gpt_forward.20} parent=5 // pred_fallthru
      _
    %p74 = scmp.lt.s32.totalorder %s7, 8
    // Predicated region
    $region13: #{gpt_forward.20} parent=5 // pred_check
      %p75 = pneg %p74
    $region14: #{gpt_forward.20} parent=5 // pred_check_branch
      %77 = sbr.rel (%p75) target = $region16
    $region15: #{gpt_forward.20} parent=5 // pred_region
      // Predicated region
      $region17: #{gpt_forward.20} parent=15 // pred_check
        %p78 = pneg %p27
      $region18: #{gpt_forward.20} parent=15 // pred_check_branch
        %80 = sbr.rel (%p78) target = $region20
      $region19: #{gpt_forward.20} parent=15 // pred_region
        %p81 = scmp.lt.s32.totalorder %s7, 7
        %s82 = scalar_select %p81, %s7, 7
        %s83 = smul.addr %s82, 2
        %s84 = scalar_lea.vmem %s0, %s83
      $region20: #{gpt_forward.20} parent=15 // pred_fallthru
        _
    $region16: #{gpt_forward.20} parent=5 // pred_fallthru
      _
    %p85 = scmp.le.s32.totalorder 1, %s7
    %p86 = scmp.lt.s32.totalorder %s7, 9
    %p87 = pnand %p85, %p86
    %p88 = pneg %p87
    // Predicated region
    $region21: #{gpt_forward.20} parent=5 // pred_check
      _
    $region22: #{gpt_forward.20} parent=5 // pred_check_branch
      %90 = sbr.rel (%p87) target = $region24
    $region23: #{gpt_forward.20} parent=5 // pred_region
      %s91 = ssub.s32 %s7, 1
      %p92 = scmp.lt.s32.totalorder %s12, 7
      %s93 = scalar_select %p92, %s12, 7
      %s94 = smul.addr %s93, 2
      %s95 = scalar_lea.vmem %s0, %s94
      %p96 = pneg %p33
      %p97 = pneg %p30
      %p98 = pneg %p59
      %p99 = pneg %p56
      %p100 = scmp.lt.s32.totalorder %s12, 7
      %s101 = scalar_select %p100, %s12, 7
      %s102 = smul.addr %s101, 2
      %s103 = scalar_lea.vmem %s1, %s102
      %p104 = scmp.lt.s32.totalorder %s12, 7
      %s105 = scalar_select %p104, %s12, 7
      %s106 = smul.addr %s105, 2
      %s107 = scalar_lea.vmem %s0, %s106
      %p108 = scmp.lt.s32.totalorder %s12, 7
      %s109 = scalar_select %p108, %s12, 7
      %s110 = smul.addr %s109, 2
      %s111 = scalar_lea.vmem %s1, %s110
      %v112 = vld [vmem:[%s107] sm:$0x3]
      %v113 = vmul.f32 %v112, 0.35355338
      %115 = vrot.lane.b32.xlu0 %v112, 96
      %v116 = vpop.permute.xlu0 %115
      %vm117 = vcmask 64512
      %v119 = vsel %vm117, %v113, 0
      %v121 = vsel %vm117, %v116, 0
      %123 = vmatprep.subr.mxu0 0.0
      %124 = vmatpush1.xpose.msra.mxu0 %v121
      %125 = vmatprep.subr.mxu0 0.0
      %126 = vmatpush1.xpose.msra.mxu0 0.0
      %127 = vmatprep.subr.mxu0 0.0
      %128 = vmatpush1.xpose.msra.mxu0 0.0
      %129 = vmatprep.subr.mxu0 0.0
      %130 = vmatpush1.xpose.msra.mxu0 0.0
      %131 = vmatprep.subr.mxu0 0.0
      %132 = vmatpush1.xpose.msra.mxu0 0.0
      %133 = vmatprep.subr.mxu0 0.0
      %134 = vmatpush1.xpose.msra.mxu0 0.0
      %135 = vmatprep.subr.mxu0 0.0
      %136 = vmatpush1.xpose.msra.mxu0 0.0
      %137 = vmatprep.subr.mxu0 0.0
      %138 = vmatpush1.xpose.msra.mxu0 0.0
      %139 = vmatprep.subr.mxu0 0.0
      %140 = vmatpush1.xpose.msra.mxu0 0.0
      %141 = vmatprep.subr.mxu0 0.0
      %142 = vmatpush1.xpose.msra.mxu0 0.0
      %143 = vmatprep.subr.mxu0 0.0
      %144 = vmatpush1.xpose.msra.mxu0 0.0
      %145 = vmatprep.subr.mxu0 0.0
      %146 = vmatpush1.xpose.msra.mxu0 0.0
      %147 = vmatprep.subr.mxu0 0.0
      %148 = vmatpush1.xpose.msra.mxu0 0.0
      %149 = vmatprep.subr.mxu0 0.0
      %150 = vmatpush1.xpose.msra.mxu0 0.0
      %151 = vmatprep.subr.mxu0 0.0
      %152 = vmatpush1.xpose.msra.mxu0 0.0
      %153 = vmatprep.subr.mxu0 0.0
      %154 = vmatpush1.xpose.msra.mxu0 0.0
      %155 = vmatprep.subr.mxu0 0.0
      %156 = vmatpush1.xpose.msra.mxu0 0.0
      %157 = vmatprep.subr.mxu0 0.0
      %158 = vmatpush1.xpose.msra.mxu0 0.0
      %159 = vmatprep.subr.mxu0 0.0
      %160 = vmatpush1.xpose.msra.mxu0 0.0
      %161 = vmatprep.subr.mxu0 0.0
      %162 = vmatpush1.xpose.msra.mxu0 0.0
      %163 = vmatprep.subr.mxu0 0.0
      %164 = vmatpush1.xpose.msra.mxu0 0.0
      %165 = vmatprep.subr.mxu0 0.0
      %166 = vmatpush1.xpose.msra.mxu0 0.0
      %167 = vmatprep.subr.mxu0 0.0
      %168 = vmatpush1.xpose.msra.mxu0 0.0
      %169 = vmatprep.subr.mxu0 0.0
      %170 = vmatpush1.xpose.msra.mxu0 0.0
      %171 = vmatprep.subr.mxu0 0.0
      %172 = vmatpush1.xpose.msra.mxu0 0.0
      %173 = vmatprep.subr.mxu0 0.0
      %174 = vmatpush1.xpose.msra.mxu0 0.0
      %175 = vmatprep.subr.mxu0 0.0
      %176 = vmatpush1.xpose.msra.mxu0 0.0
      %177 = vmatprep.subr.mxu0 0.0
      %178 = vmatpush1.xpose.msra.mxu0 0.0
      %179 = vmatprep.subr.mxu0 0.0
      %180 = vmatpush1.xpose.msra.mxu0 0.0
      %181 = vmatprep.subr.mxu0 0.0
      %182 = vmatpush1.xpose.msra.mxu0 0.0
      %183 = vmatprep.subr.mxu0 0.0
      %184 = vmatpush1.xpose.msra.mxu0 0.0
      %185 = vmatprep.subr.mxu0 0.0
      %186 = vmatpush1.xpose.msra.mxu0 0.0
      %187 = vmatprep.mubr.f32.mxu0 0.0
      %188 = vmatmul.mubr.f32.gmra.mrb[0].mxu0 %v119
      %v189 = vpop.f32.mrb[0].mxu0
      %v190 = vadd.f32 0.0, %v189
      %v191 = vpop.f32.mrb[0].mxu0
      %192 = vdwg.mxu0
      %vm193 = vcmask 9216
      %v194 = vsel %vm193, %v190, -inf
      %195 = vmax.xlane.f32.xlu0 %v194
      %v196 = vpop.xlane.xlu0 %195
      %v197 = vsub.f32 %v190, %v196
      %v198 = vmul.f32 %v197, 1.442695
      %v199 = vpow.pop %v198
      %v200 = vsel %vm193, %v199, 0.0
      %201 = vadd.xlane.f32.xlu0 %v200
      %v202 = vpop.xlane.xlu0 %201
      %v203 = vrcp.pop %v202
      %v204 = vmul.f32 %v199, %v203
      %205 = vrot.lane.b32.xlu0 %v112, 64
      %v206 = vpop.permute.xlu0 %205
      %vm207 = vcmask 15360
      %v209 = vsel %vm207, %v204, 0
      %vm211 = vcmask 1041408
      %v212 = vsel %vm211, %v206, 0
      %214 = vmatprep.subr.mxu0 0.0
      %215 = vmatpush1.msra.mxu0 %v212
      %216 = vmatprep.subr.mxu0 0.0
      %217 = vmatpush1.msra.mxu0 0.0
      %218 = vmatprep.subr.mxu0 0.0
      %219 = vmatpush1.msra.mxu0 0.0
      %220 = vmatprep.subr.mxu0 0.0
      %221 = vmatpush1.msra.mxu0 0.0
      %222 = vmatprep.subr.mxu0 0.0
      %223 = vmatpush1.msra.mxu0 0.0
      %224 = vmatprep.subr.mxu0 0.0
      %225 = vmatpush1.msra.mxu0 0.0
      %226 = vmatprep.subr.mxu0 0.0
      %227 = vmatpush1.msra.mxu0 0.0
      %228 = vmatprep.subr.mxu0 0.0
      %229 = vmatpush1.msra.mxu0 0.0
      %230 = vmatprep.subr.mxu0 0.0
      %231 = vmatpush1.msra.mxu0 0.0
      %232 = vmatprep.subr.mxu0 0.0
      %233 = vmatpush1.msra.mxu0 0.0
      %234 = vmatprep.subr.mxu0 0.0
      %235 = vmatpush1.msra.mxu0 0.0
      %236 = vmatprep.subr.mxu0 0.0
      %237 = vmatpush1.msra.mxu0 0.0
      %238 = vmatprep.subr.mxu0 0.0
      %239 = vmatpush1.msra.mxu0 0.0
      %240 = vmatprep.subr.mxu0 0.0
      %241 = vmatpush1.msra.mxu0 0.0
      %242 = vmatprep.subr.mxu0 0.0
      %243 = vmatpush1.msra.mxu0 0.0
      %244 = vmatprep.subr.mxu0 0.0
      %245 = vmatpush1.msra.mxu0 0.0
      %246 = vmatprep.subr.mxu0 0.0
      %247 = vmatpush1.msra.mxu0 0.0
      %248 = vmatprep.subr.mxu0 0.0
      %249 = vmatpush1.msra.mxu0 0.0
      %250 = vmatprep.subr.mxu0 0.0
      %251 = vmatpush1.msra.mxu0 0.0
      %252 = vmatprep.subr.mxu0 0.0
      %253 = vmatpush1.msra.mxu0 0.0
      %254 = vmatprep.subr.mxu0 0.0
      %255 = vmatpush1.msra.mxu0 0.0
      %256 = vmatprep.subr.mxu0 0.0
      %257 = vmatpush1.msra.mxu0 0.0
      %258 = vmatprep.subr.mxu0 0.0
      %259 = vmatpush1.msra.mxu0 0.0
      %260 = vmatprep.subr.mxu0 0.0
      %261 = vmatpush1.msra.mxu0 0.0
      %262 = vmatprep.subr.mxu0 0.0
      %263 = vmatpush1.msra.mxu0 0.0
      %264 = vmatprep.subr.mxu0 0.0
      %265 = vmatpush1.msra.mxu0 0.0
      %266 = vmatprep.subr.mxu0 0.0
      %267 = vmatpush1.msra.mxu0 0.0
      %268 = vmatprep.subr.mxu0 0.0
      %269 = vmatpush1.msra.mxu0 0.0
      %270 = vmatprep.subr.mxu0 0.0
      %271 = vmatpush1.msra.mxu0 0.0
      %272 = vmatprep.subr.mxu0 0.0
      %273 = vmatpush1.msra.mxu0 0.0
      %274 = vmatprep.subr.mxu0 0.0
      %275 = vmatpush1.msra.mxu0 0.0
      %276 = vmatprep.subr.mxu0 0.0
      %277 = vmatpush1.msra.mxu0 0.0
      %278 = vmatprep.mubr.f32.mxu0 0.0
      %279 = vmatmul.mubr.f32.gmra.mrb[0].mxu0 %v209
      %v280 = vpop.f32.mrb[0].mxu0
      %v281 = vadd.f32 0.0, %v280
      %v282 = vpop.f32.mrb[0].mxu0
      %283 = vdwg.mxu0
      %284 = vrot.lane.b32.xlu0 %v113, 120
      %v285 = vpop.permute.xlu0 %284
      %286 = vrot.lane.b32.xlu0 %v112, 88
      %v287 = vpop.permute.xlu0 %286
      %v288 = vsel %vm117, %v285, 0
      %v290 = vsel %vm117, %v287, 0
      %292 = vmatprep.subr.mxu0 0.0
      %293 = vmatpush1.xpose.msra.mxu0 %v290
      %294 = vmatprep.subr.mxu0 0.0
      %295 = vmatpush1.xpose.msra.mxu0 0.0
      %296 = vmatprep.subr.mxu0 0.0
      %297 = vmatpush1.xpose.msra.mxu0 0.0
      %298 = vmatprep.subr.mxu0 0.0
      %299 = vmatpush1.xpose.msra.mxu0 0.0
      %300 = vmatprep.subr.mxu0 0.0
      %301 = vmatpush1.xpose.msra.mxu0 0.0
      %302 = vmatprep.subr.mxu0 0.0
      %303 = vmatpush1.xpose.msra.mxu0 0.0
      %304 = vmatprep.subr.mxu0 0.0
      %305 = vmatpush1.xpose.msra.mxu0 0.0
      %306 = vmatprep.subr.mxu0 0.0
      %307 = vmatpush1.xpose.msra.mxu0 0.0
      %308 = vmatprep.subr.mxu0 0.0
      %309 = vmatpush1.xpose.msra.mxu0 0.0
      %310 = vmatprep.subr.mxu0 0.0
      %311 = vmatpush1.xpose.msra.mxu0 0.0
      %312 = vmatprep.subr.mxu0 0.0
      %313 = vmatpush1.xpose.msra.mxu0 0.0
      %314 = vmatprep.subr.mxu0 0.0
      %315 = vmatpush1.xpose.msra.mxu0 0.0
      %316 = vmatprep.subr.mxu0 0.0
      %317 = vmatpush1.xpose.msra.mxu0 0.0
      %318 = vmatprep.subr.mxu0 0.0
      %319 = vmatpush1.xpose.msra.mxu0 0.0
      %320 = vmatprep.subr.mxu0 0.0
      %321 = vmatpush1.xpose.msra.mxu0 0.0
      %322 = vmatprep.subr.mxu0 0.0
      %323 = vmatpush1.xpose.msra.mxu0 0.0
      %324 = vmatprep.subr.mxu0 0.0
      %325 = vmatpush1.xpose.msra.mxu0 0.0
      %326 = vmatprep.subr.mxu0 0.0
      %327 = vmatpush1.xpose.msra.mxu0 0.0
      %328 = vmatprep.subr.mxu0 0.0
      %329 = vmatpush1.xpose.msra.mxu0 0.0
      %330 = vmatprep.subr.mxu0 0.0
      %331 = vmatpush1.xpose.msra.mxu0 0.0
      %332 = vmatprep.subr.mxu0 0.0
      %333 = vmatpush1.xpose.msra.mxu0 0.0
      %334 = vmatprep.subr.mxu0 0.0
      %335 = vmatpush1.xpose.msra.mxu0 0.0
      %336 = vmatprep.subr.mxu0 0.0
      %337 = vmatpush1.xpose.msra.mxu0 0.0
      %338 = vmatprep.subr.mxu0 0.0
      %339 = vmatpush1.xpose.msra.mxu0 0.0
      %340 = vmatprep.subr.mxu0 0.0
      %341 = vmatpush1.xpose.msra.mxu0 0.0
      %342 = vmatprep.subr.mxu0 0.0
      %343 = vmatpush1.xpose.msra.mxu0 0.0
      %344 = vmatprep.subr.mxu0 0.0
      %345 = vmatpush1.xpose.msra.mxu0 0.0
      %346 = vmatprep.subr.mxu0 0.0
      %347 = vmatpush1.xpose.msra.mxu0 0.0
      %348 = vmatprep.subr.mxu0 0.0
      %349 = vmatpush1.xpose.msra.mxu0 0.0
      %350 = vmatprep.subr.mxu0 0.0
      %351 = vmatpush1.xpose.msra.mxu0 0.0
      %352 = vmatprep.subr.mxu0 0.0
      %353 = vmatpush1.xpose.msra.mxu0 0.0
      %354 = vmatprep.subr.mxu0 0.0
      %355 = vmatpush1.xpose.msra.mxu0 0.0
      %356 = vmatprep.mubr.f32.mxu0 0.0
      %357 = vmatmul.mubr.f32.gmra.mrb[0].mxu0 %v288
      %v358 = vpop.f32.mrb[0].mxu0
      %v359 = vadd.f32 0.0, %v358
      %v360 = vpop.f32.mrb[0].mxu0
      %361 = vdwg.mxu0
      %v362 = vsel %vm193, %v359, -inf
      %363 = vmax.xlane.f32.xlu0 %v362
      %v364 = vpop.xlane.xlu0 %363
      %v365 = vsub.f32 %v359, %v364
      %v366 = vmul.f32 %v365, 1.442695
      %v367 = vpow.pop %v366
      %v368 = vsel %vm193, %v367, 0.0
      %369 = vadd.xlane.f32.xlu0 %v368
      %v370 = vpop.xlane.xlu0 %369
      %v371 = vrcp.pop %v370
      %v372 = vmul.f32 %v367, %v371
      %373 = vrot.lane.b32.xlu0 %v112, 56
      %v374 = vpop.permute.xlu0 %373
      %v376 = vsel %vm207, %v372, 0
      %v378 = vsel %vm211, %v374, 0
      %380 = vmatprep.subr.mxu0 0.0
      %381 = vmatpush1.msra.mxu0 %v378
      %382 = vmatprep.subr.mxu0 0.0
      %383 = vmatpush1.msra.mxu0 0.0
      %384 = vmatprep.subr.mxu0 0.0
      %385 = vmatpush1.msra.mxu0 0.0
      %386 = vmatprep.subr.mxu0 0.0
      %387 = vmatpush1.msra.mxu0 0.0
      %388 = vmatprep.subr.mxu0 0.0
      %389 = vmatpush1.msra.mxu0 0.0
      %390 = vmatprep.subr.mxu0 0.0
      %391 = vmatpush1.msra.mxu0 0.0
      %392 = vmatprep.subr.mxu0 0.0
      %393 = vmatpush1.msra.mxu0 0.0
      %394 = vmatprep.subr.mxu0 0.0
      %395 = vmatpush1.msra.mxu0 0.0
      %396 = vmatprep.subr.mxu0 0.0
      %397 = vmatpush1.msra.mxu0 0.0
      %398 = vmatprep.subr.mxu0 0.0
      %399 = vmatpush1.msra.mxu0 0.0
      %400 = vmatprep.subr.mxu0 0.0
      %401 = vmatpush1.msra.mxu0 0.0
      %402 = vmatprep.subr.mxu0 0.0
      %403 = vmatpush1.msra.mxu0 0.0
      %404 = vmatprep.subr.mxu0 0.0
      %405 = vmatpush1.msra.mxu0 0.0
      %406 = vmatprep.subr.mxu0 0.0
      %407 = vmatpush1.msra.mxu0 0.0
      %408 = vmatprep.subr.mxu0 0.0
      %409 = vmatpush1.msra.mxu0 0.0
      %410 = vmatprep.subr.mxu0 0.0
      %411 = vmatpush1.msra.mxu0 0.0
      %412 = vmatprep.subr.mxu0 0.0
      %413 = vmatpush1.msra.mxu0 0.0
      %414 = vmatprep.subr.mxu0 0.0
      %415 = vmatpush1.msra.mxu0 0.0
      %416 = vmatprep.subr.mxu0 0.0
      %417 = vmatpush1.msra.mxu0 0.0
      %418 = vmatprep.subr.mxu0 0.0
      %419 = vmatpush1.msra.mxu0 0.0
      %420 = vmatprep.subr.mxu0 0.0
      %421 = vmatpush1.msra.mxu0 0.0
      %422 = vmatprep.subr.mxu0 0.0
      %423 = vmatpush1.msra.mxu0 0.0
      %424 = vmatprep.subr.mxu0 0.0
      %425 = vmatpush1.msra.mxu0 0.0
      %426 = vmatprep.subr.mxu0 0.0
      %427 = vmatpush1.msra.mxu0 0.0
      %428 = vmatprep.subr.mxu0 0.0
      %429 = vmatpush1.msra.mxu0 0.0
      %430 = vmatprep.subr.mxu0 0.0
      %431 = vmatpush1.msra.mxu0 0.0
      %432 = vmatprep.subr.mxu0 0.0
      %433 = vmatpush1.msra.mxu0 0.0
      %434 = vmatprep.subr.mxu0 0.0
      %435 = vmatpush1.msra.mxu0 0.0
      %436 = vmatprep.subr.mxu0 0.0
      %437 = vmatpush1.msra.mxu0 0.0
      %438 = vmatprep.subr.mxu0 0.0
      %439 = vmatpush1.msra.mxu0 0.0
      %440 = vmatprep.subr.mxu0 0.0
      %441 = vmatpush1.msra.mxu0 0.0
      %442 = vmatprep.subr.mxu0 0.0
      %443 = vmatpush1.msra.mxu0 0.0
      %444 = vmatprep.mubr.f32.mxu0 0.0
      %445 = vmatmul.mubr.f32.gmra.mrb[0].mxu0 %v376
      %v446 = vpop.f32.mrb[0].mxu0
      %v447 = vadd.f32 0.0, %v446
      %v448 = vpop.f32.mrb[0].mxu0
      %449 = vdwg.mxu0
      %450 = vrot.lane.b32.xlu0 %v113, 112
      %v451 = vpop.permute.xlu0 %450
      %452 = vrot.lane.b32.xlu0 %v112, 80
      %v453 = vpop.permute.xlu0 %452
      %v454 = vsel %vm117, %v451, 0
      %v456 = vsel %vm117, %v453, 0
      %458 = vmatprep.subr.mxu0 0.0
      %459 = vmatpush1.xpose.msra.mxu0 %v456
      %460 = vmatprep.subr.mxu0 0.0
      %461 = vmatpush1.xpose.msra.mxu0 0.0
      %462 = vmatprep.subr.mxu0 0.0
      %463 = vmatpush1.xpose.msra.mxu0 0.0
      %464 = vmatprep.subr.mxu0 0.0
      %465 = vmatpush1.xpose.msra.mxu0 0.0
      %466 = vmatprep.subr.mxu0 0.0
      %467 = vmatpush1.xpose.msra.mxu0 0.0
      %468 = vmatprep.subr.mxu0 0.0
      %469 = vmatpush1.xpose.msra.mxu0 0.0
      %470 = vmatprep.subr.mxu0 0.0
      %471 = vmatpush1.xpose.msra.mxu0 0.0
      %472 = vmatprep.subr.mxu0 0.0
      %473 = vmatpush1.xpose.msra.mxu0 0.0
      %474 = vmatprep.subr.mxu0 0.0
      %475 = vmatpush1.xpose.msra.mxu0 0.0
      %476 = vmatprep.subr.mxu0 0.0
      %477 = vmatpush1.xpose.msra.mxu0 0.0
      %478 = vmatprep.subr.mxu0 0.0
      %479 = vmatpush1.xpose.msra.mxu0 0.0
      %480 = vmatprep.subr.mxu0 0.0
      %481 = vmatpush1.xpose.msra.mxu0 0.0
      %482 = vmatprep.subr.mxu0 0.0
      %483 = vmatpush1.xpose.msra.mxu0 0.0
      %484 = vmatprep.subr.mxu0 0.0
      %485 = vmatpush1.xpose.msra.mxu0 0.0
      %486 = vmatprep.subr.mxu0 0.0
      %487 = vmatpush1.xpose.msra.mxu0 0.0
      %488 = vmatprep.subr.mxu0 0.0
      %489 = vmatpush1.xpose.msra.mxu0 0.0
      %490 = vmatprep.subr.mxu0 0.0
      %491 = vmatpush1.xpose.msra.mxu0 0.0
      %492 = vmatprep.subr.mxu0 0.0
      %493 = vmatpush1.xpose.msra.mxu0 0.0
      %494 = vmatprep.subr.mxu0 0.0
      %495 = vmatpush1.xpose.msra.mxu0 0.0
      %496 = vmatprep.subr.mxu0 0.0
      %497 = vmatpush1.xpose.msra.mxu0 0.0
      %498 = vmatprep.subr.mxu0 0.0
      %499 = vmatpush1.xpose.msra.mxu0 0.0
      %500 = vmatprep.subr.mxu0 0.0
      %501 = vmatpush1.xpose.msra.mxu0 0.0
      %502 = vmatprep.subr.mxu0 0.0
      %503 = vmatpush1.xpose.msra.mxu0 0.0
      %504 = vmatprep.subr.mxu0 0.0
      %505 = vmatpush1.xpose.msra.mxu0 0.0
      %506 = vmatprep.subr.mxu0 0.0
      %507 = vmatpush1.xpose.msra.mxu0 0.0
      %508 = vmatprep.subr.mxu0 0.0
      %509 = vmatpush1.xpose.msra.mxu0 0.0
      %510 = vmatprep.subr.mxu0 0.0
      %511 = vmatpush1.xpose.msra.mxu0 0.0
      %512 = vmatprep.subr.mxu0 0.0
      %513 = vmatpush1.xpose.msra.mxu0 0.0
      %514 = vmatprep.subr.mxu0 0.0
      %515 = vmatpush1.xpose.msra.mxu0 0.0
      %516 = vmatprep.subr.mxu0 0.0
      %517 = vmatpush1.xpose.msra.mxu0 0.0
      %518 = vmatprep.subr.mxu0 0.0
      %519 = vmatpush1.xpose.msra.mxu0 0.0
      %520 = vmatprep.subr.mxu0 0.0
      %521 = vmatpush1.xpose.msra.mxu0 0.0
      %522 = vmatprep.mubr.f32.mxu0 0.0
      %523 = vmatmul.mubr.f32.gmra.mrb[0].mxu0 %v454
      %v524 = vpop.f32.mrb[0].mxu0
      %v525 = vadd.f32 0.0, %v524
      %v526 = vpop.f32.mrb[0].mxu0
      %527 = vdwg.mxu0
      %v528 = vsel %vm193, %v525, -inf
      %529 = vmax.xlane.f32.xlu0 %v528
      %v530 = vpop.xlane.xlu0 %529
      %v531 = vsub.f32 %v525, %v530
      %v532 = vmul.f32 %v531, 1.442695
      %v533 = vpow.pop %v532
      %v534 = vsel %vm193, %v533, 0.0
      %535 = vadd.xlane.f32.xlu0 %v534
      %v536 = vpop.xlane.xlu0 %535
      %v537 = vrcp.pop %v536
      %v538 = vmul.f32 %v533, %v537
      %539 = vrot.lane.b32.xlu0 %v112, 48
      %v540 = vpop.permute.xlu0 %539
      %v542 = vsel %vm207, %v538, 0
      %v544 = vsel %vm211, %v540, 0
      %546 = vmatprep.subr.mxu0 0.0
      %547 = vmatpush1.msra.mxu0 %v544
      %548 = vmatprep.subr.mxu0 0.0
      %549 = vmatpush1.msra.mxu0 0.0
      %550 = vmatprep.subr.mxu0 0.0
      %551 = vmatpush1.msra.mxu0 0.0
      %552 = vmatprep.subr.mxu0 0.0
      %553 = vmatpush1.msra.mxu0 0.0
      %554 = vmatprep.subr.mxu0 0.0
      %555 = vmatpush1.msra.mxu0 0.0
      %556 = vmatprep.subr.mxu0 0.0
      %557 = vmatpush1.msra.mxu0 0.0
      %558 = vmatprep.subr.mxu0 0.0
      %559 = vmatpush1.msra.mxu0 0.0
      %560 = vmatprep.subr.mxu0 0.0
      %561 = vmatpush1.msra.mxu0 0.0
      %562 = vmatprep.subr.mxu0 0.0
      %563 = vmatpush1.msra.mxu0 0.0
      %564 = vmatprep.subr.mxu0 0.0
      %565 = vmatpush1.msra.mxu0 0.0
      %566 = vmatprep.subr.mxu0 0.0
      %567 = vmatpush1.msra.mxu0 0.0
      %568 = vmatprep.subr.mxu0 0.0
      %569 = vmatpush1.msra.mxu0 0.0
      %570 = vmatprep.subr.mxu0 0.0
      %571 = vmatpush1.msra.mxu0 0.0
      %572 = vmatprep.subr.mxu0 0.0
      %573 = vmatpush1.msra.mxu0 0.0
      %574 = vmatprep.subr.mxu0 0.0
      %575 = vmatpush1.msra.mxu0 0.0
      %576 = vmatprep.subr.mxu0 0.0
      %577 = vmatpush1.msra.mxu0 0.0
      %578 = vmatprep.subr.mxu0 0.0
      %579 = vmatpush1.msra.mxu0 0.0
      %580 = vmatprep.subr.mxu0 0.0
      %581 = vmatpush1.msra.mxu0 0.0
      %582 = vmatprep.subr.mxu0 0.0
      %583 = vmatpush1.msra.mxu0 0.0
      %584 = vmatprep.subr.mxu0 0.0
      %585 = vmatpush1.msra.mxu0 0.0
      %586 = vmatprep.subr.mxu0 0.0
      %587 = vmatpush1.msra.mxu0 0.0
      %588 = vmatprep.subr.mxu0 0.0
      %589 = vmatpush1.msra.mxu0 0.0
      %590 = vmatprep.subr.mxu0 0.0
      %591 = vmatpush1.msra.mxu0 0.0
      %592 = vmatprep.subr.mxu0 0.0
      %593 = vmatpush1.msra.mxu0 0.0
      %594 = vmatprep.subr.mxu0 0.0
      %595 = vmatpush1.msra.mxu0 0.0
      %596 = vmatprep.subr.mxu0 0.0
      %597 = vmatpush1.msra.mxu0 0.0
      %598 = vmatprep.subr.mxu0 0.0
      %599 = vmatpush1.msra.mxu0 0.0
      %600 = vmatprep.subr.mxu0 0.0
      %601 = vmatpush1.msra.mxu0 0.0
      %602 = vmatprep.subr.mxu0 0.0
      %603 = vmatpush1.msra.mxu0 0.0
      %604 = vmatprep.subr.mxu0 0.0
      %605 = vmatpush1.msra.mxu0 0.0
      %606 = vmatprep.subr.mxu0 0.0
      %607 = vmatpush1.msra.mxu0 0.0
      %608 = vmatprep.subr.mxu0 0.0
      %609 = vmatpush1.msra.mxu0 0.0
      %610 = vmatprep.mubr.f32.mxu0 0.0
      %611 = vmatmul.mubr.f32.gmra.mrb[0].mxu0 %v542
      %v612 = vpop.f32.mrb[0].mxu0
      %v613 = vadd.f32 0.0, %v612
      %v614 = vpop.f32.mrb[0].mxu0
      %615 = vdwg.mxu0
      %616 = vrot.lane.b32.xlu0 %v113, 104
      %v617 = vpop.permute.xlu0 %616
      %618 = vrot.lane.b32.xlu0 %v112, 72
      %v619 = vpop.permute.xlu0 %618
      %v620 = vsel %vm117, %v617, 0
      %v622 = vsel %vm117, %v619, 0
      %624 = vmatprep.subr.mxu0 0.0
      %625 = vmatpush1.xpose.msra.mxu0 %v622
      %626 = vmatprep.subr.mxu0 0.0
      %627 = vmatpush1.xpose.msra.mxu0 0.0
      %628 = vmatprep.subr.mxu0 0.0
      %629 = vmatpush1.xpose.msra.mxu0 0.0
      %630 = vmatprep.subr.mxu0 0.0
      %631 = vmatpush1.xpose.msra.mxu0 0.0
      %632 = vmatprep.subr.mxu0 0.0
      %633 = vmatpush1.xpose.msra.mxu0 0.0
      %634 = vmatprep.subr.mxu0 0.0
      %635 = vmatpush1.xpose.msra.mxu0 0.0
      %636 = vmatprep.subr.mxu0 0.0
      %637 = vmatpush1.xpose.msra.mxu0 0.0
      %638 = vmatprep.subr.mxu0 0.0
      %639 = vmatpush1.xpose.msra.mxu0 0.0
      %640 = vmatprep.subr.mxu0 0.0
      %641 = vmatpush1.xpose.msra.mxu0 0.0
      %642 = vmatprep.subr.mxu0 0.0
      %643 = vmatpush1.xpose.msra.mxu0 0.0
      %644 = vmatprep.subr.mxu0 0.0
      %645 = vmatpush1.xpose.msra.mxu0 0.0
      %646 = vmatprep.subr.mxu0 0.0
      %647 = vmatpush1.xpose.msra.mxu0 0.0
      %648 = vmatprep.subr.mxu0 0.0
      %649 = vmatpush1.xpose.msra.mxu0 0.0
      %650 = vmatprep.subr.mxu0 0.0
      %651 = vmatpush1.xpose.msra.mxu0 0.0
      %652 = vmatprep.subr.mxu0 0.0
      %653 = vmatpush1.xpose.msra.mxu0 0.0
      %654 = vmatprep.subr.mxu0 0.0
      %655 = vmatpush1.xpose.msra.mxu0 0.0
      %656 = vmatprep.subr.mxu0 0.0
      %657 = vmatpush1.xpose.msra.mxu0 0.0
      %658 = vmatprep.subr.mxu0 0.0
      %659 = vmatpush1.xpose.msra.mxu0 0.0
      %660 = vmatprep.subr.mxu0 0.0
      %661 = vmatpush1.xpose.msra.mxu0 0.0
      %662 = vmatprep.subr.mxu0 0.0
      %663 = vmatpush1.xpose.msra.mxu0 0.0
      %664 = vmatprep.subr.mxu0 0.0
      %665 = vmatpush1.xpose.msra.mxu0 0.0
      %666 = vmatprep.subr.mxu0 0.0
      %667 = vmatpush1.xpose.msra.mxu0 0.0
      %668 = vmatprep.subr.mxu0 0.0
      %669 = vmatpush1.xpose.msra.mxu0 0.0
      %670 = vmatprep.subr.mxu0 0.0
      %671 = vmatpush1.xpose.msra.mxu0 0.0
      %672 = vmatprep.subr.mxu0 0.0
      %673 = vmatpush1.xpose.msra.mxu0 0.0
      %674 = vmatprep.subr.mxu0 0.0
      %675 = vmatpush1.xpose.msra.mxu0 0.0
      %676 = vmatprep.subr.mxu0 0.0
      %677 = vmatpush1.xpose.msra.mxu0 0.0
      %678 = vmatprep.subr.mxu0 0.0
      %679 = vmatpush1.xpose.msra.mxu0 0.0
      %680 = vmatprep.subr.mxu0 0.0
      %681 = vmatpush1.xpose.msra.mxu0 0.0
      %682 = vmatprep.subr.mxu0 0.0
      %683 = vmatpush1.xpose.msra.mxu0 0.0
      %684 = vmatprep.subr.mxu0 0.0
      %685 = vmatpush1.xpose.msra.mxu0 0.0
      %686 = vmatprep.subr.mxu0 0.0
      %687 = vmatpush1.xpose.msra.mxu0 0.0
      %688 = vmatprep.mubr.f32.mxu0 0.0
      %689 = vmatmul.mubr.f32.gmra.mrb[0].mxu0 %v620
      %v690 = vpop.f32.mrb[0].mxu0
      %v691 = vadd.f32 0.0, %v690
      %v692 = vpop.f32.mrb[0].mxu0
      %693 = vdwg.mxu0
      %v694 = vsel %vm193, %v691, -inf
      %695 = vmax.xlane.f32.xlu0 %v694
      %v696 = vpop.xlane.xlu0 %695
      %v697 = vsub.f32 %v691, %v696
      %v698 = vmul.f32 %v697, 1.442695
      %v699 = vpow.pop %v698
      %v700 = vsel %vm193, %v699, 0.0
      %701 = vadd.xlane.f32.xlu0 %v700
      %v702 = vpop.xlane.xlu0 %701
      %v703 = vrcp.pop %v702
      %v704 = vmul.f32 %v699, %v703
      %705 = vrot.lane.b32.xlu0 %v112, 40
      %v706 = vpop.permute.xlu0 %705
      %v708 = vsel %vm207, %v704, 0
      %v710 = vsel %vm211, %v706, 0
      %712 = vmatprep.subr.mxu0 0.0
      %713 = vmatpush1.msra.mxu0 %v710
      %714 = vmatprep.subr.mxu0 0.0
      %715 = vmatpush1.msra.mxu0 0.0
      %716 = vmatprep.subr.mxu0 0.0
      %717 = vmatpush1.msra.mxu0 0.0
      %718 = vmatprep.subr.mxu0 0.0
      %719 = vmatpush1.msra.mxu0 0.0
      %720 = vmatprep.subr.mxu0 0.0
      %721 = vmatpush1.msra.mxu0 0.0
      %722 = vmatprep.subr.mxu0 0.0
      %723 = vmatpush1.msra.mxu0 0.0
      %724 = vmatprep.subr.mxu0 0.0
      %725 = vmatpush1.msra.mxu0 0.0
      %726 = vmatprep.subr.mxu0 0.0
      %727 = vmatpush1.msra.mxu0 0.0
      %728 = vmatprep.subr.mxu0 0.0
      %729 = vmatpush1.msra.mxu0 0.0
      %730 = vmatprep.subr.mxu0 0.0
      %731 = vmatpush1.msra.mxu0 0.0
      %732 = vmatprep.subr.mxu0 0.0
      %733 = vmatpush1.msra.mxu0 0.0
      %734 = vmatprep.subr.mxu0 0.0
      %735 = vmatpush1.msra.mxu0 0.0
      %736 = vmatprep.subr.mxu0 0.0
      %737 = vmatpush1.msra.mxu0 0.0
      %738 = vmatprep.subr.mxu0 0.0
      %739 = vmatpush1.msra.mxu0 0.0
      %740 = vmatprep.subr.mxu0 0.0
      %741 = vmatpush1.msra.mxu0 0.0
      %742 = vmatprep.subr.mxu0 0.0
      %743 = vmatpush1.msra.mxu0 0.0
      %744 = vmatprep.subr.mxu0 0.0
      %745 = vmatpush1.msra.mxu0 0.0
      %746 = vmatprep.subr.mxu0 0.0
      %747 = vmatpush1.msra.mxu0 0.0
      %748 = vmatprep.subr.mxu0 0.0
      %749 = vmatpush1.msra.mxu0 0.0
      %750 = vmatprep.subr.mxu0 0.0
      %751 = vmatpush1.msra.mxu0 0.0
      %752 = vmatprep.subr.mxu0 0.0
      %753 = vmatpush1.msra.mxu0 0.0
      %754 = vmatprep.subr.mxu0 0.0
      %755 = vmatpush1.msra.mxu0 0.0
      %756 = vmatprep.subr.mxu0 0.0
      %757 = vmatpush1.msra.mxu0 0.0
      %758 = vmatprep.subr.mxu0 0.0
      %759 = vmatpush1.msra.mxu0 0.0
      %760 = vmatprep.subr.mxu0 0.0
      %761 = vmatpush1.msra.mxu0 0.0
      %762 = vmatprep.subr.mxu0 0.0
      %763 = vmatpush1.msra.mxu0 0.0
      %764 = vmatprep.subr.mxu0 0.0
      %765 = vmatpush1.msra.mxu0 0.0
      %766 = vmatprep.subr.mxu0 0.0
      %767 = vmatpush1.msra.mxu0 0.0
      %768 = vmatprep.subr.mxu0 0.0
      %769 = vmatpush1.msra.mxu0 0.0
      %770 = vmatprep.subr.mxu0 0.0
      %771 = vmatpush1.msra.mxu0 0.0
      %772 = vmatprep.subr.mxu0 0.0
      %773 = vmatpush1.msra.mxu0 0.0
      %774 = vmatprep.subr.mxu0 0.0
      %775 = vmatpush1.msra.mxu0 0.0
      %776 = vmatprep.mubr.f32.mxu0 0.0
      %777 = vmatmul.mubr.f32.gmra.mrb[0].mxu0 %v708
      %v778 = vpop.f32.mrb[0].mxu0
      %v779 = vadd.f32 0.0, %v778
      %v780 = vpop.f32.mrb[0].mxu0
      %781 = vdwg.mxu0
      %783 = vrot.lane.b32.xlu0 %v447, 8
      %v784 = vpop.permute.xlu0 %783
      %787 = vrot.lane.b32.xlu0 %v613, 16
      %v788 = vpop.permute.xlu0 %787
      %791 = vrot.lane.b32.xlu0 %v779, 24
      %v792 = vpop.permute.xlu0 %791
      %v794 = vsel %vm117, %v281, %v784
      %vm795 = vcmask 130048
      %v796 = vsel %vm795, %v794, %v788
      %vm797 = vcmask 195584
      %v798 = vsel %vm797, %v796, %v792
      %vm799 = vcmask 254976
      %800 = vst.msk [vmem:[%s111] sm:$0x3] %vm799, %v798
      %p801 = scmp.lt.s32.totalorder %s12, 7
      %s802 = scalar_select %p801, %s12, 7
      %s803 = smul.addr %s802, 2
      %s804 = scalar_lea.vmem %s1, %s803
      // Predicated region
      $region25: #{gpt_forward.20} parent=23 // pred_check
        %p805 = pneg %p56
      $region26: #{gpt_forward.20} parent=23 // pred_check_branch
        %807 = sbr.rel (%p805) target = $region28
      $region27: #{gpt_forward.20} parent=23 // pred_region
        _
      $region28: #{gpt_forward.20} parent=23 // pred_fallthru
        _
    $region24: #{gpt_forward.20} parent=5 // pred_fallthru
      _
    %p808 = scmp.le.s32.totalorder 2, %s7
    // Predicated region
    $region29: #{gpt_forward.20} parent=5 // pred_check
      %p809 = pneg %p808
    $region30: #{gpt_forward.20} parent=5 // pred_check_branch
      %811 = sbr.rel (%p809) target = $region32
    $region31: #{gpt_forward.20} parent=5 // pred_region
      %s812 = ssub.s32 %s7, 2
      // Predicated region
      $region33: #{gpt_forward.20} parent=31 // pred_check
        %p813 = pneg %p62
      $region34: #{gpt_forward.20} parent=31 // pred_check_branch
        %815 = sbr.rel (%p813) target = $region36
      $region35: #{gpt_forward.20} parent=31 // pred_region
        %p816 = scmp.lt.s32.totalorder %s13, 7
        %s817 = scalar_select %p816, %s13, 7
        %s818 = smul.addr %s817, 2
        %s819 = scalar_lea.vmem %s1, %s818
      $region36: #{gpt_forward.20} parent=31 // pred_fallthru
        _
    $region32: #{gpt_forward.20} parent=5 // pred_fallthru
      _
  $region6: #{gpt_forward.20} parent=0 // loop_footer
    %s11 = sadd.s32 1, %s7
  $region7: #{gpt_forward.20} parent=0 // loop_footer_branch
    %6 = sbr.rel target = $region3
  $region8: #{gpt_forward.20} parent=0 // loop_exit
    _

// kernel: gpt_forward.22
$region0: #{gpt_forward.22}
  #allocation0 [shape = 'u32[]', space=smem, size = 0x4, offset = 0x4, fixed_abs, tag = 'smem constant byte address 0x4 - core index']
  #allocation1 [shape = 'u32[144,128]{1,0:T(1,128)}', space=vmem, size = 0x12000, scoped, tag = 'internal scratch']
  #allocation2 [shape = 'f32[16,32]{1,0:T(8,128)}', space=vmem, size = 0x2000, scoped, tag = 'scratch operand']
  %s0 = inlined_call_operand.vmem [shape: f32[16,32], index: 0, kind: input, shape index: {}]
  %s1 = inlined_call_operand.vmem [shape: f32[32,32], index: 1, kind: input, shape index: {}]
  %s2 = inlined_call_operand.vmem [shape: f32[1,32], index: 2, kind: input, shape index: {}]
  %s3 = inlined_call_operand.vmem [shape: f32[16,32], index: 3, kind: output, shape index: {}]
  %s4 = sld [smem:[#allocation0]]
  $region30: #{gpt_forward.22} parent=0
    _
  %s6 = ssub.s32 1, %s4
  %s7 = scalar_select 0, %s6, %s4
  // Predicated region
  $region2: #{gpt_forward.22} parent=0 // pred_check
    _
  $region3: #{gpt_forward.22} parent=0 // pred_check_branch
    %9 = sbr.rel (0) target = $region5
  $region4: #{gpt_forward.22} parent=0 // pred_region
    _
  $region5: #{gpt_forward.22} parent=0 // pred_fallthru
    _
  // Predicated region
  $region6: #{gpt_forward.22} parent=0 // pred_check
    _
  $region7: #{gpt_forward.22} parent=0 // pred_check_branch
    %11 = sbr.rel (0) target = $region9
  $region8: #{gpt_forward.22} parent=0 // pred_region
    _
  $region9: #{gpt_forward.22} parent=0 // pred_fallthru
    _
  // Predicated region
  $region10: #{gpt_forward.22} parent=0 // pred_check
    _
  $region11: #{gpt_forward.22} parent=0 // pred_check_branch
    %13 = sbr.rel (0) target = $region13
  $region12: #{gpt_forward.22} parent=0 // pred_region
    _
  $region13: #{gpt_forward.22} parent=0 // pred_fallthru
    _
  %p14 = scmp.eq.s32.totalorder 0, 0
  // Predicated region
  $region14: #{gpt_forward.22} parent=0 // pred_check
    %p15 = pneg %p14
  $region15: #{gpt_forward.22} parent=0 // pred_check_branch
    %17 = sbr.rel (%p15) target = $region17
  $region16: #{gpt_forward.22} parent=0 // pred_region
    %vm18 = vcmask 261120
    %19 = vst.msk [vmem:[#allocation2] sm:$0xff] %vm18, 0.0
    %20 = vst.msk [vmem:[#allocation2 + $0x8] sm:$0xff] %vm18, 0.0
  $region17: #{gpt_forward.22} parent=0 // pred_fallthru
    _
  %v21 = vld [vmem:[#allocation2] sm:$0xff]
  %v22 = vld [vmem:[#allocation2 + $0x8] sm:$0xff]
  %v23 = vld [vmem:[%s0] sm:$0xff]
  %v24 = vld [vmem:[%s0 + $0x8] sm:$0xff]
  %v25 = vld [vmem:[%s1] sm:$0xff]
  %v26 = vld [vmem:[%s1 + $0x8] sm:$0xff]
  %v27 = vld [vmem:[%s1 + $0x10] sm:$0xff]
  %v28 = vld [vmem:[%s1 + $0x18] sm:$0xff]
  %vm29 = vcmask 261120
  %v31 = vsel %vm29, %v23, 0
  %v34 = vsel %vm29, %v24, 0
  %36 = vmatprep.subr.mxu0 0.0
  %37 = vmatpush1.msra.mxu0 %v25
  %38 = vmatprep.subr.mxu0 0.0
  %39 = vmatpush1.msra.mxu0 %v26
  %40 = vmatprep.subr.mxu0 0.0
  %41 = vmatpush1.msra.mxu0 %v27
  %42 = vmatprep.subr.mxu0 0.0
  %43 = vmatpush1.msra.mxu0 %v28
  %44 = vmatprep.subr.mxu0 0.0
  %45 = vmatpush1.msra.mxu0 0.0
  %46 = vmatprep.subr.mxu0 0.0
  %47 = vmatpush1.msra.mxu0 0.0
  %48 = vmatprep.subr.mxu0 0.0
  %49 = vmatpush1.msra.mxu0 0.0
  %50 = vmatprep.subr.mxu0 0.0
  %51 = vmatpush1.msra.mxu0 0.0
  %52 = vmatprep.subr.mxu0 0.0
  %53 = vmatpush1.msra.mxu0 0.0
  %54 = vmatprep.subr.mxu0 0.0
  %55 = vmatpush1.msra.mxu0 0.0
  %56 = vmatprep.subr.mxu0 0.0
  %57 = vmatpush1.msra.mxu0 0.0
  %58 = vmatprep.subr.mxu0 0.0
  %59 = vmatpush1.msra.mxu0 0.0
  %60 = vmatprep.subr.mxu0 0.0
  %61 = vmatpush1.msra.mxu0 0.0
  %62 = vmatprep.subr.mxu0 0.0
  %63 = vmatpush1.msra.mxu0 0.0
  %64 = vmatprep.subr.mxu0 0.0
  %65 = vmatpush1.msra.mxu0 0.0
  %66 = vmatprep.subr.mxu0 0.0
  %67 = vmatpush1.msra.mxu0 0.0
  %68 = vmatprep.subr.mxu0 0.0
  %69 = vmatpush1.msra.mxu0 0.0
  %70 = vmatprep.subr.mxu0 0.0
  %71 = vmatpush1.msra.mxu0 0.0
  %72 = vmatprep.subr.mxu0 0.0
  %73 = vmatpush1.msra.mxu0 0.0
  %74 = vmatprep.subr.mxu0 0.0
  %75 = vmatpush1.msra.mxu0 0.0
  %76 = vmatprep.subr.mxu0 0.0
  %77 = vmatpush1.msra.mxu0 0.0
  %78 = vmatprep.subr.mxu0 0.0
  %79 = vmatpush1.msra.mxu0 0.0
  %80 = vmatprep.subr.mxu0 0.0
  %81 = vmatpush1.msra.mxu0 0.0
  %82 = vmatprep.subr.mxu0 0.0
  %83 = vmatpush1.msra.mxu0 0.0
  %84 = vmatprep.subr.mxu0 0.0
  %85 = vmatpush1.msra.mxu0 0.0
  %86 = vmatprep.subr.mxu0 0.0
  %87 = vmatpush1.msra.mxu0 0.0
  %88 = vmatprep.subr.mxu0 0.0
  %89 = vmatpush1.msra.mxu0 0.0
  %90 = vmatprep.subr.mxu0 0.0
  %91 = vmatpush1.msra.mxu0 0.0
  %92 = vmatprep.subr.mxu0 0.0
  %93 = vmatpush1.msra.mxu0 0.0
  %94 = vmatprep.subr.mxu0 0.0
  %95 = vmatpush1.msra.mxu0 0.0
  %96 = vmatprep.subr.mxu0 0.0
  %97 = vmatpush1.msra.mxu0 0.0
  %98 = vmatprep.subr.mxu0 0.0
  %99 = vmatpush1.msra.mxu0 0.0
  %100 = vmatprep.mubr.f32.mxu0 0.0
  %101 = vmatmul.mubr.f32.gmra.mrb[0].mxu0 %v31
  %v102 = vpop.f32.mrb[0].mxu0
  %v103 = vadd.f32 0.0, %v102
  %v104 = vpop.f32.mrb[0].mxu0
  %105 = vmatprep.mubr.f32.mxu0 0.0
  %106 = vmatmul.mubr.f32.gmra.mrb[0].mxu0 %v34
  %v107 = vpop.f32.mrb[0].mxu0
  %v108 = vadd.f32 0.0, %v107
  %v109 = vpop.f32.mrb[0].mxu0
  %110 = vdwg.mxu0
  %v111 = vadd.f32 %v21, %v103
  %v112 = vadd.f32 %v22, %v108
  %113 = vst.msk [vmem:[#allocation2] sm:$0xff] %vm29, %v111
  %114 = vst.msk [vmem:[#allocation2 + $0x8] sm:$0xff] %vm29, %v112
  // Predicated region
  $region18: #{gpt_forward.22} parent=0 // pred_check
    %p115 = pneg %p14
  $region19: #{gpt_forward.22} parent=0 // pred_check_branch
    %117 = sbr.rel (%p115) target = $region21
  $region20: #{gpt_forward.22} parent=0 // pred_region
    %v118 = vld [vmem:[#allocation2] sm:$0xff]
    %v119 = vld [vmem:[#allocation2 + $0x8] sm:$0xff]
    %v120 = vld [vmem:[%s2] sm:$0x1]
    %v122 = vlaneseq
    %v123 = vshrl.u32 %v122, 7
    %v124 = vsub.s32 0, %v123
    %v125 = vrot.slane %v120, %v124
    %v127 = vadd.f32 %v118, %v125
    %v128 = vadd.f32 %v119, %v125
    %129 = vst.msk [vmem:[%s3] sm:$0xff] %vm29, %v127
    %130 = vst.msk [vmem:[%s3 + $0x8] sm:$0xff] %vm29, %v128
  $region21: #{gpt_forward.22} parent=0 // pred_fallthru
    _
  // Predicated region
  $region22: #{gpt_forward.22} parent=0 // pred_check
    _
  $region23: #{gpt_forward.22} parent=0 // pred_check_branch
    %132 = sbr.rel (0) target = $region25
  $region24: #{gpt_forward.22} parent=0 // pred_region
    _
  $region25: #{gpt_forward.22} parent=0 // pred_fallthru
    _
  // Predicated region
  $region26: #{gpt_forward.22} parent=0 // pred_check
    _
  $region27: #{gpt_forward.22} parent=0 // pred_check_branch
    %134 = sbr.rel (0) target = $region29
  $region28: #{gpt_forward.22} parent=0 // pred_region
    _
  $region29: #{gpt_forward.22} parent=0 // pred_fallthru
    _

// kernel: gpt_forward.23
$region0: #{gpt_forward.23}
  #allocation0 [shape = 'u32[]', space=smem, size = 0x4, offset = 0x4, fixed_abs, tag = 'smem constant byte address 0x4 - core index']
  #allocation1 [shape = 'u32[144,128]{1,0:T(1,128)}', space=vmem, size = 0x12000, scoped, tag = 'internal scratch']
  #allocation2 [shape = 'f32[16,64]{1,0:T(8,128)}', space=vmem, size = 0x2000, scoped, tag = 'scratch operand']
  %s0 = inlined_call_operand.vmem [shape: f32[16,32], index: 0, kind: input, shape index: {}]
  %s1 = inlined_call_operand.vmem [shape: f32[32,64], index: 1, kind: input, shape index: {}]
  %s2 = inlined_call_operand.vmem [shape: f32[1,64], index: 2, kind: input, shape index: {}]
  %s3 = inlined_call_operand.vmem [shape: f32[16,64], index: 3, kind: output, shape index: {}]
  %s4 = sld [smem:[#allocation0]]
  $region30: #{gpt_forward.23} parent=0
    _
  %s6 = ssub.s32 1, %s4
  %s7 = scalar_select 0, %s6, %s4
  // Predicated region
  $region2: #{gpt_forward.23} parent=0 // pred_check
    _
  $region3: #{gpt_forward.23} parent=0 // pred_check_branch
    %9 = sbr.rel (0) target = $region5
  $region4: #{gpt_forward.23} parent=0 // pred_region
    _
  $region5: #{gpt_forward.23} parent=0 // pred_fallthru
    _
  // Predicated region
  $region6: #{gpt_forward.23} parent=0 // pred_check
    _
  $region7: #{gpt_forward.23} parent=0 // pred_check_branch
    %11 = sbr.rel (0) target = $region9
  $region8: #{gpt_forward.23} parent=0 // pred_region
    _
  $region9: #{gpt_forward.23} parent=0 // pred_fallthru
    _
  // Predicated region
  $region10: #{gpt_forward.23} parent=0 // pred_check
    _
  $region11: #{gpt_forward.23} parent=0 // pred_check_branch
    %13 = sbr.rel (0) target = $region13
  $region12: #{gpt_forward.23} parent=0 // pred_region
    _
  $region13: #{gpt_forward.23} parent=0 // pred_fallthru
    _
  %p14 = scmp.eq.s32.totalorder 0, 0
  // Predicated region
  $region14: #{gpt_forward.23} parent=0 // pred_check
    %p15 = pneg %p14
  $region15: #{gpt_forward.23} parent=0 // pred_check_branch
    %17 = sbr.rel (%p15) target = $region17
  $region16: #{gpt_forward.23} parent=0 // pred_region
    %vm18 = vcmask 523264
    %19 = vst.msk [vmem:[#allocation2] sm:$0xff] %vm18, 0.0
    %20 = vst.msk [vmem:[#allocation2 + $0x8] sm:$0xff] %vm18, 0.0
  $region17: #{gpt_forward.23} parent=0 // pred_fallthru
    _
  %v21 = vld [vmem:[#allocation2] sm:$0xff]
  %v22 = vld [vmem:[#allocation2 + $0x8] sm:$0xff]
  %v23 = vld [vmem:[%s0] sm:$0xff]
  %v24 = vld [vmem:[%s0 + $0x8] sm:$0xff]
  %v25 = vld [vmem:[%s1] sm:$0xff]
  %v26 = vld [vmem:[%s1 + $0x8] sm:$0xff]
  %v27 = vld [vmem:[%s1 + $0x10] sm:$0xff]
  %v28 = vld [vmem:[%s1 + $0x18] sm:$0xff]
  %vm29 = vcmask 261120
  %v31 = vsel %vm29, %v23, 0
  %v34 = vsel %vm29, %v24, 0
  %36 = vmatprep.subr.mxu0 0.0
  %37 = vmatpush1.msra.mxu0 %v25
  %38 = vmatprep.subr.mxu0 0.0
  %39 = vmatpush1.msra.mxu0 %v26
  %40 = vmatprep.subr.mxu0 0.0
  %41 = vmatpush1.msra.mxu0 %v27
  %42 = vmatprep.subr.mxu0 0.0
  %43 = vmatpush1.msra.mxu0 %v28
  %44 = vmatprep.subr.mxu0 0.0
  %45 = vmatpush1.msra.mxu0 0.0
  %46 = vmatprep.subr.mxu0 0.0
  %47 = vmatpush1.msra.mxu0 0.0
  %48 = vmatprep.subr.mxu0 0.0
  %49 = vmatpush1.msra.mxu0 0.0
  %50 = vmatprep.subr.mxu0 0.0
  %51 = vmatpush1.msra.mxu0 0.0
  %52 = vmatprep.subr.mxu0 0.0
  %53 = vmatpush1.msra.mxu0 0.0
  %54 = vmatprep.subr.mxu0 0.0
  %55 = vmatpush1.msra.mxu0 0.0
  %56 = vmatprep.subr.mxu0 0.0
  %57 = vmatpush1.msra.mxu0 0.0
  %58 = vmatprep.subr.mxu0 0.0
  %59 = vmatpush1.msra.mxu0 0.0
  %60 = vmatprep.subr.mxu0 0.0
  %61 = vmatpush1.msra.mxu0 0.0
  %62 = vmatprep.subr.mxu0 0.0
  %63 = vmatpush1.msra.mxu0 0.0
  %64 = vmatprep.subr.mxu0 0.0
  %65 = vmatpush1.msra.mxu0 0.0
  %66 = vmatprep.subr.mxu0 0.0
  %67 = vmatpush1.msra.mxu0 0.0
  %68 = vmatprep.subr.mxu0 0.0
  %69 = vmatpush1.msra.mxu0 0.0
  %70 = vmatprep.subr.mxu0 0.0
  %71 = vmatpush1.msra.mxu0 0.0
  %72 = vmatprep.subr.mxu0 0.0
  %73 = vmatpush1.msra.mxu0 0.0
  %74 = vmatprep.subr.mxu0 0.0
  %75 = vmatpush1.msra.mxu0 0.0
  %76 = vmatprep.subr.mxu0 0.0
  %77 = vmatpush1.msra.mxu0 0.0
  %78 = vmatprep.subr.mxu0 0.0
  %79 = vmatpush1.msra.mxu0 0.0
  %80 = vmatprep.subr.mxu0 0.0
  %81 = vmatpush1.msra.mxu0 0.0
  %82 = vmatprep.subr.mxu0 0.0
  %83 = vmatpush1.msra.mxu0 0.0
  %84 = vmatprep.subr.mxu0 0.0
  %85 = vmatpush1.msra.mxu0 0.0
  %86 = vmatprep.subr.mxu0 0.0
  %87 = vmatpush1.msra.mxu0 0.0
  %88 = vmatprep.subr.mxu0 0.0
  %89 = vmatpush1.msra.mxu0 0.0
  %90 = vmatprep.subr.mxu0 0.0
  %91 = vmatpush1.msra.mxu0 0.0
  %92 = vmatprep.subr.mxu0 0.0
  %93 = vmatpush1.msra.mxu0 0.0
  %94 = vmatprep.subr.mxu0 0.0
  %95 = vmatpush1.msra.mxu0 0.0
  %96 = vmatprep.subr.mxu0 0.0
  %97 = vmatpush1.msra.mxu0 0.0
  %98 = vmatprep.subr.mxu0 0.0
  %99 = vmatpush1.msra.mxu0 0.0
  %100 = vmatprep.mubr.f32.mxu0 0.0
  %101 = vmatmul.mubr.f32.gmra.mrb[0].mxu0 %v31
  %v102 = vpop.f32.mrb[0].mxu0
  %v103 = vadd.f32 0.0, %v102
  %v104 = vpop.f32.mrb[0].mxu0
  %105 = vmatprep.mubr.f32.mxu0 0.0
  %106 = vmatmul.mubr.f32.gmra.mrb[0].mxu0 %v34
  %v107 = vpop.f32.mrb[0].mxu0
  %v108 = vadd.f32 0.0, %v107
  %v109 = vpop.f32.mrb[0].mxu0
  %110 = vdwg.mxu0
  %v111 = vadd.f32 %v21, %v103
  %v112 = vadd.f32 %v22, %v108
  %vm113 = vcmask 523264
  %114 = vst.msk [vmem:[#allocation2] sm:$0xff] %vm113, %v111
  %115 = vst.msk [vmem:[#allocation2 + $0x8] sm:$0xff] %vm113, %v112
  // Predicated region
  $region18: #{gpt_forward.23} parent=0 // pred_check
    %p116 = pneg %p14
  $region19: #{gpt_forward.23} parent=0 // pred_check_branch
    %118 = sbr.rel (%p116) target = $region21
  $region20: #{gpt_forward.23} parent=0 // pred_region
    %v119 = vld [vmem:[#allocation2] sm:$0xff]
    %v120 = vld [vmem:[#allocation2 + $0x8] sm:$0xff]
    %v121 = vld [vmem:[%s2] sm:$0x1]
    %v123 = vlaneseq
    %v124 = vshrl.u32 %v123, 7
    %v125 = vsub.s32 0, %v124
    %v126 = vrot.slane %v121, %v125
    %v128 = vadd.f32 %v119, %v126
    %v129 = vadd.f32 %v120, %v126
    %130 = vst.msk [vmem:[%s3] sm:$0xff] %vm113, %v128
    %131 = vst.msk [vmem:[%s3 + $0x8] sm:$0xff] %vm113, %v129
  $region21: #{gpt_forward.23} parent=0 // pred_fallthru
    _
  // Predicated region
  $region22: #{gpt_forward.23} parent=0 // pred_check
    _
  $region23: #{gpt_forward.23} parent=0 // pred_check_branch
    %133 = sbr.rel (0) target = $region25
  $region24: #{gpt_forward.23} parent=0 // pred_region
    _
  $region25: #{gpt_forward.23} parent=0 // pred_fallthru
    _
  // Predicated region
  $region26: #{gpt_forward.23} parent=0 // pred_check
    _
  $region27: #{gpt_forward.23} parent=0 // pred_check_branch
    %135 = sbr.rel (0) target = $region29
  $region28: #{gpt_forward.23} parent=0 // pred_region
    _
  $region29: #{gpt_forward.23} parent=0 // pred_fallthru
    _

// kernel: gpt_forward.24
$region0: #{gpt_forward.24}
  #allocation0 [shape = 'u32[]', space=smem, size = 0x4, offset = 0x4, fixed_abs, tag = 'smem constant byte address 0x4 - core index']
  #allocation1 [shape = 'u32[144,128]{1,0:T(1,128)}', space=vmem, size = 0x12000, scoped, tag = 'internal scratch']
  %s0 = inlined_call_operand.vmem [shape: f32[8,2,32], index: 0, kind: input, shape index: {}]
  %s1 = inlined_call_operand.vmem [shape: f32[8,2,64], index: 1, kind: input, shape index: {}]
  %s2 = inlined_call_operand.vmem [shape: f32[8,2,32], index: 2, kind: output, shape index: {}]
  %s3 = sld [smem:[#allocation0]]
  $region41: #{gpt_forward.24} parent=0
    _
  %s5 = ssub.s32 1, %s3
  %s6 = scalar_select 0, %s5, %s3
  loop: start=0, step=1, limit=10
  $region2: #{gpt_forward.24} parent=0 // loop_pre_header
    _
  $region3: #{gpt_forward.24} parent=0 // loop_header
    %s8 = sphi 0, %s12
    %p9 = scmp.ge.s32.totalorder %s8, 10
    %s18 = sphi 0, %s20
    %s21 = sphi 0, %s18
    %s22 = sphi 0, %s21
    %s38 = sphi 0, %s22
    %s44 = sphi 0, %s46
    %s47 = sphi 0, %s44
    %s48 = sphi 0, %s47
    %s64 = sphi 0, %s48
    %s70 = sphi 0, %s72
    %s73 = sphi 0, %s70
    %s74 = sphi 0, %s73
    %s90 = sphi 0, %s74
  $region4: #{gpt_forward.24} parent=0 // loop_header_branch
    %11 = sbr.rel (%p9) target = $region8
  $region5: #{gpt_forward.24} parent=0 // loop_body
    %s13 = ssub.s32 %s8, 1
    %s14 = ssub.s32 %s8, 2
    %s15 = sadd.s32 %s8, 1
    %s16 = ssub.s32 %s8, %s15
    %p17 = scmp.eq.s32.totalorder %s16, 0
    %s19 = sadd.s32 %s18, 1
    %s20 = scalar_select %p17, %s18, %s19
    %p23 = pneg %p17
    %p24 = scmp.eq.s32.totalorder %s8, 7
    %p25 = por %p23, %p24
    %p26 = scmp.ne.s32.totalorder %s18, %s21
    %p27 = scmp.eq.s32.totalorder %s8, 0
    %p28 = por %p26, %p27
    %p29 = scmp.ne.s32.totalorder %s18, %s21
    %p30 = scmp.eq.s32.totalorder %s13, 7
    %p31 = por %p29, %p30
    %p32 = scmp.ne.s32.totalorder %s21, %s22
    %p33 = scmp.eq.s32.totalorder %s13, 0
    %p34 = por %p32, %p33
    %p35 = scmp.ne.s32.totalorder %s21, %s22
    %p36 = scmp.eq.s32.totalorder %s14, 7
    %p37 = por %p35, %p36
    %p39 = scmp.ne.s32.totalorder %s22, %s38
    %p40 = scmp.eq.s32.totalorder %s14, 0
    %p41 = por %p39, %p40
    %s42 = ssub.s32 %s8, %s15
    %p43 = scmp.eq.s32.totalorder %s42, 0
    %s45 = sadd.s32 %s44, 1
    %s46 = scalar_select %p43, %s44, %s45
    %p49 = pneg %p43
    %p50 = scmp.eq.s32.totalorder %s8, 7
    %p51 = por %p49, %p50
    %p52 = scmp.ne.s32.totalorder %s44, %s47
    %p53 = scmp.eq.s32.totalorder %s8, 0
    %p54 = por %p52, %p53
    %p55 = scmp.ne.s32.totalorder %s44, %s47
    %p56 = scmp.eq.s32.totalorder %s13, 7
    %p57 = por %p55, %p56
    %p58 = scmp.ne.s32.totalorder %s47, %s48
    %p59 = scmp.eq.s32.totalorder %s13, 0
    %p60 = por %p58, %p59
    %p61 = scmp.ne.s32.totalorder %s47, %s48
    %p62 = scmp.eq.s32.totalorder %s14, 7
    %p63 = por %p61, %p62
    %p65 = scmp.ne.s32.totalorder %s48, %s64
    %p66 = scmp.eq.s32.totalorder %s14, 0
    %p67 = por %p65, %p66
    %s68 = ssub.s32 %s8, %s15
    %p69 = scmp.eq.s32.totalorder %s68, 0
    %s71 = sadd.s32 %s70, 1
    %s72 = scalar_select %p69, %s70, %s71
    %p75 = pneg %p69
    %p76 = scmp.eq.s32.totalorder %s8, 7
    %p77 = por %p75, %p76
    %p78 = scmp.ne.s32.totalorder %s70, %s73
    %p79 = scmp.eq.s32.totalorder %s8, 0
    %p80 = por %p78, %p79
    %p81 = scmp.ne.s32.totalorder %s70, %s73
    %p82 = scmp.eq.s32.totalorder %s13, 7
    %p83 = por %p81, %p82
    %p84 = scmp.ne.s32.totalorder %s73, %s74
    %p85 = scmp.eq.s32.totalorder %s13, 0
    %p86 = por %p84, %p85
    %p87 = scmp.ne.s32.totalorder %s73, %s74
    %p88 = scmp.eq.s32.totalorder %s14, 7
    %p89 = por %p87, %p88
    %p91 = scmp.ne.s32.totalorder %s74, %s90
    %p92 = scmp.eq.s32.totalorder %s14, 0
    %p93 = por %p91, %p92
    %p94 = scmp.le.s32.totalorder 1, %s8
    %p95 = scmp.lt.s32.totalorder %s8, 9
    %p96 = pnand %p94, %p95
    %p97 = pneg %p96
    // Predicated region
    $region9: #{gpt_forward.24} parent=5 // pred_check
      _
    $region10: #{gpt_forward.24} parent=5 // pred_check_branch
      %99 = sbr.rel (%p96) target = $region12
    $region11: #{gpt_forward.24} parent=5 // pred_region
      %s100 = ssub.s32 %s8, 1
    $region12: #{gpt_forward.24} parent=5 // pred_fallthru
      _
    %p101 = scmp.lt.s32.totalorder %s8, 8
    // Predicated region
    $region13: #{gpt_forward.24} parent=5 // pred_check
      %p102 = pneg %p101
    $region14: #{gpt_forward.24} parent=5 // pred_check_branch
      %104 = sbr.rel (%p102) target = $region16
    $region15: #{gpt_forward.24} parent=5 // pred_region
      // Predicated region
      $region17: #{gpt_forward.24} parent=15 // pred_check
        %p105 = pneg %p28
      $region18: #{gpt_forward.24} parent=15 // pred_check_branch
        %107 = sbr.rel (%p105) target = $region20
      $region19: #{gpt_forward.24} parent=15 // pred_region
        %p108 = scmp.lt.s32.totalorder %s8, 7
        %s109 = scalar_select %p108, %s8, 7
        %s110 = smul.addr %s109, 2
        %s111 = scalar_lea.vmem %s0, %s110
      $region20: #{gpt_forward.24} parent=15 // pred_fallthru
        _
      // Predicated region
      $region21: #{gpt_forward.24} parent=15 // pred_check
        %p112 = pneg %p54
      $region22: #{gpt_forward.24} parent=15 // pred_check_branch
        %114 = sbr.rel (%p112) target = $region24
      $region23: #{gpt_forward.24} parent=15 // pred_region
        %p115 = scmp.lt.s32.totalorder %s8, 7
        %s116 = scalar_select %p115, %s8, 7
        %s117 = smul.addr %s116, 2
        %s118 = scalar_lea.vmem %s1, %s117
      $region24: #{gpt_forward.24} parent=15 // pred_fallthru
        _
    $region16: #{gpt_forward.24} parent=5 // pred_fallthru
      _
    %p119 = scmp.le.s32.totalorder 1, %s8
    %p120 = scmp.lt.s32.totalorder %s8, 9
    %p121 = pnand %p119, %p120
    %p122 = pneg %p121
    // Predicated region
    $region25: #{gpt_forward.24} parent=5 // pred_check
      _
    $region26: #{gpt_forward.24} parent=5 // pred_check_branch
      %124 = sbr.rel (%p121) target = $region28
    $region27: #{gpt_forward.24} parent=5 // pred_region
      %s125 = ssub.s32 %s8, 1
      %p126 = scmp.lt.s32.totalorder %s13, 7
      %s127 = scalar_select %p126, %s13, 7
      %s128 = smul.addr %s127, 2
      %s129 = scalar_lea.vmem %s0, %s128
      %p130 = pneg %p34
      %p131 = pneg %p31
      %p132 = scmp.lt.s32.totalorder %s13, 7
      %s133 = scalar_select %p132, %s13, 7
      %s134 = smul.addr %s133, 2
      %s135 = scalar_lea.vmem %s1, %s134
      %p136 = pneg %p60
      %p137 = pneg %p57
      %p138 = pneg %p86
      %p139 = pneg %p83
      %p140 = scmp.lt.s32.totalorder %s13, 7
      %s141 = scalar_select %p140, %s13, 7
      %s142 = smul.addr %s141, 2
      %s143 = scalar_lea.vmem %s2, %s142
      %p144 = scmp.lt.s32.totalorder %s13, 7
      %s145 = scalar_select %p144, %s13, 7
      %s146 = smul.addr %s145, 2
      %s147 = scalar_lea.vmem %s0, %s146
      %p148 = scmp.lt.s32.totalorder %s13, 7
      %s149 = scalar_select %p148, %s13, 7
      %s150 = smul.addr %s149, 2
      %s151 = scalar_lea.vmem %s1, %s150
      %p152 = scmp.lt.s32.totalorder %s13, 7
      %s153 = scalar_select %p152, %s13, 7
      %s154 = smul.addr %s153, 2
      %s155 = scalar_lea.vmem %s2, %s154
      %v156 = vld [vmem:[%s151] sm:$0x3]
      %v157 = vld [vmem:[%s147] sm:$0x3]
      %v158 = vmul.f32 %v157, 0.35355338
      %vm159 = vcmask 64512
      %v161 = vsel %vm159, %v158, 0
      %v164 = vsel %vm159, %v156, 0
      %166 = vmatprep.subr.mxu0 0.0
      %167 = vmatpush1.xpose.msra.mxu0 %v164
      %168 = vmatprep.subr.mxu0 0.0
      %169 = vmatpush1.xpose.msra.mxu0 0.0
      %170 = vmatprep.subr.mxu0 0.0
      %171 = vmatpush1.xpose.msra.mxu0 0.0
      %172 = vmatprep.subr.mxu0 0.0
      %173 = vmatpush1.xpose.msra.mxu0 0.0
      %174 = vmatprep.subr.mxu0 0.0
      %175 = vmatpush1.xpose.msra.mxu0 0.0
      %176 = vmatprep.subr.mxu0 0.0
      %177 = vmatpush1.xpose.msra.mxu0 0.0
      %178 = vmatprep.subr.mxu0 0.0
      %179 = vmatpush1.xpose.msra.mxu0 0.0
      %180 = vmatprep.subr.mxu0 0.0
      %181 = vmatpush1.xpose.msra.mxu0 0.0
      %182 = vmatprep.subr.mxu0 0.0
      %183 = vmatpush1.xpose.msra.mxu0 0.0
      %184 = vmatprep.subr.mxu0 0.0
      %185 = vmatpush1.xpose.msra.mxu0 0.0
      %186 = vmatprep.subr.mxu0 0.0
      %187 = vmatpush1.xpose.msra.mxu0 0.0
      %188 = vmatprep.subr.mxu0 0.0
      %189 = vmatpush1.xpose.msra.mxu0 0.0
      %190 = vmatprep.subr.mxu0 0.0
      %191 = vmatpush1.xpose.msra.mxu0 0.0
      %192 = vmatprep.subr.mxu0 0.0
      %193 = vmatpush1.xpose.msra.mxu0 0.0
      %194 = vmatprep.subr.mxu0 0.0
      %195 = vmatpush1.xpose.msra.mxu0 0.0
      %196 = vmatprep.subr.mxu0 0.0
      %197 = vmatpush1.xpose.msra.mxu0 0.0
      %198 = vmatprep.subr.mxu0 0.0
      %199 = vmatpush1.xpose.msra.mxu0 0.0
      %200 = vmatprep.subr.mxu0 0.0
      %201 = vmatpush1.xpose.msra.mxu0 0.0
      %202 = vmatprep.subr.mxu0 0.0
      %203 = vmatpush1.xpose.msra.mxu0 0.0
      %204 = vmatprep.subr.mxu0 0.0
      %205 = vmatpush1.xpose.msra.mxu0 0.0
      %206 = vmatprep.subr.mxu0 0.0
      %207 = vmatpush1.xpose.msra.mxu0 0.0
      %208 = vmatprep.subr.mxu0 0.0
      %209 = vmatpush1.xpose.msra.mxu0 0.0
      %210 = vmatprep.subr.mxu0 0.0
      %211 = vmatpush1.xpose.msra.mxu0 0.0
      %212 = vmatprep.subr.mxu0 0.0
      %213 = vmatpush1.xpose.msra.mxu0 0.0
      %214 = vmatprep.subr.mxu0 0.0
      %215 = vmatpush1.xpose.msra.mxu0 0.0
      %216 = vmatprep.subr.mxu0 0.0
      %217 = vmatpush1.xpose.msra.mxu0 0.0
      %218 = vmatprep.subr.mxu0 0.0
      %219 = vmatpush1.xpose.msra.mxu0 0.0
      %220 = vmatprep.subr.mxu0 0.0
      %221 = vmatpush1.xpose.msra.mxu0 0.0
      %222 = vmatprep.subr.mxu0 0.0
      %223 = vmatpush1.xpose.msra.mxu0 0.0
      %224 = vmatprep.subr.mxu0 0.0
      %225 = vmatpush1.xpose.msra.mxu0 0.0
      %226 = vmatprep.subr.mxu0 0.0
      %227 = vmatpush1.xpose.msra.mxu0 0.0
      %228 = vmatprep.subr.mxu0 0.0
      %229 = vmatpush1.xpose.msra.mxu0 0.0
      %230 = vmatprep.mubr.f32.mxu0 0.0
      %231 = vmatmul.mubr.f32.gmra.mrb[0].mxu0 %v161
      %v232 = vpop.f32.mrb[0].mxu0
      %v233 = vadd.f32 0.0, %v232
      %v234 = vpop.f32.mrb[0].mxu0
      %235 = vdwg.mxu0
      %vm236 = vcmask 9216
      %v237 = vsel %vm236, %v233, -inf
      %238 = vmax.xlane.f32.xlu0 %v237
      %v239 = vpop.xlane.xlu0 %238
      %v240 = vsub.f32 %v233, %v239
      %v241 = vmul.f32 %v240, 1.442695
      %v242 = vpow.pop %v241
      %v243 = vsel %vm236, %v242, 0.0
      %244 = vadd.xlane.f32.xlu0 %v243
      %v245 = vpop.xlane.xlu0 %244
      %v246 = vrcp.pop %v245
      %v247 = vmul.f32 %v242, %v246
      %248 = vrot.lane.b32.xlu0 %v156, 96
      %v249 = vpop.permute.xlu0 %248
      %vm250 = vcmask 15360
      %v252 = vsel %vm250, %v247, 0
      %vm254 = vcmask 1041408
      %v255 = vsel %vm254, %v249, 0
      %257 = vmatprep.subr.mxu0 0.0
      %258 = vmatpush1.msra.mxu0 %v255
      %259 = vmatprep.subr.mxu0 0.0
      %260 = vmatpush1.msra.mxu0 0.0
      %261 = vmatprep.subr.mxu0 0.0
      %262 = vmatpush1.msra.mxu0 0.0
      %263 = vmatprep.subr.mxu0 0.0
      %264 = vmatpush1.msra.mxu0 0.0
      %265 = vmatprep.subr.mxu0 0.0
      %266 = vmatpush1.msra.mxu0 0.0
      %267 = vmatprep.subr.mxu0 0.0
      %268 = vmatpush1.msra.mxu0 0.0
      %269 = vmatprep.subr.mxu0 0.0
      %270 = vmatpush1.msra.mxu0 0.0
      %271 = vmatprep.subr.mxu0 0.0
      %272 = vmatpush1.msra.mxu0 0.0
      %273 = vmatprep.subr.mxu0 0.0
      %274 = vmatpush1.msra.mxu0 0.0
      %275 = vmatprep.subr.mxu0 0.0
      %276 = vmatpush1.msra.mxu0 0.0
      %277 = vmatprep.subr.mxu0 0.0
      %278 = vmatpush1.msra.mxu0 0.0
      %279 = vmatprep.subr.mxu0 0.0
      %280 = vmatpush1.msra.mxu0 0.0
      %281 = vmatprep.subr.mxu0 0.0
      %282 = vmatpush1.msra.mxu0 0.0
      %283 = vmatprep.subr.mxu0 0.0
      %284 = vmatpush1.msra.mxu0 0.0
      %285 = vmatprep.subr.mxu0 0.0
      %286 = vmatpush1.msra.mxu0 0.0
      %287 = vmatprep.subr.mxu0 0.0
      %288 = vmatpush1.msra.mxu0 0.0
      %289 = vmatprep.subr.mxu0 0.0
      %290 = vmatpush1.msra.mxu0 0.0
      %291 = vmatprep.subr.mxu0 0.0
      %292 = vmatpush1.msra.mxu0 0.0
      %293 = vmatprep.subr.mxu0 0.0
      %294 = vmatpush1.msra.mxu0 0.0
      %295 = vmatprep.subr.mxu0 0.0
      %296 = vmatpush1.msra.mxu0 0.0
      %297 = vmatprep.subr.mxu0 0.0
      %298 = vmatpush1.msra.mxu0 0.0
      %299 = vmatprep.subr.mxu0 0.0
      %300 = vmatpush1.msra.mxu0 0.0
      %301 = vmatprep.subr.mxu0 0.0
      %302 = vmatpush1.msra.mxu0 0.0
      %303 = vmatprep.subr.mxu0 0.0
      %304 = vmatpush1.msra.mxu0 0.0
      %305 = vmatprep.subr.mxu0 0.0
      %306 = vmatpush1.msra.mxu0 0.0
      %307 = vmatprep.subr.mxu0 0.0
      %308 = vmatpush1.msra.mxu0 0.0
      %309 = vmatprep.subr.mxu0 0.0
      %310 = vmatpush1.msra.mxu0 0.0
      %311 = vmatprep.subr.mxu0 0.0
      %312 = vmatpush1.msra.mxu0 0.0
      %313 = vmatprep.subr.mxu0 0.0
      %314 = vmatpush1.msra.mxu0 0.0
      %315 = vmatprep.subr.mxu0 0.0
      %316 = vmatpush1.msra.mxu0 0.0
      %317 = vmatprep.subr.mxu0 0.0
      %318 = vmatpush1.msra.mxu0 0.0
      %319 = vmatprep.subr.mxu0 0.0
      %320 = vmatpush1.msra.mxu0 0.0
      %321 = vmatprep.mubr.f32.mxu0 0.0
      %322 = vmatmul.mubr.f32.gmra.mrb[0].mxu0 %v252
      %v323 = vpop.f32.mrb[0].mxu0
      %v324 = vadd.f32 0.0, %v323
      %v325 = vpop.f32.mrb[0].mxu0
      %326 = vdwg.mxu0
      %327 = vrot.lane.b32.xlu0 %v158, 120
      %v328 = vpop.permute.xlu0 %327
      %329 = vrot.lane.b32.xlu0 %v156, 120
      %v330 = vpop.permute.xlu0 %329
      %v331 = vsel %vm159, %v328, 0
      %v333 = vsel %vm159, %v330, 0
      %335 = vmatprep.subr.mxu0 0.0
      %336 = vmatpush1.xpose.msra.mxu0 %v333
      %337 = vmatprep.subr.mxu0 0.0
      %338 = vmatpush1.xpose.msra.mxu0 0.0
      %339 = vmatprep.subr.mxu0 0.0
      %340 = vmatpush1.xpose.msra.mxu0 0.0
      %341 = vmatprep.subr.mxu0 0.0
      %342 = vmatpush1.xpose.msra.mxu0 0.0
      %343 = vmatprep.subr.mxu0 0.0
      %344 = vmatpush1.xpose.msra.mxu0 0.0
      %345 = vmatprep.subr.mxu0 0.0
      %346 = vmatpush1.xpose.msra.mxu0 0.0
      %347 = vmatprep.subr.mxu0 0.0
      %348 = vmatpush1.xpose.msra.mxu0 0.0
      %349 = vmatprep.subr.mxu0 0.0
      %350 = vmatpush1.xpose.msra.mxu0 0.0
      %351 = vmatprep.subr.mxu0 0.0
      %352 = vmatpush1.xpose.msra.mxu0 0.0
      %353 = vmatprep.subr.mxu0 0.0
      %354 = vmatpush1.xpose.msra.mxu0 0.0
      %355 = vmatprep.subr.mxu0 0.0
      %356 = vmatpush1.xpose.msra.mxu0 0.0
      %357 = vmatprep.subr.mxu0 0.0
      %358 = vmatpush1.xpose.msra.mxu0 0.0
      %359 = vmatprep.subr.mxu0 0.0
      %360 = vmatpush1.xpose.msra.mxu0 0.0
      %361 = vmatprep.subr.mxu0 0.0
      %362 = vmatpush1.xpose.msra.mxu0 0.0
      %363 = vmatprep.subr.mxu0 0.0
      %364 = vmatpush1.xpose.msra.mxu0 0.0
      %365 = vmatprep.subr.mxu0 0.0
      %366 = vmatpush1.xpose.msra.mxu0 0.0
      %367 = vmatprep.subr.mxu0 0.0
      %368 = vmatpush1.xpose.msra.mxu0 0.0
      %369 = vmatprep.subr.mxu0 0.0
      %370 = vmatpush1.xpose.msra.mxu0 0.0
      %371 = vmatprep.subr.mxu0 0.0
      %372 = vmatpush1.xpose.msra.mxu0 0.0
      %373 = vmatprep.subr.mxu0 0.0
      %374 = vmatpush1.xpose.msra.mxu0 0.0
      %375 = vmatprep.subr.mxu0 0.0
      %376 = vmatpush1.xpose.msra.mxu0 0.0
      %377 = vmatprep.subr.mxu0 0.0
      %378 = vmatpush1.xpose.msra.mxu0 0.0
      %379 = vmatprep.subr.mxu0 0.0
      %380 = vmatpush1.xpose.msra.mxu0 0.0
      %381 = vmatprep.subr.mxu0 0.0
      %382 = vmatpush1.xpose.msra.mxu0 0.0
      %383 = vmatprep.subr.mxu0 0.0
      %384 = vmatpush1.xpose.msra.mxu0 0.0
      %385 = vmatprep.subr.mxu0 0.0
      %386 = vmatpush1.xpose.msra.mxu0 0.0
      %387 = vmatprep.subr.mxu0 0.0
      %388 = vmatpush1.xpose.msra.mxu0 0.0
      %389 = vmatprep.subr.mxu0 0.0
      %390 = vmatpush1.xpose.msra.mxu0 0.0
      %391 = vmatprep.subr.mxu0 0.0
      %392 = vmatpush1.xpose.msra.mxu0 0.0
      %393 = vmatprep.subr.mxu0 0.0
      %394 = vmatpush1.xpose.msra.mxu0 0.0
      %395 = vmatprep.subr.mxu0 0.0
      %396 = vmatpush1.xpose.msra.mxu0 0.0
      %397 = vmatprep.subr.mxu0 0.0
      %398 = vmatpush1.xpose.msra.mxu0 0.0
      %399 = vmatprep.mubr.f32.mxu0 0.0
      %400 = vmatmul.mubr.f32.gmra.mrb[0].mxu0 %v331
      %v401 = vpop.f32.mrb[0].mxu0
      %v402 = vadd.f32 0.0, %v401
      %v403 = vpop.f32.mrb[0].mxu0
      %404 = vdwg.mxu0
      %v405 = vsel %vm236, %v402, -inf
      %406 = vmax.xlane.f32.xlu0 %v405
      %v407 = vpop.xlane.xlu0 %406
      %v408 = vsub.f32 %v402, %v407
      %v409 = vmul.f32 %v408, 1.442695
      %v410 = vpow.pop %v409
      %v411 = vsel %vm236, %v410, 0.0
      %412 = vadd.xlane.f32.xlu0 %v411
      %v413 = vpop.xlane.xlu0 %412
      %v414 = vrcp.pop %v413
      %v415 = vmul.f32 %v410, %v414
      %416 = vrot.lane.b32.xlu0 %v156, 88
      %v417 = vpop.permute.xlu0 %416
      %v419 = vsel %vm250, %v415, 0
      %v421 = vsel %vm254, %v417, 0
      %423 = vmatprep.subr.mxu0 0.0
      %424 = vmatpush1.msra.mxu0 %v421
      %425 = vmatprep.subr.mxu0 0.0
      %426 = vmatpush1.msra.mxu0 0.0
      %427 = vmatprep.subr.mxu0 0.0
      %428 = vmatpush1.msra.mxu0 0.0
      %429 = vmatprep.subr.mxu0 0.0
      %430 = vmatpush1.msra.mxu0 0.0
      %431 = vmatprep.subr.mxu0 0.0
      %432 = vmatpush1.msra.mxu0 0.0
      %433 = vmatprep.subr.mxu0 0.0
      %434 = vmatpush1.msra.mxu0 0.0
      %435 = vmatprep.subr.mxu0 0.0
      %436 = vmatpush1.msra.mxu0 0.0
      %437 = vmatprep.subr.mxu0 0.0
      %438 = vmatpush1.msra.mxu0 0.0
      %439 = vmatprep.subr.mxu0 0.0
      %440 = vmatpush1.msra.mxu0 0.0
      %441 = vmatprep.subr.mxu0 0.0
      %442 = vmatpush1.msra.mxu0 0.0
      %443 = vmatprep.subr.mxu0 0.0
      %444 = vmatpush1.msra.mxu0 0.0
      %445 = vmatprep.subr.mxu0 0.0
      %446 = vmatpush1.msra.mxu0 0.0
      %447 = vmatprep.subr.mxu0 0.0
      %448 = vmatpush1.msra.mxu0 0.0
      %449 = vmatprep.subr.mxu0 0.0
      %450 = vmatpush1.msra.mxu0 0.0
      %451 = vmatprep.subr.mxu0 0.0
      %452 = vmatpush1.msra.mxu0 0.0
      %453 = vmatprep.subr.mxu0 0.0
      %454 = vmatpush1.msra.mxu0 0.0
      %455 = vmatprep.subr.mxu0 0.0
      %456 = vmatpush1.msra.mxu0 0.0
      %457 = vmatprep.subr.mxu0 0.0
      %458 = vmatpush1.msra.mxu0 0.0
      %459 = vmatprep.subr.mxu0 0.0
      %460 = vmatpush1.msra.mxu0 0.0
      %461 = vmatprep.subr.mxu0 0.0
      %462 = vmatpush1.msra.mxu0 0.0
      %463 = vmatprep.subr.mxu0 0.0
      %464 = vmatpush1.msra.mxu0 0.0
      %465 = vmatprep.subr.mxu0 0.0
      %466 = vmatpush1.msra.mxu0 0.0
      %467 = vmatprep.subr.mxu0 0.0
      %468 = vmatpush1.msra.mxu0 0.0
      %469 = vmatprep.subr.mxu0 0.0
      %470 = vmatpush1.msra.mxu0 0.0
      %471 = vmatprep.subr.mxu0 0.0
      %472 = vmatpush1.msra.mxu0 0.0
      %473 = vmatprep.subr.mxu0 0.0
      %474 = vmatpush1.msra.mxu0 0.0
      %475 = vmatprep.subr.mxu0 0.0
      %476 = vmatpush1.msra.mxu0 0.0
      %477 = vmatprep.subr.mxu0 0.0
      %478 = vmatpush1.msra.mxu0 0.0
      %479 = vmatprep.subr.mxu0 0.0
      %480 = vmatpush1.msra.mxu0 0.0
      %481 = vmatprep.subr.mxu0 0.0
      %482 = vmatpush1.msra.mxu0 0.0
      %483 = vmatprep.subr.mxu0 0.0
      %484 = vmatpush1.msra.mxu0 0.0
      %485 = vmatprep.subr.mxu0 0.0
      %486 = vmatpush1.msra.mxu0 0.0
      %487 = vmatprep.mubr.f32.mxu0 0.0
      %488 = vmatmul.mubr.f32.gmra.mrb[0].mxu0 %v419
      %v489 = vpop.f32.mrb[0].mxu0
      %v490 = vadd.f32 0.0, %v489
      %v491 = vpop.f32.mrb[0].mxu0
      %492 = vdwg.mxu0
      %493 = vrot.lane.b32.xlu0 %v158, 112
      %v494 = vpop.permute.xlu0 %493
      %495 = vrot.lane.b32.xlu0 %v156, 112
      %v496 = vpop.permute.xlu0 %495
      %v497 = vsel %vm159, %v494, 0
      %v499 = vsel %vm159, %v496, 0
      %501 = vmatprep.subr.mxu0 0.0
      %502 = vmatpush1.xpose.msra.mxu0 %v499
      %503 = vmatprep.subr.mxu0 0.0
      %504 = vmatpush1.xpose.msra.mxu0 0.0
      %505 = vmatprep.subr.mxu0 0.0
      %506 = vmatpush1.xpose.msra.mxu0 0.0
      %507 = vmatprep.subr.mxu0 0.0
      %508 = vmatpush1.xpose.msra.mxu0 0.0
      %509 = vmatprep.subr.mxu0 0.0
      %510 = vmatpush1.xpose.msra.mxu0 0.0
      %511 = vmatprep.subr.mxu0 0.0
      %512 = vmatpush1.xpose.msra.mxu0 0.0
      %513 = vmatprep.subr.mxu0 0.0
      %514 = vmatpush1.xpose.msra.mxu0 0.0
      %515 = vmatprep.subr.mxu0 0.0
      %516 = vmatpush1.xpose.msra.mxu0 0.0
      %517 = vmatprep.subr.mxu0 0.0
      %518 = vmatpush1.xpose.msra.mxu0 0.0
      %519 = vmatprep.subr.mxu0 0.0
      %520 = vmatpush1.xpose.msra.mxu0 0.0
      %521 = vmatprep.subr.mxu0 0.0
      %522 = vmatpush1.xpose.msra.mxu0 0.0
      %523 = vmatprep.subr.mxu0 0.0
      %524 = vmatpush1.xpose.msra.mxu0 0.0
      %525 = vmatprep.subr.mxu0 0.0
      %526 = vmatpush1.xpose.msra.mxu0 0.0
      %527 = vmatprep.subr.mxu0 0.0
      %528 = vmatpush1.xpose.msra.mxu0 0.0
      %529 = vmatprep.subr.mxu0 0.0
      %530 = vmatpush1.xpose.msra.mxu0 0.0
      %531 = vmatprep.subr.mxu0 0.0
      %532 = vmatpush1.xpose.msra.mxu0 0.0
      %533 = vmatprep.subr.mxu0 0.0
      %534 = vmatpush1.xpose.msra.mxu0 0.0
      %535 = vmatprep.subr.mxu0 0.0
      %536 = vmatpush1.xpose.msra.mxu0 0.0
      %537 = vmatprep.subr.mxu0 0.0
      %538 = vmatpush1.xpose.msra.mxu0 0.0
      %539 = vmatprep.subr.mxu0 0.0
      %540 = vmatpush1.xpose.msra.mxu0 0.0
      %541 = vmatprep.subr.mxu0 0.0
      %542 = vmatpush1.xpose.msra.mxu0 0.0
      %543 = vmatprep.subr.mxu0 0.0
      %544 = vmatpush1.xpose.msra.mxu0 0.0
      %545 = vmatprep.subr.mxu0 0.0
      %546 = vmatpush1.xpose.msra.mxu0 0.0
      %547 = vmatprep.subr.mxu0 0.0
      %548 = vmatpush1.xpose.msra.mxu0 0.0
      %549 = vmatprep.subr.mxu0 0.0
      %550 = vmatpush1.xpose.msra.mxu0 0.0
      %551 = vmatprep.subr.mxu0 0.0
      %552 = vmatpush1.xpose.msra.mxu0 0.0
      %553 = vmatprep.subr.mxu0 0.0
      %554 = vmatpush1.xpose.msra.mxu0 0.0
      %555 = vmatprep.subr.mxu0 0.0
      %556 = vmatpush1.xpose.msra.mxu0 0.0
      %557 = vmatprep.subr.mxu0 0.0
      %558 = vmatpush1.xpose.msra.mxu0 0.0
      %559 = vmatprep.subr.mxu0 0.0
      %560 = vmatpush1.xpose.msra.mxu0 0.0
      %561 = vmatprep.subr.mxu0 0.0
      %562 = vmatpush1.xpose.msra.mxu0 0.0
      %563 = vmatprep.subr.mxu0 0.0
      %564 = vmatpush1.xpose.msra.mxu0 0.0
      %565 = vmatprep.mubr.f32.mxu0 0.0
      %566 = vmatmul.mubr.f32.gmra.mrb[0].mxu0 %v497
      %v567 = vpop.f32.mrb[0].mxu0
      %v568 = vadd.f32 0.0, %v567
      %v569 = vpop.f32.mrb[0].mxu0
      %570 = vdwg.mxu0
      %v571 = vsel %vm236, %v568, -inf
      %572 = vmax.xlane.f32.xlu0 %v571
      %v573 = vpop.xlane.xlu0 %572
      %v574 = vsub.f32 %v568, %v573
      %v575 = vmul.f32 %v574, 1.442695
      %v576 = vpow.pop %v575
      %v577 = vsel %vm236, %v576, 0.0
      %578 = vadd.xlane.f32.xlu0 %v577
      %v579 = vpop.xlane.xlu0 %578
      %v580 = vrcp.pop %v579
      %v581 = vmul.f32 %v576, %v580
      %582 = vrot.lane.b32.xlu0 %v156, 80
      %v583 = vpop.permute.xlu0 %582
      %v585 = vsel %vm250, %v581, 0
      %v587 = vsel %vm254, %v583, 0
      %589 = vmatprep.subr.mxu0 0.0
      %590 = vmatpush1.msra.mxu0 %v587
      %591 = vmatprep.subr.mxu0 0.0
      %592 = vmatpush1.msra.mxu0 0.0
      %593 = vmatprep.subr.mxu0 0.0
      %594 = vmatpush1.msra.mxu0 0.0
      %595 = vmatprep.subr.mxu0 0.0
      %596 = vmatpush1.msra.mxu0 0.0
      %597 = vmatprep.subr.mxu0 0.0
      %598 = vmatpush1.msra.mxu0 0.0
      %599 = vmatprep.subr.mxu0 0.0
      %600 = vmatpush1.msra.mxu0 0.0
      %601 = vmatprep.subr.mxu0 0.0
      %602 = vmatpush1.msra.mxu0 0.0
      %603 = vmatprep.subr.mxu0 0.0
      %604 = vmatpush1.msra.mxu0 0.0
      %605 = vmatprep.subr.mxu0 0.0
      %606 = vmatpush1.msra.mxu0 0.0
      %607 = vmatprep.subr.mxu0 0.0
      %608 = vmatpush1.msra.mxu0 0.0
      %609 = vmatprep.subr.mxu0 0.0
      %610 = vmatpush1.msra.mxu0 0.0
      %611 = vmatprep.subr.mxu0 0.0
      %612 = vmatpush1.msra.mxu0 0.0
      %613 = vmatprep.subr.mxu0 0.0
      %614 = vmatpush1.msra.mxu0 0.0
      %615 = vmatprep.subr.mxu0 0.0
      %616 = vmatpush1.msra.mxu0 0.0
      %617 = vmatprep.subr.mxu0 0.0
      %618 = vmatpush1.msra.mxu0 0.0
      %619 = vmatprep.subr.mxu0 0.0
      %620 = vmatpush1.msra.mxu0 0.0
      %621 = vmatprep.subr.mxu0 0.0
      %622 = vmatpush1.msra.mxu0 0.0
      %623 = vmatprep.subr.mxu0 0.0
      %624 = vmatpush1.msra.mxu0 0.0
      %625 = vmatprep.subr.mxu0 0.0
      %626 = vmatpush1.msra.mxu0 0.0
      %627 = vmatprep.subr.mxu0 0.0
      %628 = vmatpush1.msra.mxu0 0.0
      %629 = vmatprep.subr.mxu0 0.0
      %630 = vmatpush1.msra.mxu0 0.0
      %631 = vmatprep.subr.mxu0 0.0
      %632 = vmatpush1.msra.mxu0 0.0
      %633 = vmatprep.subr.mxu0 0.0
      %634 = vmatpush1.msra.mxu0 0.0
      %635 = vmatprep.subr.mxu0 0.0
      %636 = vmatpush1.msra.mxu0 0.0
      %637 = vmatprep.subr.mxu0 0.0
      %638 = vmatpush1.msra.mxu0 0.0
      %639 = vmatprep.subr.mxu0 0.0
      %640 = vmatpush1.msra.mxu0 0.0
      %641 = vmatprep.subr.mxu0 0.0
      %642 = vmatpush1.msra.mxu0 0.0
      %643 = vmatprep.subr.mxu0 0.0
      %644 = vmatpush1.msra.mxu0 0.0
      %645 = vmatprep.subr.mxu0 0.0
      %646 = vmatpush1.msra.mxu0 0.0
      %647 = vmatprep.subr.mxu0 0.0
      %648 = vmatpush1.msra.mxu0 0.0
      %649 = vmatprep.subr.mxu0 0.0
      %650 = vmatpush1.msra.mxu0 0.0
      %651 = vmatprep.subr.mxu0 0.0
      %652 = vmatpush1.msra.mxu0 0.0
      %653 = vmatprep.mubr.f32.mxu0 0.0
      %654 = vmatmul.mubr.f32.gmra.mrb[0].mxu0 %v585
      %v655 = vpop.f32.mrb[0].mxu0
      %v656 = vadd.f32 0.0, %v655
      %v657 = vpop.f32.mrb[0].mxu0
      %658 = vdwg.mxu0
      %659 = vrot.lane.b32.xlu0 %v158, 104
      %v660 = vpop.permute.xlu0 %659
      %661 = vrot.lane.b32.xlu0 %v156, 104
      %v662 = vpop.permute.xlu0 %661
      %v663 = vsel %vm159, %v660, 0
      %v665 = vsel %vm159, %v662, 0
      %667 = vmatprep.subr.mxu0 0.0
      %668 = vmatpush1.xpose.msra.mxu0 %v665
      %669 = vmatprep.subr.mxu0 0.0
      %670 = vmatpush1.xpose.msra.mxu0 0.0
      %671 = vmatprep.subr.mxu0 0.0
      %672 = vmatpush1.xpose.msra.mxu0 0.0
      %673 = vmatprep.subr.mxu0 0.0
      %674 = vmatpush1.xpose.msra.mxu0 0.0
      %675 = vmatprep.subr.mxu0 0.0
      %676 = vmatpush1.xpose.msra.mxu0 0.0
      %677 = vmatprep.subr.mxu0 0.0
      %678 = vmatpush1.xpose.msra.mxu0 0.0
      %679 = vmatprep.subr.mxu0 0.0
      %680 = vmatpush1.xpose.msra.mxu0 0.0
      %681 = vmatprep.subr.mxu0 0.0
      %682 = vmatpush1.xpose.msra.mxu0 0.0
      %683 = vmatprep.subr.mxu0 0.0
      %684 = vmatpush1.xpose.msra.mxu0 0.0
      %685 = vmatprep.subr.mxu0 0.0
      %686 = vmatpush1.xpose.msra.mxu0 0.0
      %687 = vmatprep.subr.mxu0 0.0
      %688 = vmatpush1.xpose.msra.mxu0 0.0
      %689 = vmatprep.subr.mxu0 0.0
      %690 = vmatpush1.xpose.msra.mxu0 0.0
      %691 = vmatprep.subr.mxu0 0.0
      %692 = vmatpush1.xpose.msra.mxu0 0.0
      %693 = vmatprep.subr.mxu0 0.0
      %694 = vmatpush1.xpose.msra.mxu0 0.0
      %695 = vmatprep.subr.mxu0 0.0
      %696 = vmatpush1.xpose.msra.mxu0 0.0
      %697 = vmatprep.subr.mxu0 0.0
      %698 = vmatpush1.xpose.msra.mxu0 0.0
      %699 = vmatprep.subr.mxu0 0.0
      %700 = vmatpush1.xpose.msra.mxu0 0.0
      %701 = vmatprep.subr.mxu0 0.0
      %702 = vmatpush1.xpose.msra.mxu0 0.0
      %703 = vmatprep.subr.mxu0 0.0
      %704 = vmatpush1.xpose.msra.mxu0 0.0
      %705 = vmatprep.subr.mxu0 0.0
      %706 = vmatpush1.xpose.msra.mxu0 0.0
      %707 = vmatprep.subr.mxu0 0.0
      %708 = vmatpush1.xpose.msra.mxu0 0.0
      %709 = vmatprep.subr.mxu0 0.0
      %710 = vmatpush1.xpose.msra.mxu0 0.0
      %711 = vmatprep.subr.mxu0 0.0
      %712 = vmatpush1.xpose.msra.mxu0 0.0
      %713 = vmatprep.subr.mxu0 0.0
      %714 = vmatpush1.xpose.msra.mxu0 0.0
      %715 = vmatprep.subr.mxu0 0.0
      %716 = vmatpush1.xpose.msra.mxu0 0.0
      %717 = vmatprep.subr.mxu0 0.0
      %718 = vmatpush1.xpose.msra.mxu0 0.0
      %719 = vmatprep.subr.mxu0 0.0
      %720 = vmatpush1.xpose.msra.mxu0 0.0
      %721 = vmatprep.subr.mxu0 0.0
      %722 = vmatpush1.xpose.msra.mxu0 0.0
      %723 = vmatprep.subr.mxu0 0.0
      %724 = vmatpush1.xpose.msra.mxu0 0.0
      %725 = vmatprep.subr.mxu0 0.0
      %726 = vmatpush1.xpose.msra.mxu0 0.0
      %727 = vmatprep.subr.mxu0 0.0
      %728 = vmatpush1.xpose.msra.mxu0 0.0
      %729 = vmatprep.subr.mxu0 0.0
      %730 = vmatpush1.xpose.msra.mxu0 0.0
      %731 = vmatprep.mubr.f32.mxu0 0.0
      %732 = vmatmul.mubr.f32.gmra.mrb[0].mxu0 %v663
      %v733 = vpop.f32.mrb[0].mxu0
      %v734 = vadd.f32 0.0, %v733
      %v735 = vpop.f32.mrb[0].mxu0
      %736 = vdwg.mxu0
      %v737 = vsel %vm236, %v734, -inf
      %738 = vmax.xlane.f32.xlu0 %v737
      %v739 = vpop.xlane.xlu0 %738
      %v740 = vsub.f32 %v734, %v739
      %v741 = vmul.f32 %v740, 1.442695
      %v742 = vpow.pop %v741
      %v743 = vsel %vm236, %v742, 0.0
      %744 = vadd.xlane.f32.xlu0 %v743
      %v745 = vpop.xlane.xlu0 %744
      %v746 = vrcp.pop %v745
      %v747 = vmul.f32 %v742, %v746
      %748 = vrot.lane.b32.xlu0 %v156, 72
      %v749 = vpop.permute.xlu0 %748
      %v751 = vsel %vm250, %v747, 0
      %v753 = vsel %vm254, %v749, 0
      %755 = vmatprep.subr.mxu0 0.0
      %756 = vmatpush1.msra.mxu0 %v753
      %757 = vmatprep.subr.mxu0 0.0
      %758 = vmatpush1.msra.mxu0 0.0
      %759 = vmatprep.subr.mxu0 0.0
      %760 = vmatpush1.msra.mxu0 0.0
      %761 = vmatprep.subr.mxu0 0.0
      %762 = vmatpush1.msra.mxu0 0.0
      %763 = vmatprep.subr.mxu0 0.0
      %764 = vmatpush1.msra.mxu0 0.0
      %765 = vmatprep.subr.mxu0 0.0
      %766 = vmatpush1.msra.mxu0 0.0
      %767 = vmatprep.subr.mxu0 0.0
      %768 = vmatpush1.msra.mxu0 0.0
      %769 = vmatprep.subr.mxu0 0.0
      %770 = vmatpush1.msra.mxu0 0.0
      %771 = vmatprep.subr.mxu0 0.0
      %772 = vmatpush1.msra.mxu0 0.0
      %773 = vmatprep.subr.mxu0 0.0
      %774 = vmatpush1.msra.mxu0 0.0
      %775 = vmatprep.subr.mxu0 0.0
      %776 = vmatpush1.msra.mxu0 0.0
      %777 = vmatprep.subr.mxu0 0.0
      %778 = vmatpush1.msra.mxu0 0.0
      %779 = vmatprep.subr.mxu0 0.0
      %780 = vmatpush1.msra.mxu0 0.0
      %781 = vmatprep.subr.mxu0 0.0
      %782 = vmatpush1.msra.mxu0 0.0
      %783 = vmatprep.subr.mxu0 0.0
      %784 = vmatpush1.msra.mxu0 0.0
      %785 = vmatprep.subr.mxu0 0.0
      %786 = vmatpush1.msra.mxu0 0.0
      %787 = vmatprep.subr.mxu0 0.0
      %788 = vmatpush1.msra.mxu0 0.0
      %789 = vmatprep.subr.mxu0 0.0
      %790 = vmatpush1.msra.mxu0 0.0
      %791 = vmatprep.subr.mxu0 0.0
      %792 = vmatpush1.msra.mxu0 0.0
      %793 = vmatprep.subr.mxu0 0.0
      %794 = vmatpush1.msra.mxu0 0.0
      %795 = vmatprep.subr.mxu0 0.0
      %796 = vmatpush1.msra.mxu0 0.0
      %797 = vmatprep.subr.mxu0 0.0
      %798 = vmatpush1.msra.mxu0 0.0
      %799 = vmatprep.subr.mxu0 0.0
      %800 = vmatpush1.msra.mxu0 0.0
      %801 = vmatprep.subr.mxu0 0.0
      %802 = vmatpush1.msra.mxu0 0.0
      %803 = vmatprep.subr.mxu0 0.0
      %804 = vmatpush1.msra.mxu0 0.0
      %805 = vmatprep.subr.mxu0 0.0
      %806 = vmatpush1.msra.mxu0 0.0
      %807 = vmatprep.subr.mxu0 0.0
      %808 = vmatpush1.msra.mxu0 0.0
      %809 = vmatprep.subr.mxu0 0.0
      %810 = vmatpush1.msra.mxu0 0.0
      %811 = vmatprep.subr.mxu0 0.0
      %812 = vmatpush1.msra.mxu0 0.0
      %813 = vmatprep.subr.mxu0 0.0
      %814 = vmatpush1.msra.mxu0 0.0
      %815 = vmatprep.subr.mxu0 0.0
      %816 = vmatpush1.msra.mxu0 0.0
      %817 = vmatprep.subr.mxu0 0.0
      %818 = vmatpush1.msra.mxu0 0.0
      %819 = vmatprep.mubr.f32.mxu0 0.0
      %820 = vmatmul.mubr.f32.gmra.mrb[0].mxu0 %v751
      %v821 = vpop.f32.mrb[0].mxu0
      %v822 = vadd.f32 0.0, %v821
      %v823 = vpop.f32.mrb[0].mxu0
      %824 = vdwg.mxu0
      %826 = vrot.lane.b32.xlu0 %v490, 8
      %v827 = vpop.permute.xlu0 %826
      %830 = vrot.lane.b32.xlu0 %v656, 16
      %v831 = vpop.permute.xlu0 %830
      %834 = vrot.lane.b32.xlu0 %v822, 24
      %v835 = vpop.permute.xlu0 %834
      %v837 = vsel %vm159, %v324, %v827
      %vm838 = vcmask 130048
      %v839 = vsel %vm838, %v837, %v831
      %vm840 = vcmask 195584
      %v841 = vsel %vm840, %v839, %v835
      %vm842 = vcmask 254976
      %843 = vst.msk [vmem:[%s155] sm:$0x3] %vm842, %v841
      %p844 = scmp.lt.s32.totalorder %s13, 7
      %s845 = scalar_select %p844, %s13, 7
      %s846 = smul.addr %s845, 2
      %s847 = scalar_lea.vmem %s2, %s846
      // Predicated region
      $region29: #{gpt_forward.24} parent=27 // pred_check
        %p848 = pneg %p83
      $region30: #{gpt_forward.24} parent=27 // pred_check_branch
        %850 = sbr.rel (%p848) target = $region32
      $region31: #{gpt_forward.24} parent=27 // pred_region
        _
      $region32: #{gpt_forward.24} parent=27 // pred_fallthru
        _
    $region28: #{gpt_forward.24} parent=5 // pred_fallthru
      _
    %p851 = scmp.le.s32.totalorder 2, %s8
    // Predicated region
    $region33: #{gpt_forward.24} parent=5 // pred_check
      %p852 = pneg %p851
    $region34: #{gpt_forward.24} parent=5 // pred_check_branch
      %854 = sbr.rel (%p852) target = $region36
    $region35: #{gpt_forward.24} parent=5 // pred_region
      %s855 = ssub.s32 %s8, 2
      // Predicated region
      $region37: #{gpt_forward.24} parent=35 // pred_check
        %p856 = pneg %p89
      $region38: #{gpt_forward.24} parent=35 // pred_check_branch
        %858 = sbr.rel (%p856) target = $region40
      $region39: #{gpt_forward.24} parent=35 // pred_region
        %p859 = scmp.lt.s32.totalorder %s14, 7
        %s860 = scalar_select %p859, %s14, 7
        %s861 = smul.addr %s860, 2
        %s862 = scalar_lea.vmem %s2, %s861
      $region40: #{gpt_forward.24} parent=35 // pred_fallthru
        _
    $region36: #{gpt_forward.24} parent=5 // pred_fallthru
      _
  $region6: #{gpt_forward.24} parent=0 // loop_footer
    %s12 = sadd.s32 1, %s8
  $region7: #{gpt_forward.24} parent=0 // loop_footer_branch
    %7 = sbr.rel target = $region3
  $region8: #{gpt_forward.24} parent=0 // loop_exit
    _

// kernel: gpt_forward.35
$region0: #{gpt_forward.35}
  #allocation0 [shape = 'u32[]', space=smem, size = 0x4, offset = 0x4, fixed_abs, tag = 'smem constant byte address 0x4 - core index']
  #allocation1 [shape = 'u32[144,128]{1,0:T(1,128)}', space=vmem, size = 0x12000, scoped, tag = 'internal scratch']
  #allocation2 [shape = 'f32[16,128]{1,0:T(8,128)}', space=vmem, size = 0x2000, scoped, tag = 'scratch operand']
  %s0 = inlined_call_operand.vmem [shape: f32[16,32], index: 0, kind: input, shape index: {}]
  %s1 = inlined_call_operand.vmem [shape: f32[32,128], index: 1, kind: input, shape index: {}]
  %s2 = inlined_call_operand.vmem [shape: f32[1,128], index: 2, kind: input, shape index: {}]
  %s3 = inlined_call_operand.vmem [shape: f32[16,128], index: 3, kind: output, shape index: {}]
  %s4 = sld [smem:[#allocation0]]
  $region30: #{gpt_forward.35} parent=0
    _
  %s6 = ssub.s32 1, %s4
  %s7 = scalar_select 0, %s6, %s4
  // Predicated region
  $region2: #{gpt_forward.35} parent=0 // pred_check
    _
  $region3: #{gpt_forward.35} parent=0 // pred_check_branch
    %9 = sbr.rel (0) target = $region5
  $region4: #{gpt_forward.35} parent=0 // pred_region
    _
  $region5: #{gpt_forward.35} parent=0 // pred_fallthru
    _
  // Predicated region
  $region6: #{gpt_forward.35} parent=0 // pred_check
    _
  $region7: #{gpt_forward.35} parent=0 // pred_check_branch
    %11 = sbr.rel (0) target = $region9
  $region8: #{gpt_forward.35} parent=0 // pred_region
    _
  $region9: #{gpt_forward.35} parent=0 // pred_fallthru
    _
  // Predicated region
  $region10: #{gpt_forward.35} parent=0 // pred_check
    _
  $region11: #{gpt_forward.35} parent=0 // pred_check_branch
    %13 = sbr.rel (0) target = $region13
  $region12: #{gpt_forward.35} parent=0 // pred_region
    _
  $region13: #{gpt_forward.35} parent=0 // pred_fallthru
    _
  %p14 = scmp.eq.s32.totalorder 0, 0
  // Predicated region
  $region14: #{gpt_forward.35} parent=0 // pred_check
    %p15 = pneg %p14
  $region15: #{gpt_forward.35} parent=0 // pred_check_branch
    %17 = sbr.rel (%p15) target = $region17
  $region16: #{gpt_forward.35} parent=0 // pred_region
    %18 = vst [vmem:[#allocation2] sm:$0xff] 0.0
    %19 = vst [vmem:[#allocation2 + $0x8] sm:$0xff] 0.0
  $region17: #{gpt_forward.35} parent=0 // pred_fallthru
    _
  %v20 = vld [vmem:[#allocation2] sm:$0xff]
  %v21 = vld [vmem:[#allocation2 + $0x8] sm:$0xff]
  %v22 = vld [vmem:[%s0] sm:$0xff]
  %v23 = vld [vmem:[%s0 + $0x8] sm:$0xff]
  %v24 = vld [vmem:[%s1] sm:$0xff]
  %v25 = vld [vmem:[%s1 + $0x8] sm:$0xff]
  %v26 = vld [vmem:[%s1 + $0x10] sm:$0xff]
  %v27 = vld [vmem:[%s1 + $0x18] sm:$0xff]
  %vm28 = vcmask 261120
  %v30 = vsel %vm28, %v22, 0
  %v33 = vsel %vm28, %v23, 0
  %35 = vmatprep.subr.mxu0 0.0
  %36 = vmatpush1.msra.mxu0 %v24
  %37 = vmatprep.subr.mxu0 0.0
  %38 = vmatpush1.msra.mxu0 %v25
  %39 = vmatprep.subr.mxu0 0.0
  %40 = vmatpush1.msra.mxu0 %v26
  %41 = vmatprep.subr.mxu0 0.0
  %42 = vmatpush1.msra.mxu0 %v27
  %43 = vmatprep.subr.mxu0 0.0
  %44 = vmatpush1.msra.mxu0 0.0
  %45 = vmatprep.subr.mxu0 0.0
  %46 = vmatpush1.msra.mxu0 0.0
  %47 = vmatprep.subr.mxu0 0.0
  %48 = vmatpush1.msra.mxu0 0.0
  %49 = vmatprep.subr.mxu0 0.0
  %50 = vmatpush1.msra.mxu0 0.0
  %51 = vmatprep.subr.mxu0 0.0
  %52 = vmatpush1.msra.mxu0 0.0
  %53 = vmatprep.subr.mxu0 0.0
  %54 = vmatpush1.msra.mxu0 0.0
  %55 = vmatprep.subr.mxu0 0.0
  %56 = vmatpush1.msra.mxu0 0.0
  %57 = vmatprep.subr.mxu0 0.0
  %58 = vmatpush1.msra.mxu0 0.0
  %59 = vmatprep.subr.mxu0 0.0
  %60 = vmatpush1.msra.mxu0 0.0
  %61 = vmatprep.subr.mxu0 0.0
  %62 = vmatpush1.msra.mxu0 0.0
  %63 = vmatprep.subr.mxu0 0.0
  %64 = vmatpush1.msra.mxu0 0.0
  %65 = vmatprep.subr.mxu0 0.0
  %66 = vmatpush1.msra.mxu0 0.0
  %67 = vmatprep.subr.mxu0 0.0
  %68 = vmatpush1.msra.mxu0 0.0
  %69 = vmatprep.subr.mxu0 0.0
  %70 = vmatpush1.msra.mxu0 0.0
  %71 = vmatprep.subr.mxu0 0.0
  %72 = vmatpush1.msra.mxu0 0.0
  %73 = vmatprep.subr.mxu0 0.0
  %74 = vmatpush1.msra.mxu0 0.0
  %75 = vmatprep.subr.mxu0 0.0
  %76 = vmatpush1.msra.mxu0 0.0
  %77 = vmatprep.subr.mxu0 0.0
  %78 = vmatpush1.msra.mxu0 0.0
  %79 = vmatprep.subr.mxu0 0.0
  %80 = vmatpush1.msra.mxu0 0.0
  %81 = vmatprep.subr.mxu0 0.0
  %82 = vmatpush1.msra.mxu0 0.0
  %83 = vmatprep.subr.mxu0 0.0
  %84 = vmatpush1.msra.mxu0 0.0
  %85 = vmatprep.subr.mxu0 0.0
  %86 = vmatpush1.msra.mxu0 0.0
  %87 = vmatprep.subr.mxu0 0.0
  %88 = vmatpush1.msra.mxu0 0.0
  %89 = vmatprep.subr.mxu0 0.0
  %90 = vmatpush1.msra.mxu0 0.0
  %91 = vmatprep.subr.mxu0 0.0
  %92 = vmatpush1.msra.mxu0 0.0
  %93 = vmatprep.subr.mxu0 0.0
  %94 = vmatpush1.msra.mxu0 0.0
  %95 = vmatprep.subr.mxu0 0.0
  %96 = vmatpush1.msra.mxu0 0.0
  %97 = vmatprep.subr.mxu0 0.0
  %98 = vmatpush1.msra.mxu0 0.0
  %99 = vmatprep.mubr.f32.mxu0 0.0
  %100 = vmatmul.mubr.f32.gmra.mrb[0].mxu0 %v30
  %v101 = vpop.f32.mrb[0].mxu0
  %v102 = vadd.f32 0.0, %v101
  %v103 = vpop.f32.mrb[0].mxu0
  %104 = vmatprep.mubr.f32.mxu0 0.0
  %105 = vmatmul.mubr.f32.gmra.mrb[0].mxu0 %v33
  %v106 = vpop.f32.mrb[0].mxu0
  %v107 = vadd.f32 0.0, %v106
  %v108 = vpop.f32.mrb[0].mxu0
  %109 = vdwg.mxu0
  %v110 = vadd.f32 %v20, %v102
  %v111 = vadd.f32 %v21, %v107
  %112 = vst [vmem:[#allocation2] sm:$0xff] %v110
  %113 = vst [vmem:[#allocation2 + $0x8] sm:$0xff] %v111
  // Predicated region
  $region18: #{gpt_forward.35} parent=0 // pred_check
    %p114 = pneg %p14
  $region19: #{gpt_forward.35} parent=0 // pred_check_branch
    %116 = sbr.rel (%p114) target = $region21
  $region20: #{gpt_forward.35} parent=0 // pred_region
    %v117 = vld [vmem:[#allocation2] sm:$0xff]
    %v118 = vld [vmem:[#allocation2 + $0x8] sm:$0xff]
    %v119 = vld [vmem:[%s2] sm:$0x1]
    %v121 = vlaneseq
    %v122 = vshrl.u32 %v121, 7
    %v123 = vsub.s32 0, %v122
    %v124 = vrot.slane %v119, %v123
    %v126 = vadd.f32 %v117, %v124
    %v127 = vadd.f32 %v118, %v124
    %128 = vst [vmem:[%s3] sm:$0xff] %v126
    %129 = vst [vmem:[%s3 + $0x8] sm:$0xff] %v127
  $region21: #{gpt_forward.35} parent=0 // pred_fallthru
    _
  // Predicated region
  $region22: #{gpt_forward.35} parent=0 // pred_check
    _
  $region23: #{gpt_forward.35} parent=0 // pred_check_branch
    %131 = sbr.rel (0) target = $region25
  $region24: #{gpt_forward.35} parent=0 // pred_region
    _
  $region25: #{gpt_forward.35} parent=0 // pred_fallthru
    _
  // Predicated region
  $region26: #{gpt_forward.35} parent=0 // pred_check
    _
  $region27: #{gpt_forward.35} parent=0 // pred_check_branch
    %133 = sbr.rel (0) target = $region29
  $region28: #{gpt_forward.35} parent=0 // pred_region
    _
  $region29: #{gpt_forward.35} parent=0 // pred_fallthru
    _

// kernel: gpt_forward.26
$region0: #{gpt_forward.26}
  #allocation0 [shape = 'u32[]', space=smem, size = 0x4, offset = 0x4, fixed_abs, tag = 'smem constant byte address 0x4 - core index']
  #allocation1 [shape = 'u32[144,128]{1,0:T(1,128)}', space=vmem, size = 0x12000, scoped, tag = 'internal scratch']
  #allocation2 [shape = 'f32[16,32]{1,0:T(8,128)}', space=vmem, size = 0x2000, scoped, tag = 'scratch operand']
  %s0 = inlined_call_operand.vmem [shape: f32[16,32], index: 0, kind: input, shape index: {}]
  %s1 = inlined_call_operand.vmem [shape: f32[32,64], index: 1, kind: input, shape index: {}]
  %s2 = inlined_call_operand.vmem [shape: f32[1,64], index: 2, kind: input, shape index: {}]
  %s3 = inlined_call_operand.vmem [shape: f32[64,32], index: 3, kind: input, shape index: {}]
  %s4 = inlined_call_operand.vmem [shape: f32[1,32], index: 4, kind: input, shape index: {}]
  %s5 = inlined_call_operand.vmem [shape: f32[1,32], index: 5, kind: input, shape index: {}]
  %s6 = inlined_call_operand.vmem [shape: f32[1,32], index: 6, kind: input, shape index: {}]
  %s7 = inlined_call_operand.vmem [shape: f32[16,32], index: 7, kind: output, shape index: {}]
  %s8 = sld [smem:[#allocation0]]
  $region46: #{gpt_forward.26} parent=0
    _
  %s10 = ssub.s32 1, %s8
  %s11 = scalar_select 0, %s10, %s8
  // Predicated region
  $region2: #{gpt_forward.26} parent=0 // pred_check
    _
  $region3: #{gpt_forward.26} parent=0 // pred_check_branch
    %13 = sbr.rel (0) target = $region5
  $region4: #{gpt_forward.26} parent=0 // pred_region
    _
  $region5: #{gpt_forward.26} parent=0 // pred_fallthru
    _
  // Predicated region
  $region6: #{gpt_forward.26} parent=0 // pred_check
    _
  $region7: #{gpt_forward.26} parent=0 // pred_check_branch
    %15 = sbr.rel (0) target = $region9
  $region8: #{gpt_forward.26} parent=0 // pred_region
    _
  $region9: #{gpt_forward.26} parent=0 // pred_fallthru
    _
  // Predicated region
  $region10: #{gpt_forward.26} parent=0 // pred_check
    _
  $region11: #{gpt_forward.26} parent=0 // pred_check_branch
    %17 = sbr.rel (0) target = $region13
  $region12: #{gpt_forward.26} parent=0 // pred_region
    _
  $region13: #{gpt_forward.26} parent=0 // pred_fallthru
    _
  // Predicated region
  $region14: #{gpt_forward.26} parent=0 // pred_check
    _
  $region15: #{gpt_forward.26} parent=0 // pred_check_branch
    %19 = sbr.rel (0) target = $region17
  $region16: #{gpt_forward.26} parent=0 // pred_region
    _
  $region17: #{gpt_forward.26} parent=0 // pred_fallthru
    _
  // Predicated region
  $region18: #{gpt_forward.26} parent=0 // pred_check
    _
  $region19: #{gpt_forward.26} parent=0 // pred_check_branch
    %21 = sbr.rel (0) target = $region21
  $region20: #{gpt_forward.26} parent=0 // pred_region
    _
  $region21: #{gpt_forward.26} parent=0 // pred_fallthru
    _
  // Predicated region
  $region22: #{gpt_forward.26} parent=0 // pred_check
    _
  $region23: #{gpt_forward.26} parent=0 // pred_check_branch
    %23 = sbr.rel (0) target = $region25
  $region24: #{gpt_forward.26} parent=0 // pred_region
    _
  $region25: #{gpt_forward.26} parent=0 // pred_fallthru
    _
  // Predicated region
  $region26: #{gpt_forward.26} parent=0 // pred_check
    _
  $region27: #{gpt_forward.26} parent=0 // pred_check_branch
    %25 = sbr.rel (0) target = $region29
  $region28: #{gpt_forward.26} parent=0 // pred_region
    _
  $region29: #{gpt_forward.26} parent=0 // pred_fallthru
    _
  %p26 = scmp.eq.s32.totalorder 0, 0
  // Predicated region
  $region30: #{gpt_forward.26} parent=0 // pred_check
    %p27 = pneg %p26
  $region31: #{gpt_forward.26} parent=0 // pred_check_branch
    %29 = sbr.rel (%p27) target = $region33
  $region32: #{gpt_forward.26} parent=0 // pred_region
    %vm30 = vcmask 261120
    %31 = vst.msk [vmem:[#allocation2] sm:$0xff] %vm30, 0.0
    %32 = vst.msk [vmem:[#allocation2 + $0x8] sm:$0xff] %vm30, 0.0
  $region33: #{gpt_forward.26} parent=0 // pred_fallthru
    _
  %v33 = vld [vmem:[%s0] sm:$0xff]
  %v34 = vld [vmem:[%s0 + $0x8] sm:$0xff]
  %v35 = vld [vmem:[%s1] sm:$0xff]
  %v36 = vld [vmem:[%s1 + $0x8] sm:$0xff]
  %v37 = vld [vmem:[%s1 + $0x10] sm:$0xff]
  %v38 = vld [vmem:[%s1 + $0x18] sm:$0xff]
  %v39 = vld [vmem:[%s2] sm:$0x1]
  %v41 = vlaneseq
  %v42 = vshrl.u32 %v41, 7
  %v43 = vsub.s32 0, %v42
  %v44 = vrot.slane %v39, %v43
  %vm46 = vcmask 261120
  %v48 = vsel %vm46, %v33, 0
  %v51 = vsel %vm46, %v34, 0
  %53 = vmatprep.subr.mxu0 0.0
  %54 = vmatpush1.msra.mxu0 %v35
  %55 = vmatprep.subr.mxu0 0.0
  %56 = vmatpush1.msra.mxu0 %v36
  %57 = vmatprep.subr.mxu0 0.0
  %58 = vmatpush1.msra.mxu0 %v37
  %59 = vmatprep.subr.mxu0 0.0
  %60 = vmatpush1.msra.mxu0 %v38
  %61 = vmatprep.subr.mxu0 0.0
  %62 = vmatpush1.msra.mxu0 0.0
  %63 = vmatprep.subr.mxu0 0.0
  %64 = vmatpush1.msra.mxu0 0.0
  %65 = vmatprep.subr.mxu0 0.0
  %66 = vmatpush1.msra.mxu0 0.0
  %67 = vmatprep.subr.mxu0 0.0
  %68 = vmatpush1.msra.mxu0 0.0
  %69 = vmatprep.subr.mxu0 0.0
  %70 = vmatpush1.msra.mxu0 0.0
  %71 = vmatprep.subr.mxu0 0.0
  %72 = vmatpush1.msra.mxu0 0.0
  %73 = vmatprep.subr.mxu0 0.0
  %74 = vmatpush1.msra.mxu0 0.0
  %75 = vmatprep.subr.mxu0 0.0
  %76 = vmatpush1.msra.mxu0 0.0
  %77 = vmatprep.subr.mxu0 0.0
  %78 = vmatpush1.msra.mxu0 0.0
  %79 = vmatprep.subr.mxu0 0.0
  %80 = vmatpush1.msra.mxu0 0.0
  %81 = vmatprep.subr.mxu0 0.0
  %82 = vmatpush1.msra.mxu0 0.0
  %83 = vmatprep.subr.mxu0 0.0
  %84 = vmatpush1.msra.mxu0 0.0
  %85 = vmatprep.subr.mxu0 0.0
  %86 = vmatpush1.msra.mxu0 0.0
  %87 = vmatprep.subr.mxu0 0.0
  %88 = vmatpush1.msra.mxu0 0.0
  %89 = vmatprep.subr.mxu0 0.0
  %90 = vmatpush1.msra.mxu0 0.0
  %91 = vmatprep.subr.mxu0 0.0
  %92 = vmatpush1.msra.mxu0 0.0
  %93 = vmatprep.subr.mxu0 0.0
  %94 = vmatpush1.msra.mxu0 0.0
  %95 = vmatprep.subr.mxu0 0.0
  %96 = vmatpush1.msra.mxu0 0.0
  %97 = vmatprep.subr.mxu0 0.0
  %98 = vmatpush1.msra.mxu0 0.0
  %99 = vmatprep.subr.mxu0 0.0
  %100 = vmatpush1.msra.mxu0 0.0
  %101 = vmatprep.subr.mxu0 0.0
  %102 = vmatpush1.msra.mxu0 0.0
  %103 = vmatprep.subr.mxu0 0.0
  %104 = vmatpush1.msra.mxu0 0.0
  %105 = vmatprep.subr.mxu0 0.0
  %106 = vmatpush1.msra.mxu0 0.0
  %107 = vmatprep.subr.mxu0 0.0
  %108 = vmatpush1.msra.mxu0 0.0
  %109 = vmatprep.subr.mxu0 0.0
  %110 = vmatpush1.msra.mxu0 0.0
  %111 = vmatprep.subr.mxu0 0.0
  %112 = vmatpush1.msra.mxu0 0.0
  %113 = vmatprep.subr.mxu0 0.0
  %114 = vmatpush1.msra.mxu0 0.0
  %115 = vmatprep.subr.mxu0 0.0
  %116 = vmatpush1.msra.mxu0 0.0
  %117 = vmatprep.mubr.f32.mxu0 0.0
  %118 = vmatmul.mubr.f32.gmra.mrb[0].mxu0 %v48
  %v119 = vpop.f32.mrb[0].mxu0
  %v120 = vadd.f32 %v44, %v119
  %v121 = vpop.f32.mrb[0].mxu0
  %122 = vmatprep.mubr.f32.mxu0 0.0
  %123 = vmatmul.mubr.f32.gmra.mrb[0].mxu0 %v51
  %v124 = vpop.f32.mrb[0].mxu0
  %v125 = vadd.f32 %v44, %v124
  %v126 = vpop.f32.mrb[0].mxu0
  %127 = vdwg.mxu0
  %v128 = vmax.f32 %v120, 0.0
  %v129 = vmax.f32 %v125, 0.0
  %v130 = vld [vmem:[#allocation2] sm:$0xff]
  %v131 = vld [vmem:[#allocation2 + $0x8] sm:$0xff]
  %v132 = vld [vmem:[%s3] sm:$0xff]
  %v133 = vld [vmem:[%s3 + $0x8] sm:$0xff]
  %v134 = vld [vmem:[%s3 + $0x10] sm:$0xff]
  %v135 = vld [vmem:[%s3 + $0x18] sm:$0xff]
  %v136 = vld [vmem:[%s3 + $0x20] sm:$0xff]
  %v137 = vld [vmem:[%s3 + $0x28] sm:$0xff]
  %v138 = vld [vmem:[%s3 + $0x30] sm:$0xff]
  %v139 = vld [vmem:[%s3 + $0x38] sm:$0xff]
  %vm140 = vcmask 523264
  %v142 = vsel %vm140, %v128, 0
  %v145 = vsel %vm140, %v129, 0
  %147 = vmatprep.subr.mxu0 0.0
  %148 = vmatpush1.msra.mxu0 %v132
  %149 = vmatprep.subr.mxu0 0.0
  %150 = vmatpush1.msra.mxu0 %v133
  %151 = vmatprep.subr.mxu0 0.0
  %152 = vmatpush1.msra.mxu0 %v134
  %153 = vmatprep.subr.mxu0 0.0
  %154 = vmatpush1.msra.mxu0 %v135
  %155 = vmatprep.subr.mxu0 0.0
  %156 = vmatpush1.msra.mxu0 %v136
  %157 = vmatprep.subr.mxu0 0.0
  %158 = vmatpush1.msra.mxu0 %v137
  %159 = vmatprep.subr.mxu0 0.0
  %160 = vmatpush1.msra.mxu0 %v138
  %161 = vmatprep.subr.mxu0 0.0
  %162 = vmatpush1.msra.mxu0 %v139
  %163 = vmatprep.subr.mxu0 0.0
  %164 = vmatpush1.msra.mxu0 0.0
  %165 = vmatprep.subr.mxu0 0.0
  %166 = vmatpush1.msra.mxu0 0.0
  %167 = vmatprep.subr.mxu0 0.0
  %168 = vmatpush1.msra.mxu0 0.0
  %169 = vmatprep.subr.mxu0 0.0
  %170 = vmatpush1.msra.mxu0 0.0
  %171 = vmatprep.subr.mxu0 0.0
  %172 = vmatpush1.msra.mxu0 0.0
  %173 = vmatprep.subr.mxu0 0.0
  %174 = vmatpush1.msra.mxu0 0.0
  %175 = vmatprep.subr.mxu0 0.0
  %176 = vmatpush1.msra.mxu0 0.0
  %177 = vmatprep.subr.mxu0 0.0
  %178 = vmatpush1.msra.mxu0 0.0
  %179 = vmatprep.subr.mxu0 0.0
  %180 = vmatpush1.msra.mxu0 0.0
  %181 = vmatprep.subr.mxu0 0.0
  %182 = vmatpush1.msra.mxu0 0.0
  %183 = vmatprep.subr.mxu0 0.0
  %184 = vmatpush1.msra.mxu0 0.0
  %185 = vmatprep.subr.mxu0 0.0
  %186 = vmatpush1.msra.mxu0 0.0
  %187 = vmatprep.subr.mxu0 0.0
  %188 = vmatpush1.msra.mxu0 0.0
  %189 = vmatprep.subr.mxu0 0.0
  %190 = vmatpush1.msra.mxu0 0.0
  %191 = vmatprep.subr.mxu0 0.0
  %192 = vmatpush1.msra.mxu0 0.0
  %193 = vmatprep.subr.mxu0 0.0
  %194 = vmatpush1.msra.mxu0 0.0
  %195 = vmatprep.subr.mxu0 0.0
  %196 = vmatpush1.msra.mxu0 0.0
  %197 = vmatprep.subr.mxu0 0.0
  %198 = vmatpush1.msra.mxu0 0.0
  %199 = vmatprep.subr.mxu0 0.0
  %200 = vmatpush1.msra.mxu0 0.0
  %201 = vmatprep.subr.mxu0 0.0
  %202 = vmatpush1.msra.mxu0 0.0
  %203 = vmatprep.subr.mxu0 0.0
  %204 = vmatpush1.msra.mxu0 0.0
  %205 = vmatprep.subr.mxu0 0.0
  %206 = vmatpush1.msra.mxu0 0.0
  %207 = vmatprep.subr.mxu0 0.0
  %208 = vmatpush1.msra.mxu0 0.0
  %209 = vmatprep.subr.mxu0 0.0
  %210 = vmatpush1.msra.mxu0 0.0
  %211 = vmatprep.mubr.f32.mxu0 0.0
  %212 = vmatmul.mubr.f32.gmra.mrb[0].mxu0 %v142
  %v213 = vpop.f32.mrb[0].mxu0
  %v214 = vadd.f32 0.0, %v213
  %v215 = vpop.f32.mrb[0].mxu0
  %216 = vmatprep.mubr.f32.mxu0 0.0
  %217 = vmatmul.mubr.f32.gmra.mrb[0].mxu0 %v145
  %v218 = vpop.f32.mrb[0].mxu0
  %v219 = vadd.f32 0.0, %v218
  %v220 = vpop.f32.mrb[0].mxu0
  %221 = vdwg.mxu0
  %v222 = vadd.f32 %v130, %v214
  %v223 = vadd.f32 %v131, %v219
  %224 = vst.msk [vmem:[#allocation2] sm:$0xff] %vm46, %v222
  %225 = vst.msk [vmem:[#allocation2 + $0x8] sm:$0xff] %vm46, %v223
  // Predicated region
  $region34: #{gpt_forward.26} parent=0 // pred_check
    %p226 = pneg %p26
  $region35: #{gpt_forward.26} parent=0 // pred_check_branch
    %228 = sbr.rel (%p226) target = $region37
  $region36: #{gpt_forward.26} parent=0 // pred_region
    %v229 = vld [vmem:[#allocation2] sm:$0xff]
    %v230 = vld [vmem:[#allocation2 + $0x8] sm:$0xff]
    %v231 = vld [vmem:[%s4] sm:$0x1]
    %v233 = vlaneseq
    %v234 = vshrl.u32 %v233, 7
    %v235 = vsub.s32 0, %v234
    %v236 = vrot.slane %v231, %v235
    %v238 = vadd.f32 %v229, %v236
    %v239 = vadd.f32 %v230, %v236
    %v240 = vld [vmem:[%s0] sm:$0xff]
    %v241 = vld [vmem:[%s0 + $0x8] sm:$0xff]
    %v242 = vadd.f32 %v238, %v240
    %v243 = vadd.f32 %v239, %v241
    %v244 = vsel %vm46, %v242, 0.0
    %245 = vadd.xlane.f32.xlu0 %v244
    %v246 = vpop.xlane.xlu0 %245
    %v247 = vsel %vm46, %v243, 0.0
    %248 = vadd.xlane.f32.xlu0 %v247
    %v249 = vpop.xlane.xlu0 %248
    %v250 = vrcp.pop 32.0
    %v251 = vmul.f32 %v246, %v250
    %v252 = vmul.f32 %v249, %v250
    %v253 = vsub.f32 %v242, %v251
    %v254 = vsub.f32 %v243, %v252
    %v255 = vmul.f32 %v253, %v253
    %v256 = vmul.f32 %v254, %v254
    %v257 = vsel %vm46, %v255, 0.0
    %258 = vadd.xlane.f32.xlu0 %v257
    %v259 = vpop.xlane.xlu0 %258
    %v260 = vsel %vm46, %v256, 0.0
    %261 = vadd.xlane.f32.xlu0 %v260
    %v262 = vpop.xlane.xlu0 %261
    %v263 = vmul.f32 %v259, %v250
    %v264 = vmul.f32 %v262, %v250
    %v265 = vadd.f32 %v263, 1e-05
    %v266 = vadd.f32 %v264, 1e-05
    %v267 = vrsqrt.pop %v265
    %v268 = vrsqrt.pop %v266
    %v269 = vmul.f32 %v253, %v267
    %v270 = vmul.f32 %v254, %v268
    %v271 = vld [vmem:[%s5] sm:$0x1]
    %v273 = vlaneseq
    %v274 = vshrl.u32 %v273, 7
    %v275 = vsub.s32 0, %v274
    %v276 = vrot.slane %v271, %v275
    %v278 = vmul.f32 %v269, %v276
    %v279 = vmul.f32 %v270, %v276
    %v280 = vld [vmem:[%s6] sm:$0x1]
    %v282 = vlaneseq
    %v283 = vshrl.u32 %v282, 7
    %v284 = vsub.s32 0, %v283
    %v285 = vrot.slane %v280, %v284
    %v287 = vadd.f32 %v278, %v285
    %v288 = vadd.f32 %v279, %v285
    %289 = vst.msk [vmem:[%s7] sm:$0xff] %vm46, %v287
    %290 = vst.msk [vmem:[%s7 + $0x8] sm:$0xff] %vm46, %v288
  $region37: #{gpt_forward.26} parent=0 // pred_fallthru
    _
  // Predicated region
  $region38: #{gpt_forward.26} parent=0 // pred_check
    _
  $region39: #{gpt_forward.26} parent=0 // pred_check_branch
    %292 = sbr.rel (0) target = $region41
  $region40: #{gpt_forward.26} parent=0 // pred_region
    _
  $region41: #{gpt_forward.26} parent=0 // pred_fallthru
    _
  // Predicated region
  $region42: #{gpt_forward.26} parent=0 // pred_check
    _
  $region43: #{gpt_forward.26} parent=0 // pred_check_branch
    %294 = sbr.rel (0) target = $region45
  $region44: #{gpt_forward.26} parent=0 // pred_region
    _
  $region45: #{gpt_forward.26} parent=0 // pred_fallthru
    _

</llo_original>
